<compile_context>
chip_gen: v6e
topology: v6e:2x2x1
jax: 0.10.0
libtpu: 0.0.40
codegen_flags: <defaults>
</compile_context>

<pallas_src>
import functools
import math

import jax
import jax.numpy as jnp
from jax.experimental import pallas as pl
from jax.experimental.pallas import tpu as pltpu


# ----------------------------- attention kernel ------------------------------

def _attn_kernel(xcf_ref, xnc_ref, xv_ref, wq_ref, wqT_ref, bqc_ref, bqr_ref,
                 a_ref, g_ref, *, inv_scalar):
    """One (batch, head, q-tile) step of g = softmax(-||q_i-q_j||^2/s) @ x_view @ A."""
    # Channel-first query projection for ALL positions (lane-dense, dh x N).
    q_cf = (jnp.dot(wq_ref[...], xcf_ref[...],
                    preferred_element_type=jnp.float32) + bqc_ref[...])
    # ||q_j||^2 as a (1, N) row — exactly the broadcast shape the scores need.
    sq = jnp.sum(q_cf * q_cf, axis=0, keepdims=True)
    # Query rows of this q-tile, channels-last (TQ x dh).
    pq = (jnp.dot(xnc_ref[...], wqT_ref[...],
                  preferred_element_type=jnp.float32) + bqr_ref[...])
    # gram[i, j] = <q_i, q_j>, as a standard (TQ, dh) @ (dh, N) matmul.
    gram = jnp.dot(pq, q_cf, preferred_element_type=jnp.float32)
    # Scores: the row-constant ||q_i||^2 term of the PyTorch code cancels in the
    # row softmax, so it (and the ones-vector broadcast matmuls) is dropped.
    s = (sq - 2.0 * gram) * (-inv_scalar)
    m = jnp.max(s, axis=-1, keepdims=True)
    e = jnp.exp(s - m)
    denom = jnp.sum(e, axis=-1, keepdims=True)
    # Unnormalised P @ x_view, then one reciprocal per row (EUP) instead of
    # N^2 divides.
    t = jnp.dot(e, xv_ref[...], preferred_element_type=jnp.float32)
    t = t * pl.reciprocal(denom, approx=True)
    g_ref[...] = jnp.dot(t, a_ref[...],
                         preferred_element_type=jnp.float32).astype(g_ref.dtype)


def _pick_q_tile(n):
    if n <= 512:
        return n
    for t in (512, 256, 128, 64, 32, 16, 8):
        if n % t == 0:
            return t
    return n


def attn_all_heads(x_cf, x_nc, x_view, wq, wqT, bq_col, bq_row, A, scalar):
    B, D, N = x_cf.shape
    H, dh, _ = wq.shape
    TQ = _pick_q_tile(N)
    nq = N // TQ
    kernel = functools.partial(_attn_kernel, inv_scalar=1.0 / float(scalar))
    return pl.pallas_call(
        kernel,
        out_shape=jax.ShapeDtypeStruct((B, H, N, D), jnp.float32),
        grid=(B, H, nq),
        in_specs=[
            pl.BlockSpec((None, D, N), lambda b, h, t: (b, 0, 0)),    # x channel-first (keys)
            pl.BlockSpec((None, TQ, D), lambda b, h, t: (b, t, 0)),   # x^T rows (queries of this tile)
            pl.BlockSpec((None, N, D), lambda b, h, t: (b, 0, 0)),    # torch x.view(B, N, D) (values)
            pl.BlockSpec((None, dh, D), lambda b, h, t: (h, 0, 0)),   # Wq
            pl.BlockSpec((None, D, dh), lambda b, h, t: (h, 0, 0)),   # Wq^T
            pl.BlockSpec((None, dh, 1), lambda b, h, t: (h, 0, 0)),   # bq (column form)
            pl.BlockSpec((None, 1, dh), lambda b, h, t: (h, 0, 0)),   # bq (row form)
            pl.BlockSpec((None, D, D), lambda b, h, t: (h, 0, 0)),    # A_h
        ],
        out_specs=pl.BlockSpec((None, None, TQ, D), lambda b, h, t: (b, h, t, 0)),
        compiler_params=pltpu.CompilerParams(
            dimension_semantics=("parallel", "parallel", "parallel")),
    )(x_cf, x_nc, x_view, wq, wqT, bq_col, bq_row, A)


# ------------------------ batched per-head value conv ------------------------

def _value_conv_kernel(g_ref, wv_ref, bv_ref, out_ref):
    out_ref[...] = (jnp.dot(wv_ref[...], g_ref[...],
                            preferred_element_type=jnp.float32)
                    + bv_ref[...]).astype(out_ref.dtype)


def value_conv_all_heads(g_cn, wv, bv_col):
    B, H, D, N = g_cn.shape
    dh = wv.shape[1]
    return pl.pallas_call(
        _value_conv_kernel,
        out_shape=jax.ShapeDtypeStruct((B, H, dh, N), jnp.float32),
        grid=(B, H),
        in_specs=[
            pl.BlockSpec((None, None, D, N), lambda b, h: (b, h, 0, 0)),
            pl.BlockSpec((None, dh, D), lambda b, h: (h, 0, 0)),
            pl.BlockSpec((None, dh, 1), lambda b, h: (h, 0, 0)),
        ],
        out_specs=pl.BlockSpec((None, None, dh, N), lambda b, h: (b, h, 0, 0)),
        compiler_params=pltpu.CompilerParams(
            dimension_semantics=("parallel", "parallel")),
    )(g_cn, wv, bv_col)


# --------------------- fused output conv + scale + residual ------------------

def _out_residual_kernel(cat_ref, wo_ref, bo_ref, x_ref, out_ref):
    # gamma/bound is already folded into wo/bo -> single matmul + add epilogue.
    conv = jnp.dot(wo_ref[...], cat_ref[...],
                   preferred_element_type=jnp.float32) + bo_ref[...]
    out_ref[...] = (conv + x_ref[...]).astype(out_ref.dtype)


def out_conv_residual(cat_cn, wo_eff, bo_eff, x_cf):
    B, D, N = cat_cn.shape
    return pl.pallas_call(
        _out_residual_kernel,
        out_shape=jax.ShapeDtypeStruct((B, D, N), jnp.float32),
        grid=(B,),
        in_specs=[
            pl.BlockSpec((None, D, N), lambda b: (b, 0, 0)),
            pl.BlockSpec((D, D), lambda b: (0, 0)),
            pl.BlockSpec((D, 1), lambda b: (0, 0)),
            pl.BlockSpec((None, D, N), lambda b: (b, 0, 0)),
        ],
        out_specs=pl.BlockSpec((None, D, N), lambda b: (b, 0, 0)),
        compiler_params=pltpu.CompilerParams(dimension_semantics=("parallel",)),
    )(cat_cn, wo_eff, bo_eff, x_cf)


# ------------------------------- glue / host ---------------------------------

def _lambertw_real(z: float) -> float:
    """Principal-branch real Lambert W for z > 0 (Newton iteration, host-side)."""
    w = math.log1p(z)
    for _ in range(100):
        ew = math.exp(w)
        w -= (w * ew - z) / (ew * (w + 1.0))
    return w


def compute_bound(params, N, D, heads):
    # TODO(synk): scipy.special.lambertw has no Pallas/JAX equivalent; it is a
    # scalar function of the static N only, so it is solved host-side (Newton).
    phi = _lambertw_real(N / math.e)
    term = jnp.zeros((), jnp.float32)
    for h in range(heads):
        term = term + jnp.sum(params["wq"][h] ** 2) * jnp.sum(params["wv"][h] ** 2)
    term = jnp.sqrt(term)
    return (jnp.float32(math.sqrt(N / D)) * jnp.float32(4.0 * phi + 1.0)
            * term * jnp.sqrt(jnp.sum(params["wo"] ** 2)))


def l2_self_attn_forward(x, params, heads):
    B, D, Hh, Ww = x.shape
    N = Hh * Ww
    dh = D // heads
    scalar = math.sqrt(D / heads)

    # Layouts (all metadata-only reshapes except the true transpose x_nc).
    x_cf = x.reshape(B, D, N)                 # channel-first, spatial flattened
    x_nc = jnp.transpose(x_cf, (0, 2, 1))     # true transpose (query rows)
    x_view = x.reshape(B, N, D)               # torch x.view(B, N, D) (reshape, NOT transpose)

    # Stack per-head parameters so the head loop lives on the grid.
    wq = jnp.stack(params["wq"])              # (H, dh, D)
    bq = jnp.stack(params["bq"])              # (H, dh)
    wv = jnp.stack(params["wv"])              # (H, dh, D)
    bv = jnp.stack(params["bv"])              # (H, dh)
    wqT = jnp.transpose(wq, (0, 2, 1))        # (H, D, dh)
    bq_col = bq[:, :, None]                   # (H, dh, 1)
    bq_row = bq[:, None, :]                   # (H, 1, dh)
    bv_col = bv[:, :, None]                   # (H, dh, 1)

    # A_h = W_Q_h.view(D, dh) @ W_Q_h.view(D, dh)^T / sqrt(D/heads)
    wq_v = wq.reshape(heads, D, dh)           # torch weight.view(1, D, dh)
    A = jnp.einsum("hde,hfe->hdf", wq_v, wq_v) / jnp.float32(scalar)

    g = attn_all_heads(x_cf, x_nc, x_view, wq, wqT, bq_col, bq_row, A, scalar)  # (B,H,N,D)

    # torch: f_h = g_h.view(B, D, W, H) -> 1x1 value conv -> .view(B, N, dh)
    g_cn = g.reshape(B, heads, D, N)          # free reshape (torch .view semantics)
    vout = value_conv_all_heads(g_cn, wv, bv_col)                    # (B, H, dh, N)
    f = vout.reshape(B, heads, N, dh)         # torch .view(B, N, dh), per head
    cat = jnp.transpose(f, (0, 2, 1, 3)).reshape(B, N, D)            # torch.cat(dim=2)
    cat_cn = cat.reshape(B, D, N)             # torch .view(B, D, W, H)

    # Fold gamma / bound into the output-conv weights (single fused epilogue).
    bound = compute_bound(params, N, D, heads)
    scale = params["gamma"][0] / bound
    wo_eff = scale * params["wo"]
    bo_eff = (scale * params["bo"]).reshape(D, 1)
    out_cn = out_conv_residual(cat_cn, wo_eff, bo_eff, x_cf)         # (B, D, N)
    return out_cn.reshape(B, D, Hh, Ww)


# -------------------------------- reference -----------------------------------

def reference_forward(x, params, heads):
    """Pure-JAX reference that mirrors the PyTorch code exactly."""
    B, D, Hh, Ww = x.shape
    N = Hh * Ww
    dh = D // heads
    scalar = jnp.float32(math.sqrt(D / heads))
    x_cn = x.reshape(B, D, N)
    x_nc = jnp.transpose(x_cn, (0, 2, 1))
    x_view = x.reshape(B, N, D)
    f_list = []
    for h in range(heads):
        wq, bq = params["wq"][h], params["bq"][h]
        wv, bv = params["wv"][h], params["bv"][h]
        pq = jnp.einsum("bnd,cd->bnc", x_nc, wq) + bq                  # (B, N, dh)
        sq = jnp.sum(pq ** 2, axis=-1, keepdims=True)                  # (B, N, 1)
        P2 = -2.0 * jnp.einsum("bnd,bmd->bnm", pq, pq)
        P = jax.nn.softmax((sq + P2 + jnp.swapaxes(sq, 1, 2)) / (-scalar), axis=-1)
        WQh = wq.reshape(D, dh)
        A = jnp.dot(WQh, WQh.T) / scalar
        g = jnp.einsum("bnm,bmd->bnd", P, x_view) @ A
        f_cn = g.reshape(B, D, N)
        vout = jnp.einsum("cd,bdn->bcn", wv, f_cn) + bv[None, :, None]
        f_list.append(vout.reshape(B, N, dh))
    cat = jnp.concatenate(f_list, axis=2)
    cat_cn = cat.reshape(B, D, N)
    conv = jnp.einsum("cd,bdn->bcn", params["wo"], cat_cn) + params["bo"][None, :, None]
    out = conv / compute_bound(params, N, D, heads)
    out = params["gamma"][0] * out + x_cn
    return out.reshape(B, D, Hh, Ww)


def init_params(key, D, heads):
    dh = D // heads
    ks = jax.random.split(key, 4 * heads + 2)
    wq = [0.3 * jax.random.normal(ks[4 * h + 0], (dh, D), jnp.float32) for h in range(heads)]
    bq = [0.1 * jax.random.normal(ks[4 * h + 1], (dh,), jnp.float32) for h in range(heads)]
    wv = [0.3 * jax.random.normal(ks[4 * h + 2], (dh, D), jnp.float32) for h in range(heads)]
    bv = [0.1 * jax.random.normal(ks[4 * h + 3], (dh,), jnp.float32) for h in range(heads)]
    wo = 0.3 * jax.random.normal(ks[-2], (D, D), jnp.float32)
    bo = 0.1 * jax.random.normal(ks[-1], (D,), jnp.float32)
    # PyTorch initializes gamma to 0 (output == x); use a nonzero deterministic
    # value here so the attention path is actually exercised.
    gamma = jnp.array([0.25], jnp.float32)
    return dict(wq=wq, bq=bq, wv=wv, bv=bv, wo=wo, bo=bo, gamma=gamma)


def _run_case(B, D, Hh, Ww, heads, seed):
    key = jax.random.PRNGKey(seed)
    kx, kp = jax.random.split(key)
    x = jax.random.normal(kx, (B, D, Hh, Ww), jnp.float32)
    params = init_params(kp, D, heads)

    fwd = jax.jit(l2_self_attn_forward, static_argnames="heads")
    out = jax.block_until_ready(fwd(x, params, heads=heads))

    ref = reference_forward(x, params, heads)
    assert out.shape == x.shape
    assert bool(jnp.allclose(out, ref, rtol=1e-3, atol=1e-3)), "full-output mismatch"
    # also compare the (small) attention delta itself so the check is meaningful
    assert bool(jnp.allclose(out - x, ref - x, rtol=5e-2, atol=5e-5)), "delta mismatch"


if __name__ == "__main__":
    _run_case(B=2, D=4, Hh=16, Ww=16, heads=1, seed=0)   # module default (heads=1)
    _run_case(B=2, D=8, Hh=8, Ww=8, heads=2, seed=1)     # exercises the multi-head grid axis
    print("KERNEL_OK")
</pallas_src>

<mosaic_0001>
module attributes {stable_mosaic.version = 11 : i64} {
  func.func @_value_conv_kernel(%arg0: i32, %arg1: i32, %arg2: memref<1x1x4x256xf32, #tpu.memory_space<vmem>>, %arg3: memref<1x4x4xf32, #tpu.memory_space<vmem>>, %arg4: memref<1x4x1xf32, #tpu.memory_space<vmem>>, %arg5: memref<1x1x4x256xf32, #tpu.memory_space<vmem>>) attributes {dimension_semantics = [#tpu.dimension_semantics<parallel>, #tpu.dimension_semantics<parallel>], iteration_bounds = array<i64: 2, 1>, scalar_prefetch = 0 : i64, scratch_operands = 0 : i64, tpu.core_type = #tpu.core_type<tc>, window_params = [{transform_indices = @transform_0, window_bounds = array<i64: 1, 1, 4, 256>}, {transform_indices = @transform_1, window_bounds = array<i64: 1, 4, 4>}, {transform_indices = @transform_2, window_bounds = array<i64: 1, 4, 1>}, {transform_indices = @transform_3, window_bounds = array<i64: 1, 1, 4, 256>}]} {
    %c0 = arith.constant 0 : index
    %c0_0 = arith.constant 0 : index
    %c0_1 = arith.constant 0 : index
    %0 = vector.load %arg3[%c0, %c0_0, %c0_1] : memref<1x4x4xf32, #tpu.memory_space<vmem>>, vector<1x4x4xf32>
    %1 = vector.shape_cast %0 : vector<1x4x4xf32> to vector<4x4xf32>
    %c0_2 = arith.constant 0 : index
    %c0_3 = arith.constant 0 : index
    %c0_4 = arith.constant 0 : index
    %c0_5 = arith.constant 0 : index
    %2 = vector.load %arg2[%c0_2, %c0_3, %c0_4, %c0_5] : memref<1x1x4x256xf32, #tpu.memory_space<vmem>>, vector<1x1x4x256xf32>
    %3 = vector.shape_cast %2 : vector<1x1x4x256xf32> to vector<4x256xf32>
    %cst = arith.constant dense<0.000000e+00> : vector<4x256xf32>
    %4 = tpu.matmul %1, %3, %cst {dimension_numbers = #tpu.dot_dimension_numbers<[1], [0], [0], [1], [0, 0, 1, 1], [], []>} : vector<4x4xf32>, vector<4x256xf32>, vector<4x256xf32> -> vector<4x256xf32>
    %c0_6 = arith.constant 0 : index
    %c0_7 = arith.constant 0 : index
    %c0_8 = arith.constant 0 : index
    %5 = vector.load %arg4[%c0_6, %c0_7, %c0_8] : memref<1x4x1xf32, #tpu.memory_space<vmem>>, vector<1x4x1xf32>
    %6 = vector.shape_cast %5 : vector<1x4x1xf32> to vector<4x1xf32>
    %7 = vector.broadcast %6 : vector<4x1xf32> to vector<4x256xf32>
    %8 = arith.addf %4, %7 : vector<4x256xf32>
    %c0_9 = arith.constant 0 : index
    %c0_10 = arith.constant 0 : index
    %c0_11 = arith.constant 0 : index
    %c0_12 = arith.constant 0 : index
    %9 = vector.load %arg5[%c0_9, %c0_10, %c0_11, %c0_12] : memref<1x1x4x256xf32, #tpu.memory_space<vmem>>, vector<1x1x4x256xf32>
    %10 = vector.shape_cast %9 : vector<1x1x4x256xf32> to vector<4x256xf32>
    %11 = vector.shape_cast %8 : vector<4x256xf32> to vector<1x1x4x256xf32>
    tpu.vector_store %arg5[%c0_9, %c0_10, %c0_11, %c0_12], %11 {strides = array<i32>} : memref<1x1x4x256xf32, #tpu.memory_space<vmem>>, vector<1x1x4x256xf32>,
    return
  }
  func.func @transform_0(%arg0: i32, %arg1: i32) -> (i32, i32, i32, i32) {
    %c0_i32 = arith.constant 0 : i32
    %c0_i32_0 = arith.constant 0 : i32
    %c0_i32_1 = arith.constant 0 : i32
    return %arg0, %arg1, %c0_i32, %c0_i32_0 : i32, i32, i32, i32
  }
  func.func @transform_1(%arg0: i32, %arg1: i32) -> (i32, i32, i32) {
    %c0_i32 = arith.constant 0 : i32
    %c0_i32_0 = arith.constant 0 : i32
    %c0_i32_1 = arith.constant 0 : i32
    return %arg1, %c0_i32, %c0_i32_0 : i32, i32, i32
  }
  func.func @transform_2(%arg0: i32, %arg1: i32) -> (i32, i32, i32) {
    %c0_i32 = arith.constant 0 : i32
    %c0_i32_0 = arith.constant 0 : i32
    %c0_i32_1 = arith.constant 0 : i32
    return %arg1, %c0_i32, %c0_i32_0 : i32, i32, i32
  }
  func.func @transform_3(%arg0: i32, %arg1: i32) -> (i32, i32, i32, i32) {
    %c0_i32 = arith.constant 0 : i32
    %c0_i32_0 = arith.constant 0 : i32
    %c0_i32_1 = arith.constant 0 : i32
    return %arg0, %arg1, %c0_i32, %c0_i32_0 : i32, i32, i32, i32
  }
}

module attributes {stable_mosaic.version = 11 : i64} {
  func.func @_attn_kernel(%arg0: i32, %arg1: i32, %arg2: i32, %arg3: memref<1x4x256xf32, #tpu.memory_space<vmem>>, %arg4: memref<1x256x4xf32, #tpu.memory_space<vmem>>, %arg5: memref<1x256x4xf32, #tpu.memory_space<vmem>>, %arg6: memref<1x4x4xf32, #tpu.memory_space<vmem>>, %arg7: memref<1x4x4xf32, #tpu.memory_space<vmem>>, %arg8: memref<1x4x1xf32, #tpu.memory_space<vmem>>, %arg9: memref<1x1x4xf32, #tpu.memory_space<vmem>>, %arg10: memref<1x4x4xf32, #tpu.memory_space<vmem>>, %arg11: memref<1x1x256x4xf32, #tpu.memory_space<vmem>>) attributes {dimension_semantics = [#tpu.dimension_semantics<parallel>, #tpu.dimension_semantics<parallel>, #tpu.dimension_semantics<parallel>], iteration_bounds = array<i64: 2, 1, 1>, scalar_prefetch = 0 : i64, scratch_operands = 0 : i64, tpu.core_type = #tpu.core_type<tc>, window_params = [{transform_indices = @transform_0, window_bounds = array<i64: 1, 4, 256>}, {transform_indices = @transform_1, window_bounds = array<i64: 1, 256, 4>}, {transform_indices = @transform_2, window_bounds = array<i64: 1, 256, 4>}, {transform_indices = @transform_3, window_bounds = array<i64: 1, 4, 4>}, {transform_indices = @transform_4, window_bounds = array<i64: 1, 4, 4>}, {transform_indices = @transform_5, window_bounds = array<i64: 1, 4, 1>}, {transform_indices = @transform_6, window_bounds = array<i64: 1, 1, 4>}, {transform_indices = @transform_7, window_bounds = array<i64: 1, 4, 4>}, {transform_indices = @transform_8, window_bounds = array<i64: 1, 1, 256, 4>}]} {
    %c0 = arith.constant 0 : index
    %c0_0 = arith.constant 0 : index
    %c0_1 = arith.constant 0 : index
    %0 = vector.load %arg6[%c0, %c0_0, %c0_1] : memref<1x4x4xf32, #tpu.memory_space<vmem>>, vector<1x4x4xf32>
    %1 = vector.shape_cast %0 : vector<1x4x4xf32> to vector<4x4xf32>
    %c0_2 = arith.constant 0 : index
    %c0_3 = arith.constant 0 : index
    %c0_4 = arith.constant 0 : index
    %2 = vector.load %arg3[%c0_2, %c0_3, %c0_4] : memref<1x4x256xf32, #tpu.memory_space<vmem>>, vector<1x4x256xf32>
    %3 = vector.shape_cast %2 : vector<1x4x256xf32> to vector<4x256xf32>
    %cst = arith.constant dense<0.000000e+00> : vector<4x256xf32>
    %4 = tpu.matmul %1, %3, %cst {dimension_numbers = #tpu.dot_dimension_numbers<[1], [0], [0], [1], [0, 0, 1, 1], [], []>} : vector<4x4xf32>, vector<4x256xf32>, vector<4x256xf32> -> vector<4x256xf32>
    %c0_5 = arith.constant 0 : index
    %c0_6 = arith.constant 0 : index
    %c0_7 = arith.constant 0 : index
    %5 = vector.load %arg8[%c0_5, %c0_6, %c0_7] : memref<1x4x1xf32, #tpu.memory_space<vmem>>, vector<1x4x1xf32>
    %6 = vector.shape_cast %5 : vector<1x4x1xf32> to vector<4x1xf32>
    %7 = vector.broadcast %6 : vector<4x1xf32> to vector<4x256xf32>
    %8 = arith.addf %4, %7 : vector<4x256xf32>
    %9 = arith.mulf %8, %8 : vector<4x256xf32>
    %cst_8 = arith.constant dense<0.000000e+00> : vector<256xf32>
    %10 = vector.multi_reduction <add>, %9, %cst_8 [0] : vector<4x256xf32> to vector<256xf32>
    %11 = vector.shape_cast %10 : vector<256xf32> to vector<1x256xf32>
    %c0_9 = arith.constant 0 : index
    %c0_10 = arith.constant 0 : index
    %c0_11 = arith.constant 0 : index
    %12 = vector.load %arg4[%c0_9, %c0_10, %c0_11] : memref<1x256x4xf32, #tpu.memory_space<vmem>>, vector<1x256x4xf32>
    %13 = vector.shape_cast %12 : vector<1x256x4xf32> to vector<256x4xf32>
    %c0_12 = arith.constant 0 : index
    %c0_13 = arith.constant 0 : index
    %c0_14 = arith.constant 0 : index
    %14 = vector.load %arg7[%c0_12, %c0_13, %c0_14] : memref<1x4x4xf32, #tpu.memory_space<vmem>>, vector<1x4x4xf32>
    %15 = vector.shape_cast %14 : vector<1x4x4xf32> to vector<4x4xf32>
    %cst_15 = arith.constant dense<0.000000e+00> : vector<256x4xf32>
    %16 = tpu.matmul %13, %15, %cst_15 {dimension_numbers = #tpu.dot_dimension_numbers<[1], [0], [0], [1], [0, 0, 1, 1], [], []>} : vector<256x4xf32>, vector<4x4xf32>, vector<256x4xf32> -> vector<256x4xf32>
    %c0_16 = arith.constant 0 : index
    %c0_17 = arith.constant 0 : index
    %c0_18 = arith.constant 0 : index
    %17 = vector.load %arg9[%c0_16, %c0_17, %c0_18] : memref<1x1x4xf32, #tpu.memory_space<vmem>>, vector<1x1x4xf32>
    %18 = vector.shape_cast %17 : vector<1x1x4xf32> to vector<1x4xf32>
    %19 = vector.broadcast %18 : vector<1x4xf32> to vector<256x4xf32>
    %20 = arith.addf %16, %19 : vector<256x4xf32>
    %cst_19 = arith.constant dense<0.000000e+00> : vector<256x256xf32>
    %21 = tpu.matmul %20, %8, %cst_19 {dimension_numbers = #tpu.dot_dimension_numbers<[1], [0], [0], [1], [0, 0, 1, 1], [], []>} : vector<256x4xf32>, vector<4x256xf32>, vector<256x256xf32> -> vector<256x256xf32>
    %cst_20 = arith.constant 2.000000e+00 : f32
    %22 = vector.broadcast %cst_20 : f32 to vector<256x256xf32>
    %23 = arith.mulf %22, %21 : vector<256x256xf32>
    %24 = vector.broadcast %11 : vector<1x256xf32> to vector<256x256xf32>
    %25 = arith.subf %24, %23 : vector<256x256xf32>
    %cst_21 = arith.constant -5.000000e-01 : f32
    %26 = vector.broadcast %cst_21 : f32 to vector<256x256xf32>
    %27 = arith.mulf %25, %26 : vector<256x256xf32>
    %cst_22 = arith.constant dense<0xFF800000> : vector<256xf32>
    %28 = vector.multi_reduction <maximumf>, %27, %cst_22 [1] : vector<256x256xf32> to vector<256xf32>
    %29 = vector.shape_cast %28 : vector<256xf32> to vector<256x1xf32>
    %30 = vector.broadcast %29 : vector<256x1xf32> to vector<256x256xf32>
    %31 = arith.subf %27, %30 : vector<256x256xf32>
    %32 = math.exp %31 : vector<256x256xf32>
    %cst_23 = arith.constant dense<0.000000e+00> : vector<256xf32>
    %33 = vector.multi_reduction <add>, %32, %cst_23 [1] : vector<256x256xf32> to vector<256xf32>
    %34 = vector.shape_cast %33 : vector<256xf32> to vector<256x1xf32>
    %c0_24 = arith.constant 0 : index
    %c0_25 = arith.constant 0 : index
    %c0_26 = arith.constant 0 : index
    %35 = vector.load %arg5[%c0_24, %c0_25, %c0_26] : memref<1x256x4xf32, #tpu.memory_space<vmem>>, vector<1x256x4xf32>
    %36 = vector.shape_cast %35 : vector<1x256x4xf32> to vector<256x4xf32>
    %cst_27 = arith.constant dense<0.000000e+00> : vector<256x4xf32>
    %37 = tpu.matmul %32, %36, %cst_27 {dimension_numbers = #tpu.dot_dimension_numbers<[1], [0], [0], [1], [0, 0, 1, 1], [], []>} : vector<256x256xf32>, vector<256x4xf32>, vector<256x4xf32> -> vector<256x4xf32>
    %38 = tpu.reciprocal %34 {approx = true} : vector<256x1xf32> -> vector<256x1xf32>
    %39 = vector.broadcast %38 : vector<256x1xf32> to vector<256x4xf32>
    %40 = arith.mulf %37, %39 : vector<256x4xf32>
    %c0_28 = arith.constant 0 : index
    %c0_29 = arith.constant 0 : index
    %c0_30 = arith.constant 0 : index
    %41 = vector.load %arg10[%c0_28, %c0_29, %c0_30] : memref<1x4x4xf32, #tpu.memory_space<vmem>>, vector<1x4x4xf32>
    %42 = vector.shape_cast %41 : vector<1x4x4xf32> to vector<4x4xf32>
    %cst_31 = arith.constant dense<0.000000e+00> : vector<256x4xf32>
    %43 = tpu.matmul %40, %42, %cst_31 {dimension_numbers = #tpu.dot_dimension_numbers<[1], [0], [0], [1], [0, 0, 1, 1], [], []>} : vector<256x4xf32>, vector<4x4xf32>, vector<256x4xf32> -> vector<256x4xf32>
    %c0_32 = arith.constant 0 : index
    %c0_33 = arith.constant 0 : index
    %c0_34 = arith.constant 0 : index
    %c0_35 = arith.constant 0 : index
    %44 = vector.load %arg11[%c0_32, %c0_33, %c0_34, %c0_35] : memref<1x1x256x4xf32, #tpu.memory_space<vmem>>, vector<1x1x256x4xf32>
    %45 = vector.shape_cast %44 : vector<1x1x256x4xf32> to vector<256x4xf32>
    %46 = vector.shape_cast %43 : vector<256x4xf32> to vector<1x1x256x4xf32>
    tpu.vector_store %arg11[%c0_32, %c0_33, %c0_34, %c0_35], %46 {strides = array<i32>} : memref<1x1x256x4xf32, #tpu.memory_space<vmem>>, vector<1x1x256x4xf32>,
    return
  }
  func.func @transform_0(%arg0: i32, %arg1: i32, %arg2: i32) -> (i32, i32, i32) {
    %c0_i32 = arith.constant 0 : i32
    %c0_i32_0 = arith.constant 0 : i32
    %c0_i32_1 = arith.constant 0 : i32
    return %arg0, %c0_i32, %c0_i32_0 : i32, i32, i32
  }
  func.func @transform_1(%arg0: i32, %arg1: i32, %arg2: i32) -> (i32, i32, i32) {
    %c0_i32 = arith.constant 0 : i32
    %c0_i32_0 = arith.constant 0 : i32
    return %arg0, %arg2, %c0_i32 : i32, i32, i32
  }
  func.func @transform_2(%arg0: i32, %arg1: i32, %arg2: i32) -> (i32, i32, i32) {
    %c0_i32 = arith.constant 0 : i32
    %c0_i32_0 = arith.constant 0 : i32
    %c0_i32_1 = arith.constant 0 : i32
    return %arg0, %c0_i32, %c0_i32_0 : i32, i32, i32
  }
  func.func @transform_3(%arg0: i32, %arg1: i32, %arg2: i32) -> (i32, i32, i32) {
    %c0_i32 = arith.constant 0 : i32
    %c0_i32_0 = arith.constant 0 : i32
    %c0_i32_1 = arith.constant 0 : i32
    return %arg1, %c0_i32, %c0_i32_0 : i32, i32, i32
  }
  func.func @transform_4(%arg0: i32, %arg1: i32, %arg2: i32) -> (i32, i32, i32) {
    %c0_i32 = arith.constant 0 : i32
    %c0_i32_0 = arith.constant 0 : i32
    %c0_i32_1 = arith.constant 0 : i32
    return %arg1, %c0_i32, %c0_i32_0 : i32, i32, i32
  }
  func.func @transform_5(%arg0: i32, %arg1: i32, %arg2: i32) -> (i32, i32, i32) {
    %c0_i32 = arith.constant 0 : i32
    %c0_i32_0 = arith.constant 0 : i32
    %c0_i32_1 = arith.constant 0 : i32
    return %arg1, %c0_i32, %c0_i32_0 : i32, i32, i32
  }
  func.func @transform_6(%arg0: i32, %arg1: i32, %arg2: i32) -> (i32, i32, i32) {
    %c0_i32 = arith.constant 0 : i32
    %c0_i32_0 = arith.constant 0 : i32
    %c0_i32_1 = arith.constant 0 : i32
    return %arg1, %c0_i32, %c0_i32_0 : i32, i32, i32
  }
  func.func @transform_7(%arg0: i32, %arg1: i32, %arg2: i32) -> (i32, i32, i32) {
    %c0_i32 = arith.constant 0 : i32
    %c0_i32_0 = arith.constant 0 : i32
    %c0_i32_1 = arith.constant 0 : i32
    return %arg1, %c0_i32, %c0_i32_0 : i32, i32, i32
  }
  func.func @transform_8(%arg0: i32, %arg1: i32, %arg2: i32) -> (i32, i32, i32, i32) {
    %c0_i32 = arith.constant 0 : i32
    %c0_i32_0 = arith.constant 0 : i32
    return %arg0, %arg1, %arg2, %c0_i32 : i32, i32, i32, i32
  }
}

module attributes {stable_mosaic.version = 11 : i64} {
  func.func @_out_residual_kernel(%arg0: i32, %arg1: memref<1x4x256xf32, #tpu.memory_space<vmem>>, %arg2: memref<4x4xf32, #tpu.memory_space<vmem>>, %arg3: memref<4x1xf32, #tpu.memory_space<vmem>>, %arg4: memref<1x4x256xf32, #tpu.memory_space<vmem>>, %arg5: memref<1x4x256xf32, #tpu.memory_space<vmem>>) attributes {dimension_semantics = [#tpu.dimension_semantics<parallel>], iteration_bounds = array<i64: 2>, scalar_prefetch = 0 : i64, scratch_operands = 0 : i64, tpu.core_type = #tpu.core_type<tc>, window_params = [{transform_indices = @transform_0, window_bounds = array<i64: 1, 4, 256>}, {pipeline_mode = #tpu.pipeline_mode<synchronous>, transform_indices = @transform_1, window_bounds = array<i64: 4, 4>}, {pipeline_mode = #tpu.pipeline_mode<synchronous>, transform_indices = @transform_2, window_bounds = array<i64: 4, 1>}, {transform_indices = @transform_3, window_bounds = array<i64: 1, 4, 256>}, {transform_indices = @transform_4, window_bounds = array<i64: 1, 4, 256>}]} {
    %c0 = arith.constant 0 : index
    %c0_0 = arith.constant 0 : index
    %0 = vector.load %arg2[%c0, %c0_0] : memref<4x4xf32, #tpu.memory_space<vmem>>, vector<4x4xf32>
    %c0_1 = arith.constant 0 : index
    %c0_2 = arith.constant 0 : index
    %c0_3 = arith.constant 0 : index
    %1 = vector.load %arg1[%c0_1, %c0_2, %c0_3] : memref<1x4x256xf32, #tpu.memory_space<vmem>>, vector<1x4x256xf32>
    %2 = vector.shape_cast %1 : vector<1x4x256xf32> to vector<4x256xf32>
    %cst = arith.constant dense<0.000000e+00> : vector<4x256xf32>
    %3 = tpu.matmul %0, %2, %cst {dimension_numbers = #tpu.dot_dimension_numbers<[1], [0], [0], [1], [0, 0, 1, 1], [], []>} : vector<4x4xf32>, vector<4x256xf32>, vector<4x256xf32> -> vector<4x256xf32>
    %c0_4 = arith.constant 0 : index
    %c0_5 = arith.constant 0 : index
    %4 = vector.load %arg3[%c0_4, %c0_5] : memref<4x1xf32, #tpu.memory_space<vmem>>, vector<4x1xf32>
    %5 = vector.broadcast %4 : vector<4x1xf32> to vector<4x256xf32>
    %6 = arith.addf %3, %5 : vector<4x256xf32>
    %c0_6 = arith.constant 0 : index
    %c0_7 = arith.constant 0 : index
    %c0_8 = arith.constant 0 : index
    %7 = vector.load %arg4[%c0_6, %c0_7, %c0_8] : memref<1x4x256xf32, #tpu.memory_space<vmem>>, vector<1x4x256xf32>
    %8 = vector.shape_cast %7 : vector<1x4x256xf32> to vector<4x256xf32>
    %9 = arith.addf %6, %8 : vector<4x256xf32>
    %c0_9 = arith.constant 0 : index
    %c0_10 = arith.constant 0 : index
    %c0_11 = arith.constant 0 : index
    %10 = vector.load %arg5[%c0_9, %c0_10, %c0_11] : memref<1x4x256xf32, #tpu.memory_space<vmem>>, vector<1x4x256xf32>
    %11 = vector.shape_cast %10 : vector<1x4x256xf32> to vector<4x256xf32>
    %12 = vector.shape_cast %9 : vector<4x256xf32> to vector<1x4x256xf32>
    tpu.vector_store %arg5[%c0_9, %c0_10, %c0_11], %12 {strides = array<i32>} : memref<1x4x256xf32, #tpu.memory_space<vmem>>, vector<1x4x256xf32>,
    return
  }
  func.func @transform_0(%arg0: i32) -> (i32, i32, i32) {
    %c0_i32 = arith.constant 0 : i32
    %c0_i32_0 = arith.constant 0 : i32
    %c0_i32_1 = arith.constant 0 : i32
    return %arg0, %c0_i32, %c0_i32_0 : i32, i32, i32
  }
  func.func @transform_1(%arg0: i32) -> (i32, i32) {
    %c0_i32 = arith.constant 0 : i32
    %c0_i32_0 = arith.constant 0 : i32
    %c0_i32_1 = arith.constant 0 : i32
    return %c0_i32, %c0_i32_0 : i32, i32
  }
  func.func @transform_2(%arg0: i32) -> (i32, i32) {
    %c0_i32 = arith.constant 0 : i32
    %c0_i32_0 = arith.constant 0 : i32
    %c0_i32_1 = arith.constant 0 : i32
    return %c0_i32, %c0_i32_0 : i32, i32
  }
  func.func @transform_3(%arg0: i32) -> (i32, i32, i32) {
    %c0_i32 = arith.constant 0 : i32
    %c0_i32_0 = arith.constant 0 : i32
    %c0_i32_1 = arith.constant 0 : i32
    return %arg0, %c0_i32, %c0_i32_0 : i32, i32, i32
  }
  func.func @transform_4(%arg0: i32) -> (i32, i32, i32) {
    %c0_i32 = arith.constant 0 : i32
    %c0_i32_0 = arith.constant 0 : i32
    %c0_i32_1 = arith.constant 0 : i32
    return %arg0, %c0_i32, %c0_i32_0 : i32, i32, i32
  }
}

</mosaic_0001>

<llo_original>
// kernel: l2_self_attn_forward.4
$region0: #{l2_self_attn_forward.4}
  #allocation0 [shape = 'u32[]', space=smem, size = 0x4, offset = 0x4, fixed_abs, tag = 'smem constant byte address 0x4 - core index']
  #allocation1 [shape = 'u32[144,128]{1,0:T(1,128)}', space=vmem, size = 0x12000, scoped, tag = 'internal scratch']
  %s0 = inlined_call_operand.vmem [shape: f32[2,1,4,256], index: 0, kind: input, shape index: {}]
  %s1 = inlined_call_operand.vmem [shape: f32[1,4,4], index: 1, kind: input, shape index: {}]
  %s2 = inlined_call_operand.vmem [shape: f32[1,4,1], index: 2, kind: input, shape index: {}]
  %s3 = inlined_call_operand.vmem [shape: f32[2,1,4,256], index: 3, kind: output, shape index: {}]
  %s4 = sld [smem:[#allocation0]]
  $region45: #{l2_self_attn_forward.4} parent=0
    _
  %s6 = ssub.s32 1, %s4
  %s7 = scalar_select 0, %s6, %s4
  loop: start=0, step=1, limit=4
  $region2: #{l2_self_attn_forward.4} parent=0 // loop_pre_header
    _
  $region3: #{l2_self_attn_forward.4} parent=0 // loop_header
    %s9 = sphi 0, %s13
    %p10 = scmp.ge.s32.totalorder %s9, 4
    %s16 = sphi 0, %s28
    %s17 = sphi 0, %s24
    %s18 = sphi 0, %s16
    %s19 = sphi 0, %s17
    %s20 = sphi 0, %s18
    %s21 = sphi 0, %s19
    %s33 = sphi 0, %s35
    %s36 = sphi 0, %s33
    %s37 = sphi 0, %s36
    %s53 = sphi 0, %s37
    %s59 = sphi 0, %s61
    %s62 = sphi 0, %s59
    %s63 = sphi 0, %s62
    %s79 = sphi 0, %s63
    %s85 = sphi 0, %s87
    %s88 = sphi 0, %s85
    %s89 = sphi 0, %s88
    %s105 = sphi 0, %s89
    %s113 = sphi 0, %s115
    %s116 = sphi 0, %s113
    %s117 = sphi 0, %s116
    %s133 = sphi 0, %s117
  $region4: #{l2_self_attn_forward.4} parent=0 // loop_header_branch
    %12 = sbr.rel (%p10) target = $region8
  $region5: #{l2_self_attn_forward.4} parent=0 // loop_body
    %s14 = ssub.s32 %s9, 1
    %s15 = ssub.s32 %s9, 2
    %s22 = sadd.s32 1, %s17
    %p23 = scmp.ge.s32.totalorder %s22, 1
    %s24 = scalar_select %p23, 0, %s22
    %s25 = sadd.s32 1, %s16
    %s26 = scalar_select %p23, %s25, %s16
    %p27 = scmp.ge.s32.totalorder %s26, 2
    %s28 = scalar_select %p27, 0, %s26
    %s29 = ssub.s32 %s16, %s28
    %s30 = ssub.s32 %s17, %s24
    %s31 = sor.u32 %s29, %s30
    %p32 = scmp.eq.s32.totalorder %s31, 0
    %s34 = sadd.s32 %s33, 1
    %s35 = scalar_select %p32, %s33, %s34
    %p38 = pneg %p32
    %p39 = scmp.eq.s32.totalorder %s9, 1
    %p40 = por %p38, %p39
    %p41 = scmp.ne.s32.totalorder %s33, %s36
    %p42 = scmp.eq.s32.totalorder %s9, 0
    %p43 = por %p41, %p42
    %p44 = scmp.ne.s32.totalorder %s33, %s36
    %p45 = scmp.eq.s32.totalorder %s14, 1
    %p46 = por %p44, %p45
    %p47 = scmp.ne.s32.totalorder %s36, %s37
    %p48 = scmp.eq.s32.totalorder %s14, 0
    %p49 = por %p47, %p48
    %p50 = scmp.ne.s32.totalorder %s36, %s37
    %p51 = scmp.eq.s32.totalorder %s15, 1
    %p52 = por %p50, %p51
    %p54 = scmp.ne.s32.totalorder %s37, %s53
    %p55 = scmp.eq.s32.totalorder %s15, 0
    %p56 = por %p54, %p55
    %s57 = ssub.s32 %s17, %s24
    %p58 = scmp.eq.s32.totalorder %s57, 0
    %s60 = sadd.s32 %s59, 1
    %s61 = scalar_select %p58, %s59, %s60
    %p64 = pneg %p58
    %p65 = scmp.eq.s32.totalorder %s9, 1
    %p66 = por %p64, %p65
    %p67 = scmp.ne.s32.totalorder %s59, %s62
    %p68 = scmp.eq.s32.totalorder %s9, 0
    %p69 = por %p67, %p68
    %p70 = scmp.ne.s32.totalorder %s59, %s62
    %p71 = scmp.eq.s32.totalorder %s14, 1
    %p72 = por %p70, %p71
    %p73 = scmp.ne.s32.totalorder %s62, %s63
    %p74 = scmp.eq.s32.totalorder %s14, 0
    %p75 = por %p73, %p74
    %p76 = scmp.ne.s32.totalorder %s62, %s63
    %p77 = scmp.eq.s32.totalorder %s15, 1
    %p78 = por %p76, %p77
    %p80 = scmp.ne.s32.totalorder %s63, %s79
    %p81 = scmp.eq.s32.totalorder %s15, 0
    %p82 = por %p80, %p81
    %s83 = ssub.s32 %s17, %s24
    %p84 = scmp.eq.s32.totalorder %s83, 0
    %s86 = sadd.s32 %s85, 1
    %s87 = scalar_select %p84, %s85, %s86
    %p90 = pneg %p84
    %p91 = scmp.eq.s32.totalorder %s9, 1
    %p92 = por %p90, %p91
    %p93 = scmp.ne.s32.totalorder %s85, %s88
    %p94 = scmp.eq.s32.totalorder %s9, 0
    %p95 = por %p93, %p94
    %p96 = scmp.ne.s32.totalorder %s85, %s88
    %p97 = scmp.eq.s32.totalorder %s14, 1
    %p98 = por %p96, %p97
    %p99 = scmp.ne.s32.totalorder %s88, %s89
    %p100 = scmp.eq.s32.totalorder %s14, 0
    %p101 = por %p99, %p100
    %p102 = scmp.ne.s32.totalorder %s88, %s89
    %p103 = scmp.eq.s32.totalorder %s15, 1
    %p104 = por %p102, %p103
    %p106 = scmp.ne.s32.totalorder %s89, %s105
    %p107 = scmp.eq.s32.totalorder %s15, 0
    %p108 = por %p106, %p107
    %s109 = ssub.s32 %s16, %s28
    %s110 = ssub.s32 %s17, %s24
    %s111 = sor.u32 %s109, %s110
    %p112 = scmp.eq.s32.totalorder %s111, 0
    %s114 = sadd.s32 %s113, 1
    %s115 = scalar_select %p112, %s113, %s114
    %p118 = pneg %p112
    %p119 = scmp.eq.s32.totalorder %s9, 1
    %p120 = por %p118, %p119
    %p121 = scmp.ne.s32.totalorder %s113, %s116
    %p122 = scmp.eq.s32.totalorder %s9, 0
    %p123 = por %p121, %p122
    %p124 = scmp.ne.s32.totalorder %s113, %s116
    %p125 = scmp.eq.s32.totalorder %s14, 1
    %p126 = por %p124, %p125
    %p127 = scmp.ne.s32.totalorder %s116, %s117
    %p128 = scmp.eq.s32.totalorder %s14, 0
    %p129 = por %p127, %p128
    %p130 = scmp.ne.s32.totalorder %s116, %s117
    %p131 = scmp.eq.s32.totalorder %s15, 1
    %p132 = por %p130, %p131
    %p134 = scmp.ne.s32.totalorder %s117, %s133
    %p135 = scmp.eq.s32.totalorder %s15, 0
    %p136 = por %p134, %p135
    %p137 = scmp.le.s32.totalorder 1, %s9
    %p138 = scmp.lt.s32.totalorder %s9, 3
    %p139 = pnand %p137, %p138
    %p140 = pneg %p139
    // Predicated region
    $region9: #{l2_self_attn_forward.4} parent=5 // pred_check
      _
    $region10: #{l2_self_attn_forward.4} parent=5 // pred_check_branch
      %142 = sbr.rel (%p139) target = $region12
    $region11: #{l2_self_attn_forward.4} parent=5 // pred_region
      %s143 = ssub.s32 %s9, 1
      // Predicated region
      $region13: #{l2_self_attn_forward.4} parent=11 // pred_check
        %p144 = pneg %p75
      $region14: #{l2_self_attn_forward.4} parent=11 // pred_check_branch
        %146 = sbr.rel (%p144) target = $region16
      $region15: #{l2_self_attn_forward.4} parent=11 // pred_region
        %p147 = scmp.lt.s32.totalorder %s19, 0
        %s148 = scalar_select %p147, %s19, 0
        %s149 = smul.addr %s148, 4
        %s150 = scalar_lea.vmem %s1, %s149
      $region16: #{l2_self_attn_forward.4} parent=11 // pred_fallthru
        _
      // Predicated region
      $region17: #{l2_self_attn_forward.4} parent=11 // pred_check
        %p151 = pneg %p101
      $region18: #{l2_self_attn_forward.4} parent=11 // pred_check_branch
        %153 = sbr.rel (%p151) target = $region20
      $region19: #{l2_self_attn_forward.4} parent=11 // pred_region
        %p154 = scmp.lt.s32.totalorder %s19, 0
        %s155 = scalar_select %p154, %s19, 0
        %s156 = smul.addr %s155, 4
        %s157 = scalar_lea.vmem %s2, %s156
      $region20: #{l2_self_attn_forward.4} parent=11 // pred_fallthru
        _
    $region12: #{l2_self_attn_forward.4} parent=5 // pred_fallthru
      _
    %p158 = scmp.lt.s32.totalorder %s9, 2
    // Predicated region
    $region21: #{l2_self_attn_forward.4} parent=5 // pred_check
      %p159 = pneg %p158
    $region22: #{l2_self_attn_forward.4} parent=5 // pred_check_branch
      %161 = sbr.rel (%p159) target = $region24
    $region23: #{l2_self_attn_forward.4} parent=5 // pred_region
      // Predicated region
      $region25: #{l2_self_attn_forward.4} parent=23 // pred_check
        %p162 = pneg %p43
      $region26: #{l2_self_attn_forward.4} parent=23 // pred_check_branch
        %164 = sbr.rel (%p162) target = $region28
      $region27: #{l2_self_attn_forward.4} parent=23 // pred_region
        %p165 = scmp.lt.s32.totalorder %s16, 1
        %s166 = scalar_select %p165, %s16, 1
        %p167 = scmp.lt.s32.totalorder %s17, 0
        %s168 = scalar_select %p167, %s17, 0
        %s169 = smul.addr %s168, 2
        %s170 = smul.addr %s166, 2
        %s171 = sadd.s32 %s169, %s170
        %s172 = smul.addr %s171, 4
        %s173 = scalar_lea.vmem %s0, %s172
      $region28: #{l2_self_attn_forward.4} parent=23 // pred_fallthru
        _
    $region24: #{l2_self_attn_forward.4} parent=5 // pred_fallthru
      _
    %p174 = scmp.le.s32.totalorder 1, %s9
    %p175 = scmp.lt.s32.totalorder %s9, 3
    %p176 = pnand %p174, %p175
    %p177 = pneg %p176
    // Predicated region
    $region29: #{l2_self_attn_forward.4} parent=5 // pred_check
      _
    $region30: #{l2_self_attn_forward.4} parent=5 // pred_check_branch
      %179 = sbr.rel (%p176) target = $region32
    $region31: #{l2_self_attn_forward.4} parent=5 // pred_region
      %s180 = ssub.s32 %s9, 1
      %p181 = scmp.lt.s32.totalorder %s18, 1
      %s182 = scalar_select %p181, %s18, 1
      %p183 = scmp.lt.s32.totalorder %s19, 0
      %s184 = scalar_select %p183, %s19, 0
      %s185 = smul.addr %s184, 2
      %s186 = smul.addr %s182, 2
      %s187 = sadd.s32 %s185, %s186
      %s188 = smul.addr %s187, 4
      %s189 = scalar_lea.vmem %s0, %s188
      %p190 = pneg %p49
      %p191 = pneg %p46
      %p192 = scmp.lt.s32.totalorder %s19, 0
      %s193 = scalar_select %p192, %s19, 0
      %s194 = smul.addr %s193, 4
      %s195 = scalar_lea.vmem %s1, %s194
      %p196 = pneg %p75
      %p197 = pneg %p72
      %p198 = scmp.lt.s32.totalorder %s19, 0
      %s199 = scalar_select %p198, %s19, 0
      %s200 = smul.addr %s199, 4
      %s201 = scalar_lea.vmem %s2, %s200
      %p202 = pneg %p101
      %p203 = pneg %p98
      %p204 = pneg %p129
      %p205 = pneg %p126
      %p206 = scmp.lt.s32.totalorder %s18, 1
      %s207 = scalar_select %p206, %s18, 1
      %p208 = scmp.lt.s32.totalorder %s19, 0
      %s209 = scalar_select %p208, %s19, 0
      %s210 = smul.addr %s209, 2
      %s211 = smul.addr %s207, 2
      %s212 = sadd.s32 %s210, %s211
      %s213 = smul.addr %s212, 4
      %s214 = scalar_lea.vmem %s3, %s213
      %p215 = scmp.lt.s32.totalorder %s18, 1
      %s216 = scalar_select %p215, %s18, 1
      %p217 = scmp.lt.s32.totalorder %s19, 0
      %s218 = scalar_select %p217, %s19, 0
      %s219 = smul.addr %s218, 2
      %s220 = smul.addr %s216, 2
      %s221 = sadd.s32 %s219, %s220
      %s222 = smul.addr %s221, 4
      %s223 = scalar_lea.vmem %s0, %s222
      %p224 = scmp.lt.s32.totalorder %s19, 0
      %s225 = scalar_select %p224, %s19, 0
      %s226 = smul.addr %s225, 4
      %s227 = scalar_lea.vmem %s1, %s226
      %p228 = scmp.lt.s32.totalorder %s19, 0
      %s229 = scalar_select %p228, %s19, 0
      %s230 = smul.addr %s229, 4
      %s231 = scalar_lea.vmem %s2, %s230
      %p232 = scmp.lt.s32.totalorder %s18, 1
      %s233 = scalar_select %p232, %s18, 1
      %p234 = scmp.lt.s32.totalorder %s19, 0
      %s235 = scalar_select %p234, %s19, 0
      %s236 = smul.addr %s235, 2
      %s237 = smul.addr %s233, 2
      %s238 = sadd.s32 %s236, %s237
      %s239 = smul.addr %s238, 4
      %s240 = scalar_lea.vmem %s3, %s239
      %v241 = vld [vmem:[%s227] sm:$0xf]
      %v242 = vld [vmem:[%s223] sm:$0xff]
      %v243 = vld [vmem:[%s231] sm:$0xf]
      %245 = vset.pattern.permute.xlu0 0
      %246 = vperm.xlu0 %245, %v243
      %v247 = vpop.permute.xlu0 %246
      %v250 = vcombine.high %v242, %v242
      %vm251 = vcmask 31744
      %v253 = vsel %vm251, %v241, 0
      %vm255 = vcmask 1043456
      %v256 = vsel %vm255, %v242, 0
      %v258 = vsel %vm255, %v250, 0
      %260 = vmatprep.subr.mxu0 0.0
      %261 = vmatpush1.msra.mxu0 0.0
      %262 = vmatprep.subr.mxu0 0.0
      %263 = vmatpush1.msra.mxu0 0.0
      %264 = vmatprep.subr.mxu0 0.0
      %265 = vmatpush1.msra.mxu0 0.0
      %266 = vmatprep.subr.mxu0 0.0
      %267 = vmatpush1.msra.mxu0 0.0
      %268 = vmatprep.subr.mxu0 0.0
      %269 = vmatpush1.msra.mxu0 0.0
      %270 = vmatprep.subr.mxu0 0.0
      %271 = vmatpush1.msra.mxu0 0.0
      %272 = vmatprep.subr.mxu0 0.0
      %273 = vmatpush1.msra.mxu0 0.0
      %274 = vmatprep.subr.mxu0 0.0
      %275 = vmatpush1.msra.mxu0 0.0
      %276 = vmatprep.subr.mxu0 0.0
      %277 = vmatpush1.msra.mxu0 0.0
      %278 = vmatprep.subr.mxu0 0.0
      %279 = vmatpush1.msra.mxu0 0.0
      %280 = vmatprep.subr.mxu0 0.0
      %281 = vmatpush1.msra.mxu0 0.0
      %282 = vmatprep.subr.mxu0 0.0
      %283 = vmatpush1.msra.mxu0 0.0
      %284 = vmatprep.subr.mxu0 0.0
      %285 = vmatpush1.msra.mxu0 0.0
      %286 = vmatprep.subr.mxu0 0.0
      %287 = vmatpush1.msra.mxu0 0.0
      %288 = vmatprep.subr.mxu0 0.0
      %289 = vmatpush1.msra.mxu0 0.0
      %290 = vmatprep.subr.mxu0 %v258
      %291 = vmatpush1.msra.mxu0 %v256
      %292 = vmatprep.subr.mxu0 0.0
      %293 = vmatpush2.msra.mxu0 0.0
      %294 = vmatprep.subr.mxu0 0.0
      %295 = vmatpush2.msra.mxu0 0.0
      %296 = vmatprep.subr.mxu0 0.0
      %297 = vmatpush2.msra.mxu0 0.0
      %298 = vmatprep.subr.mxu0 0.0
      %299 = vmatpush2.msra.mxu0 0.0
      %300 = vmatprep.subr.mxu0 0.0
      %301 = vmatpush2.msra.mxu0 0.0
      %302 = vmatprep.subr.mxu0 0.0
      %303 = vmatpush2.msra.mxu0 0.0
      %304 = vmatprep.subr.mxu0 0.0
      %305 = vmatpush2.msra.mxu0 0.0
      %306 = vmatprep.subr.mxu0 0.0
      %307 = vmatpush2.msra.mxu0 0.0
      %308 = vmatprep.subr.mxu0 0.0
      %309 = vmatpush2.msra.mxu0 0.0
      %310 = vmatprep.subr.mxu0 0.0
      %311 = vmatpush2.msra.mxu0 0.0
      %312 = vmatprep.subr.mxu0 0.0
      %313 = vmatpush2.msra.mxu0 0.0
      %314 = vmatprep.subr.mxu0 0.0
      %315 = vmatpush2.msra.mxu0 0.0
      %316 = vmatprep.subr.mxu0 0.0
      %317 = vmatpush2.msra.mxu0 0.0
      %318 = vmatprep.subr.mxu0 0.0
      %319 = vmatpush2.msra.mxu0 0.0
      %320 = vmatprep.subr.mxu0 0.0
      %321 = vmatpush2.msra.mxu0 0.0
      %322 = vmatprep.subr.mxu0 0.0
      %323 = vmatpush2.msra.mxu0 0.0
      %324 = vmatprep.mubr.f32.mxu0 0.0
      %325 = vmatmul.mubr.f32.gmra.mxu0 %v253
      %v326 = vpop.f32.mrf.mxu0
      %v327 = vadd.f32 %v247, %v326
      %v328 = vpop.f32.mrf.mxu0
      %v329 = vadd.f32 %v247, %v328
      %330 = vdwg.mxu0
      %v333 = vcombine.low %v327, %v329
      %335 = vst [vmem:[%s240] sm:$0xff] %v333
      %p336 = scmp.lt.s32.totalorder %s18, 1
      %s337 = scalar_select %p336, %s18, 1
      %p338 = scmp.lt.s32.totalorder %s19, 0
      %s339 = scalar_select %p338, %s19, 0
      %s340 = smul.addr %s339, 2
      %s341 = smul.addr %s337, 2
      %s342 = sadd.s32 %s340, %s341
      %s343 = smul.addr %s342, 4
      %s344 = scalar_lea.vmem %s3, %s343
      // Predicated region
      $region33: #{l2_self_attn_forward.4} parent=31 // pred_check
        %p345 = pneg %p126
      $region34: #{l2_self_attn_forward.4} parent=31 // pred_check_branch
        %347 = sbr.rel (%p345) target = $region36
      $region35: #{l2_self_attn_forward.4} parent=31 // pred_region
        _
      $region36: #{l2_self_attn_forward.4} parent=31 // pred_fallthru
        _
    $region32: #{l2_self_attn_forward.4} parent=5 // pred_fallthru
      _
    %p348 = scmp.le.s32.totalorder 2, %s9
    // Predicated region
    $region37: #{l2_self_attn_forward.4} parent=5 // pred_check
      %p349 = pneg %p348
    $region38: #{l2_self_attn_forward.4} parent=5 // pred_check_branch
      %351 = sbr.rel (%p349) target = $region40
    $region39: #{l2_self_attn_forward.4} parent=5 // pred_region
      %s352 = ssub.s32 %s9, 2
      // Predicated region
      $region41: #{l2_self_attn_forward.4} parent=39 // pred_check
        %p353 = pneg %p132
      $region42: #{l2_self_attn_forward.4} parent=39 // pred_check_branch
        %355 = sbr.rel (%p353) target = $region44
      $region43: #{l2_self_attn_forward.4} parent=39 // pred_region
        %p356 = scmp.lt.s32.totalorder %s20, 1
        %s357 = scalar_select %p356, %s20, 1
        %p358 = scmp.lt.s32.totalorder %s21, 0
        %s359 = scalar_select %p358, %s21, 0
        %s360 = smul.addr %s359, 2
        %s361 = smul.addr %s357, 2
        %s362 = sadd.s32 %s360, %s361
        %s363 = smul.addr %s362, 4
        %s364 = scalar_lea.vmem %s3, %s363
      $region44: #{l2_self_attn_forward.4} parent=39 // pred_fallthru
        _
    $region40: #{l2_self_attn_forward.4} parent=5 // pred_fallthru
      _
  $region6: #{l2_self_attn_forward.4} parent=0 // loop_footer
    %s13 = sadd.s32 1, %s9
  $region7: #{l2_self_attn_forward.4} parent=0 // loop_footer_branch
    %8 = sbr.rel target = $region3
  $region8: #{l2_self_attn_forward.4} parent=0 // loop_exit
    _

// kernel: l2_self_attn_forward.5
$region0: #{l2_self_attn_forward.5}
  #allocation0 [shape = 'u32[]', space=smem, size = 0x4, offset = 0x4, fixed_abs, tag = 'smem constant byte address 0x4 - core index']
  #allocation1 [shape = 'u32[144,128]{1,0:T(1,128)}', space=vmem, size = 0x12000, scoped, tag = 'internal scratch']
  %s0 = inlined_call_operand.vmem [shape: f32[2,4,256], index: 0, kind: input, shape index: {}]
  %s1 = inlined_call_operand.vmem [shape: f32[4,4], index: 1, kind: input, shape index: {}]
  %s2 = inlined_call_operand.vmem [shape: f32[4,1], index: 2, kind: input, shape index: {}]
  %s3 = inlined_call_operand.vmem [shape: f32[2,4,256], index: 3, kind: input, shape index: {}]
  %s4 = inlined_call_operand.vmem [shape: f32[2,4,256], index: 4, kind: output, shape index: {}]
  %s5 = sld [smem:[#allocation0]]
  $region49: #{l2_self_attn_forward.5} parent=0
    _
  %s7 = ssub.s32 1, %s5
  %s8 = scalar_select 0, %s7, %s5
  loop: start=0, step=1, limit=4
  $region2: #{l2_self_attn_forward.5} parent=0 // loop_pre_header
    _
  $region3: #{l2_self_attn_forward.5} parent=0 // loop_header
    %s10 = sphi 0, %s14
    %p11 = scmp.ge.s32.totalorder %s10, 4
    %s20 = sphi 0, %s22
    %s23 = sphi 0, %s20
    %s24 = sphi 0, %s23
    %s40 = sphi 0, %s24
    %s44 = sphi 0, %s44
    %s46 = sphi 0, %s44
    %s47 = sphi 0, %s46
    %s61 = sphi 0, %s47
    %s65 = sphi 0, %s65
    %s67 = sphi 0, %s65
    %s68 = sphi 0, %s67
    %s82 = sphi 0, %s68
    %s88 = sphi 0, %s90
    %s91 = sphi 0, %s88
    %s92 = sphi 0, %s91
    %s108 = sphi 0, %s92
    %s114 = sphi 0, %s116
    %s117 = sphi 0, %s114
    %s118 = sphi 0, %s117
    %s134 = sphi 0, %s118
  $region4: #{l2_self_attn_forward.5} parent=0 // loop_header_branch
    %13 = sbr.rel (%p11) target = $region8
  $region5: #{l2_self_attn_forward.5} parent=0 // loop_body
    %s15 = ssub.s32 %s10, 1
    %s16 = ssub.s32 %s10, 2
    %s17 = sadd.s32 %s10, 1
    %s18 = ssub.s32 %s10, %s17
    %p19 = scmp.eq.s32.totalorder %s18, 0
    %s21 = sadd.s32 %s20, 1
    %s22 = scalar_select %p19, %s20, %s21
    %p25 = pneg %p19
    %p26 = scmp.eq.s32.totalorder %s10, 1
    %p27 = por %p25, %p26
    %p28 = scmp.ne.s32.totalorder %s20, %s23
    %p29 = scmp.eq.s32.totalorder %s10, 0
    %p30 = por %p28, %p29
    %p31 = scmp.ne.s32.totalorder %s20, %s23
    %p32 = scmp.eq.s32.totalorder %s15, 1
    %p33 = por %p31, %p32
    %p34 = scmp.ne.s32.totalorder %s23, %s24
    %p35 = scmp.eq.s32.totalorder %s15, 0
    %p36 = por %p34, %p35
    %p37 = scmp.ne.s32.totalorder %s23, %s24
    %p38 = scmp.eq.s32.totalorder %s16, 1
    %p39 = por %p37, %p38
    %p41 = scmp.ne.s32.totalorder %s24, %s40
    %p42 = scmp.eq.s32.totalorder %s16, 0
    %p43 = por %p41, %p42
    %s45 = sadd.s32 %s44, 1
    %p48 = scmp.eq.s32.totalorder %s10, 1
    %p49 = scmp.ne.s32.totalorder %s44, %s46
    %p50 = scmp.eq.s32.totalorder %s10, 0
    %p51 = por %p49, %p50
    %p52 = scmp.ne.s32.totalorder %s44, %s46
    %p53 = scmp.eq.s32.totalorder %s15, 1
    %p54 = por %p52, %p53
    %p55 = scmp.ne.s32.totalorder %s46, %s47
    %p56 = scmp.eq.s32.totalorder %s15, 0
    %p57 = por %p55, %p56
    %p58 = scmp.ne.s32.totalorder %s46, %s47
    %p59 = scmp.eq.s32.totalorder %s16, 1
    %p60 = por %p58, %p59
    %p62 = scmp.ne.s32.totalorder %s47, %s61
    %p63 = scmp.eq.s32.totalorder %s16, 0
    %p64 = por %p62, %p63
    %s66 = sadd.s32 %s65, 1
    %p69 = scmp.eq.s32.totalorder %s10, 1
    %p70 = scmp.ne.s32.totalorder %s65, %s67
    %p71 = scmp.eq.s32.totalorder %s10, 0
    %p72 = por %p70, %p71
    %p73 = scmp.ne.s32.totalorder %s65, %s67
    %p74 = scmp.eq.s32.totalorder %s15, 1
    %p75 = por %p73, %p74
    %p76 = scmp.ne.s32.totalorder %s67, %s68
    %p77 = scmp.eq.s32.totalorder %s15, 0
    %p78 = por %p76, %p77
    %p79 = scmp.ne.s32.totalorder %s67, %s68
    %p80 = scmp.eq.s32.totalorder %s16, 1
    %p81 = por %p79, %p80
    %p83 = scmp.ne.s32.totalorder %s68, %s82
    %p84 = scmp.eq.s32.totalorder %s16, 0
    %p85 = por %p83, %p84
    %s86 = ssub.s32 %s10, %s17
    %p87 = scmp.eq.s32.totalorder %s86, 0
    %s89 = sadd.s32 %s88, 1
    %s90 = scalar_select %p87, %s88, %s89
    %p93 = pneg %p87
    %p94 = scmp.eq.s32.totalorder %s10, 1
    %p95 = por %p93, %p94
    %p96 = scmp.ne.s32.totalorder %s88, %s91
    %p97 = scmp.eq.s32.totalorder %s10, 0
    %p98 = por %p96, %p97
    %p99 = scmp.ne.s32.totalorder %s88, %s91
    %p100 = scmp.eq.s32.totalorder %s15, 1
    %p101 = por %p99, %p100
    %p102 = scmp.ne.s32.totalorder %s91, %s92
    %p103 = scmp.eq.s32.totalorder %s15, 0
    %p104 = por %p102, %p103
    %p105 = scmp.ne.s32.totalorder %s91, %s92
    %p106 = scmp.eq.s32.totalorder %s16, 1
    %p107 = por %p105, %p106
    %p109 = scmp.ne.s32.totalorder %s92, %s108
    %p110 = scmp.eq.s32.totalorder %s16, 0
    %p111 = por %p109, %p110
    %s112 = ssub.s32 %s10, %s17
    %p113 = scmp.eq.s32.totalorder %s112, 0
    %s115 = sadd.s32 %s114, 1
    %s116 = scalar_select %p113, %s114, %s115
    %p119 = pneg %p113
    %p120 = scmp.eq.s32.totalorder %s10, 1
    %p121 = por %p119, %p120
    %p122 = scmp.ne.s32.totalorder %s114, %s117
    %p123 = scmp.eq.s32.totalorder %s10, 0
    %p124 = por %p122, %p123
    %p125 = scmp.ne.s32.totalorder %s114, %s117
    %p126 = scmp.eq.s32.totalorder %s15, 1
    %p127 = por %p125, %p126
    %p128 = scmp.ne.s32.totalorder %s117, %s118
    %p129 = scmp.eq.s32.totalorder %s15, 0
    %p130 = por %p128, %p129
    %p131 = scmp.ne.s32.totalorder %s117, %s118
    %p132 = scmp.eq.s32.totalorder %s16, 1
    %p133 = por %p131, %p132
    %p135 = scmp.ne.s32.totalorder %s118, %s134
    %p136 = scmp.eq.s32.totalorder %s16, 0
    %p137 = por %p135, %p136
    %p138 = scmp.le.s32.totalorder 1, %s10
    %p139 = scmp.lt.s32.totalorder %s10, 3
    %p140 = pnand %p138, %p139
    %p141 = pneg %p140
    // Predicated region
    $region9: #{l2_self_attn_forward.5} parent=5 // pred_check
      _
    $region10: #{l2_self_attn_forward.5} parent=5 // pred_check_branch
      %143 = sbr.rel (%p140) target = $region12
    $region11: #{l2_self_attn_forward.5} parent=5 // pred_region
      %s144 = ssub.s32 %s10, 1
      // Predicated region
      $region13: #{l2_self_attn_forward.5} parent=11 // pred_check
        %p145 = pneg %p57
      $region14: #{l2_self_attn_forward.5} parent=11 // pred_check_branch
        %147 = sbr.rel (%p145) target = $region16
      $region15: #{l2_self_attn_forward.5} parent=11 // pred_region
        _
      $region16: #{l2_self_attn_forward.5} parent=11 // pred_fallthru
        _
      // Predicated region
      $region17: #{l2_self_attn_forward.5} parent=11 // pred_check
        %p148 = pneg %p78
      $region18: #{l2_self_attn_forward.5} parent=11 // pred_check_branch
        %150 = sbr.rel (%p148) target = $region20
      $region19: #{l2_self_attn_forward.5} parent=11 // pred_region
        _
      $region20: #{l2_self_attn_forward.5} parent=11 // pred_fallthru
        _
    $region12: #{l2_self_attn_forward.5} parent=5 // pred_fallthru
      _
    %p151 = scmp.lt.s32.totalorder %s10, 2
    // Predicated region
    $region21: #{l2_self_attn_forward.5} parent=5 // pred_check
      %p152 = pneg %p151
    $region22: #{l2_self_attn_forward.5} parent=5 // pred_check_branch
      %154 = sbr.rel (%p152) target = $region24
    $region23: #{l2_self_attn_forward.5} parent=5 // pred_region
      // Predicated region
      $region25: #{l2_self_attn_forward.5} parent=23 // pred_check
        %p155 = pneg %p30
      $region26: #{l2_self_attn_forward.5} parent=23 // pred_check_branch
        %157 = sbr.rel (%p155) target = $region28
      $region27: #{l2_self_attn_forward.5} parent=23 // pred_region
        %p158 = scmp.lt.s32.totalorder %s10, 1
        %s159 = scalar_select %p158, %s10, 1
        %s160 = smul.addr %s159, 2
        %s161 = smul.addr %s160, 4
        %s162 = scalar_lea.vmem %s0, %s161
      $region28: #{l2_self_attn_forward.5} parent=23 // pred_fallthru
        _
      // Predicated region
      $region29: #{l2_self_attn_forward.5} parent=23 // pred_check
        %p163 = pneg %p98
      $region30: #{l2_self_attn_forward.5} parent=23 // pred_check_branch
        %165 = sbr.rel (%p163) target = $region32
      $region31: #{l2_self_attn_forward.5} parent=23 // pred_region
        %p166 = scmp.lt.s32.totalorder %s10, 1
        %s167 = scalar_select %p166, %s10, 1
        %s168 = smul.addr %s167, 2
        %s169 = smul.addr %s168, 4
        %s170 = scalar_lea.vmem %s3, %s169
      $region32: #{l2_self_attn_forward.5} parent=23 // pred_fallthru
        _
    $region24: #{l2_self_attn_forward.5} parent=5 // pred_fallthru
      _
    %p171 = scmp.le.s32.totalorder 1, %s10
    %p172 = scmp.lt.s32.totalorder %s10, 3
    %p173 = pnand %p171, %p172
    %p174 = pneg %p173
    // Predicated region
    $region33: #{l2_self_attn_forward.5} parent=5 // pred_check
      _
    $region34: #{l2_self_attn_forward.5} parent=5 // pred_check_branch
      %176 = sbr.rel (%p173) target = $region36
    $region35: #{l2_self_attn_forward.5} parent=5 // pred_region
      %s177 = ssub.s32 %s10, 1
      %p178 = scmp.lt.s32.totalorder %s15, 1
      %s179 = scalar_select %p178, %s15, 1
      %s180 = smul.addr %s179, 2
      %s181 = smul.addr %s180, 4
      %s182 = scalar_lea.vmem %s0, %s181
      %p183 = pneg %p36
      %p184 = pneg %p33
      %p185 = pneg %p57
      %p186 = pneg %p54
      %p187 = pneg %p78
      %p188 = pneg %p75
      %p189 = scmp.lt.s32.totalorder %s15, 1
      %s190 = scalar_select %p189, %s15, 1
      %s191 = smul.addr %s190, 2
      %s192 = smul.addr %s191, 4
      %s193 = scalar_lea.vmem %s3, %s192
      %p194 = pneg %p104
      %p195 = pneg %p101
      %p196 = pneg %p130
      %p197 = pneg %p127
      %p198 = scmp.lt.s32.totalorder %s15, 1
      %s199 = scalar_select %p198, %s15, 1
      %s200 = smul.addr %s199, 2
      %s201 = smul.addr %s200, 4
      %s202 = scalar_lea.vmem %s4, %s201
      %p203 = scmp.lt.s32.totalorder %s15, 1
      %s204 = scalar_select %p203, %s15, 1
      %s205 = smul.addr %s204, 2
      %s206 = smul.addr %s205, 4
      %s207 = scalar_lea.vmem %s0, %s206
      %p208 = scmp.lt.s32.totalorder %s15, 1
      %s209 = scalar_select %p208, %s15, 1
      %s210 = smul.addr %s209, 2
      %s211 = smul.addr %s210, 4
      %s212 = scalar_lea.vmem %s3, %s211
      %p213 = scmp.lt.s32.totalorder %s15, 1
      %s214 = scalar_select %p213, %s15, 1
      %s215 = smul.addr %s214, 2
      %s216 = smul.addr %s215, 4
      %s217 = scalar_lea.vmem %s4, %s216
      %v218 = vld [vmem:[%s1] sm:$0xf]
      %v219 = vld [vmem:[%s207] sm:$0xff]
      %v220 = vld [vmem:[%s2] sm:$0xf]
      %222 = vset.pattern.permute.xlu0 0
      %223 = vperm.xlu0 %222, %v220
      %v224 = vpop.permute.xlu0 %223
      %v227 = vcombine.high %v219, %v219
      %vm228 = vcmask 31744
      %v230 = vsel %vm228, %v218, 0
      %vm232 = vcmask 1043456
      %v233 = vsel %vm232, %v219, 0
      %v235 = vsel %vm232, %v227, 0
      %237 = vmatprep.subr.mxu0 0.0
      %238 = vmatpush1.msra.mxu0 0.0
      %239 = vmatprep.subr.mxu0 0.0
      %240 = vmatpush1.msra.mxu0 0.0
      %241 = vmatprep.subr.mxu0 0.0
      %242 = vmatpush1.msra.mxu0 0.0
      %243 = vmatprep.subr.mxu0 0.0
      %244 = vmatpush1.msra.mxu0 0.0
      %245 = vmatprep.subr.mxu0 0.0
      %246 = vmatpush1.msra.mxu0 0.0
      %247 = vmatprep.subr.mxu0 0.0
      %248 = vmatpush1.msra.mxu0 0.0
      %249 = vmatprep.subr.mxu0 0.0
      %250 = vmatpush1.msra.mxu0 0.0
      %251 = vmatprep.subr.mxu0 0.0
      %252 = vmatpush1.msra.mxu0 0.0
      %253 = vmatprep.subr.mxu0 0.0
      %254 = vmatpush1.msra.mxu0 0.0
      %255 = vmatprep.subr.mxu0 0.0
      %256 = vmatpush1.msra.mxu0 0.0
      %257 = vmatprep.subr.mxu0 0.0
      %258 = vmatpush1.msra.mxu0 0.0
      %259 = vmatprep.subr.mxu0 0.0
      %260 = vmatpush1.msra.mxu0 0.0
      %261 = vmatprep.subr.mxu0 0.0
      %262 = vmatpush1.msra.mxu0 0.0
      %263 = vmatprep.subr.mxu0 0.0
      %264 = vmatpush1.msra.mxu0 0.0
      %265 = vmatprep.subr.mxu0 0.0
      %266 = vmatpush1.msra.mxu0 0.0
      %267 = vmatprep.subr.mxu0 %v235
      %268 = vmatpush1.msra.mxu0 %v233
      %269 = vmatprep.subr.mxu0 0.0
      %270 = vmatpush2.msra.mxu0 0.0
      %271 = vmatprep.subr.mxu0 0.0
      %272 = vmatpush2.msra.mxu0 0.0
      %273 = vmatprep.subr.mxu0 0.0
      %274 = vmatpush2.msra.mxu0 0.0
      %275 = vmatprep.subr.mxu0 0.0
      %276 = vmatpush2.msra.mxu0 0.0
      %277 = vmatprep.subr.mxu0 0.0
      %278 = vmatpush2.msra.mxu0 0.0
      %279 = vmatprep.subr.mxu0 0.0
      %280 = vmatpush2.msra.mxu0 0.0
      %281 = vmatprep.subr.mxu0 0.0
      %282 = vmatpush2.msra.mxu0 0.0
      %283 = vmatprep.subr.mxu0 0.0
      %284 = vmatpush2.msra.mxu0 0.0
      %285 = vmatprep.subr.mxu0 0.0
      %286 = vmatpush2.msra.mxu0 0.0
      %287 = vmatprep.subr.mxu0 0.0
      %288 = vmatpush2.msra.mxu0 0.0
      %289 = vmatprep.subr.mxu0 0.0
      %290 = vmatpush2.msra.mxu0 0.0
      %291 = vmatprep.subr.mxu0 0.0
      %292 = vmatpush2.msra.mxu0 0.0
      %293 = vmatprep.subr.mxu0 0.0
      %294 = vmatpush2.msra.mxu0 0.0
      %295 = vmatprep.subr.mxu0 0.0
      %296 = vmatpush2.msra.mxu0 0.0
      %297 = vmatprep.subr.mxu0 0.0
      %298 = vmatpush2.msra.mxu0 0.0
      %299 = vmatprep.subr.mxu0 0.0
      %300 = vmatpush2.msra.mxu0 0.0
      %301 = vmatprep.mubr.f32.mxu0 0.0
      %302 = vmatmul.mubr.f32.gmra.mxu0 %v230
      %v303 = vpop.f32.mrf.mxu0
      %v304 = vadd.f32 %v224, %v303
      %v305 = vpop.f32.mrf.mxu0
      %v306 = vadd.f32 %v224, %v305
      %307 = vdwg.mxu0
      %v308 = vld [vmem:[%s212] sm:$0xff]
      %v310 = vcombine.high %v308, %v308
      %v312 = vadd.f32 %v304, %v308
      %v313 = vadd.f32 %v306, %v310
      %v316 = vcombine.low %v312, %v313
      %318 = vst [vmem:[%s217] sm:$0xff] %v316
      %p319 = scmp.lt.s32.totalorder %s15, 1
      %s320 = scalar_select %p319, %s15, 1
      %s321 = smul.addr %s320, 2
      %s322 = smul.addr %s321, 4
      %s323 = scalar_lea.vmem %s4, %s322
      // Predicated region
      $region37: #{l2_self_attn_forward.5} parent=35 // pred_check
        %p324 = pneg %p127
      $region38: #{l2_self_attn_forward.5} parent=35 // pred_check_branch
        %326 = sbr.rel (%p324) target = $region40
      $region39: #{l2_self_attn_forward.5} parent=35 // pred_region
        _
      $region40: #{l2_self_attn_forward.5} parent=35 // pred_fallthru
        _
    $region36: #{l2_self_attn_forward.5} parent=5 // pred_fallthru
      _
    %p327 = scmp.le.s32.totalorder 2, %s10
    // Predicated region
    $region41: #{l2_self_attn_forward.5} parent=5 // pred_check
      %p328 = pneg %p327
    $region42: #{l2_self_attn_forward.5} parent=5 // pred_check_branch
      %330 = sbr.rel (%p328) target = $region44
    $region43: #{l2_self_attn_forward.5} parent=5 // pred_region
      %s331 = ssub.s32 %s10, 2
      // Predicated region
      $region45: #{l2_self_attn_forward.5} parent=43 // pred_check
        %p332 = pneg %p133
      $region46: #{l2_self_attn_forward.5} parent=43 // pred_check_branch
        %334 = sbr.rel (%p332) target = $region48
      $region47: #{l2_self_attn_forward.5} parent=43 // pred_region
        %p335 = scmp.lt.s32.totalorder %s16, 1
        %s336 = scalar_select %p335, %s16, 1
        %s337 = smul.addr %s336, 2
        %s338 = smul.addr %s337, 4
        %s339 = scalar_lea.vmem %s4, %s338
      $region48: #{l2_self_attn_forward.5} parent=43 // pred_fallthru
        _
    $region44: #{l2_self_attn_forward.5} parent=5 // pred_fallthru
      _
  $region6: #{l2_self_attn_forward.5} parent=0 // loop_footer
    %s14 = sadd.s32 1, %s10
  $region7: #{l2_self_attn_forward.5} parent=0 // loop_footer_branch
    %9 = sbr.rel target = $region3
  $region8: #{l2_self_attn_forward.5} parent=0 // loop_exit
    _

// kernel: l2_self_attn_forward.3
$region0: #{l2_self_attn_forward.3}
  #allocation0 [shape = 'u32[]', space=smem, size = 0x4, offset = 0x4, fixed_abs, tag = 'smem constant byte address 0x4 - core index']
  #allocation1 [shape = 'u32[144,128]{1,0:T(1,128)}', space=vmem, size = 0x12000, scoped, tag = 'internal scratch']
  %s0 = inlined_call_operand.vmem [shape: f32[2,4,256], index: 0, kind: input, shape index: {}]
  %s1 = inlined_call_operand.vmem [shape: f32[2,256,4], index: 1, kind: input, shape index: {}]
  %s2 = inlined_call_operand.vmem [shape: f32[2,256,4], index: 2, kind: input, shape index: {}]
  %s3 = inlined_call_operand.vmem [shape: f32[1,4,4], index: 3, kind: input, shape index: {}]
  %s4 = inlined_call_operand.vmem [shape: f32[1,4,4], index: 4, kind: input, shape index: {}]
  %s5 = inlined_call_operand.vmem [shape: f32[1,4,1], index: 5, kind: input, shape index: {}]
  %s6 = inlined_call_operand.vmem [shape: f32[1,1,4], index: 6, kind: input, shape index: {}]
  %s7 = inlined_call_operand.vmem [shape: f32[1,4,4], index: 7, kind: input, shape index: {}]
  %s8 = inlined_call_operand.vmem [shape: f32[2,1,256,4], index: 8, kind: output, shape index: {}]
  %s9 = sld [smem:[#allocation0]]
  $region65: #{l2_self_attn_forward.3} parent=0
    _
  %s11 = ssub.s32 1, %s9
  %s12 = scalar_select 0, %s11, %s9
  loop: start=0, step=1, limit=4
  $region2: #{l2_self_attn_forward.3} parent=0 // loop_pre_header
    _
  $region3: #{l2_self_attn_forward.3} parent=0 // loop_header
    %s14 = sphi 0, %s18
    %p15 = scmp.ge.s32.totalorder %s14, 4
    %s21 = sphi 0, %s40
    %s22 = sphi 0, %s36
    %s23 = sphi 0, %s32
    %s24 = sphi 0, %s21
    %s25 = sphi 0, %s22
    %s26 = sphi 0, %s23
    %s27 = sphi 0, %s24
    %s28 = sphi 0, %s25
    %s29 = sphi 0, %s26
    %s43 = sphi 0, %s45
    %s46 = sphi 0, %s43
    %s47 = sphi 0, %s46
    %s63 = sphi 0, %s47
    %s71 = sphi 0, %s73
    %s74 = sphi 0, %s71
    %s75 = sphi 0, %s74
    %s91 = sphi 0, %s75
    %s97 = sphi 0, %s99
    %s100 = sphi 0, %s97
    %s101 = sphi 0, %s100
    %s117 = sphi 0, %s101
    %s123 = sphi 0, %s125
    %s126 = sphi 0, %s123
    %s127 = sphi 0, %s126
    %s143 = sphi 0, %s127
    %s149 = sphi 0, %s151
    %s152 = sphi 0, %s149
    %s153 = sphi 0, %s152
    %s169 = sphi 0, %s153
    %s175 = sphi 0, %s177
    %s178 = sphi 0, %s175
    %s179 = sphi 0, %s178
    %s195 = sphi 0, %s179
    %s201 = sphi 0, %s203
    %s204 = sphi 0, %s201
    %s205 = sphi 0, %s204
    %s221 = sphi 0, %s205
    %s227 = sphi 0, %s229
    %s230 = sphi 0, %s227
    %s231 = sphi 0, %s230
    %s247 = sphi 0, %s231
    %s257 = sphi 0, %s259
    %s260 = sphi 0, %s257
    %s261 = sphi 0, %s260
    %s277 = sphi 0, %s261
  $region4: #{l2_self_attn_forward.3} parent=0 // loop_header_branch
    %17 = sbr.rel (%p15) target = $region8
  $region5: #{l2_self_attn_forward.3} parent=0 // loop_body
    %s19 = ssub.s32 %s14, 1
    %s20 = ssub.s32 %s14, 2
    %s30 = sadd.s32 1, %s23
    %p31 = scmp.ge.s32.totalorder %s30, 1
    %s32 = scalar_select %p31, 0, %s30
    %s33 = sadd.s32 1, %s22
    %s34 = scalar_select %p31, %s33, %s22
    %p35 = scmp.ge.s32.totalorder %s34, 1
    %s36 = scalar_select %p35, 0, %s34
    %s37 = sadd.s32 1, %s21
    %s38 = scalar_select %p35, %s37, %s21
    %p39 = scmp.ge.s32.totalorder %s38, 2
    %s40 = scalar_select %p39, 0, %s38
    %s41 = ssub.s32 %s21, %s40
    %p42 = scmp.eq.s32.totalorder %s41, 0
    %s44 = sadd.s32 %s43, 1
    %s45 = scalar_select %p42, %s43, %s44
    %p48 = pneg %p42
    %p49 = scmp.eq.s32.totalorder %s14, 1
    %p50 = por %p48, %p49
    %p51 = scmp.ne.s32.totalorder %s43, %s46
    %p52 = scmp.eq.s32.totalorder %s14, 0
    %p53 = por %p51, %p52
    %p54 = scmp.ne.s32.totalorder %s43, %s46
    %p55 = scmp.eq.s32.totalorder %s19, 1
    %p56 = por %p54, %p55
    %p57 = scmp.ne.s32.totalorder %s46, %s47
    %p58 = scmp.eq.s32.totalorder %s19, 0
    %p59 = por %p57, %p58
    %p60 = scmp.ne.s32.totalorder %s46, %s47
    %p61 = scmp.eq.s32.totalorder %s20, 1
    %p62 = por %p60, %p61
    %p64 = scmp.ne.s32.totalorder %s47, %s63
    %p65 = scmp.eq.s32.totalorder %s20, 0
    %p66 = por %p64, %p65
    %s67 = ssub.s32 %s21, %s40
    %s68 = ssub.s32 %s23, %s32
    %s69 = sor.u32 %s67, %s68
    %p70 = scmp.eq.s32.totalorder %s69, 0
    %s72 = sadd.s32 %s71, 1
    %s73 = scalar_select %p70, %s71, %s72
    %p76 = pneg %p70
    %p77 = scmp.eq.s32.totalorder %s14, 1
    %p78 = por %p76, %p77
    %p79 = scmp.ne.s32.totalorder %s71, %s74
    %p80 = scmp.eq.s32.totalorder %s14, 0
    %p81 = por %p79, %p80
    %p82 = scmp.ne.s32.totalorder %s71, %s74
    %p83 = scmp.eq.s32.totalorder %s19, 1
    %p84 = por %p82, %p83
    %p85 = scmp.ne.s32.totalorder %s74, %s75
    %p86 = scmp.eq.s32.totalorder %s19, 0
    %p87 = por %p85, %p86
    %p88 = scmp.ne.s32.totalorder %s74, %s75
    %p89 = scmp.eq.s32.totalorder %s20, 1
    %p90 = por %p88, %p89
    %p92 = scmp.ne.s32.totalorder %s75, %s91
    %p93 = scmp.eq.s32.totalorder %s20, 0
    %p94 = por %p92, %p93
    %s95 = ssub.s32 %s21, %s40
    %p96 = scmp.eq.s32.totalorder %s95, 0
    %s98 = sadd.s32 %s97, 1
    %s99 = scalar_select %p96, %s97, %s98
    %p102 = pneg %p96
    %p103 = scmp.eq.s32.totalorder %s14, 1
    %p104 = por %p102, %p103
    %p105 = scmp.ne.s32.totalorder %s97, %s100
    %p106 = scmp.eq.s32.totalorder %s14, 0
    %p107 = por %p105, %p106
    %p108 = scmp.ne.s32.totalorder %s97, %s100
    %p109 = scmp.eq.s32.totalorder %s19, 1
    %p110 = por %p108, %p109
    %p111 = scmp.ne.s32.totalorder %s100, %s101
    %p112 = scmp.eq.s32.totalorder %s19, 0
    %p113 = por %p111, %p112
    %p114 = scmp.ne.s32.totalorder %s100, %s101
    %p115 = scmp.eq.s32.totalorder %s20, 1
    %p116 = por %p114, %p115
    %p118 = scmp.ne.s32.totalorder %s101, %s117
    %p119 = scmp.eq.s32.totalorder %s20, 0
    %p120 = por %p118, %p119
    %s121 = ssub.s32 %s22, %s36
    %p122 = scmp.eq.s32.totalorder %s121, 0
    %s124 = sadd.s32 %s123, 1
    %s125 = scalar_select %p122, %s123, %s124
    %p128 = pneg %p122
    %p129 = scmp.eq.s32.totalorder %s14, 1
    %p130 = por %p128, %p129
    %p131 = scmp.ne.s32.totalorder %s123, %s126
    %p132 = scmp.eq.s32.totalorder %s14, 0
    %p133 = por %p131, %p132
    %p134 = scmp.ne.s32.totalorder %s123, %s126
    %p135 = scmp.eq.s32.totalorder %s19, 1
    %p136 = por %p134, %p135
    %p137 = scmp.ne.s32.totalorder %s126, %s127
    %p138 = scmp.eq.s32.totalorder %s19, 0
    %p139 = por %p137, %p138
    %p140 = scmp.ne.s32.totalorder %s126, %s127
    %p141 = scmp.eq.s32.totalorder %s20, 1
    %p142 = por %p140, %p141
    %p144 = scmp.ne.s32.totalorder %s127, %s143
    %p145 = scmp.eq.s32.totalorder %s20, 0
    %p146 = por %p144, %p145
    %s147 = ssub.s32 %s22, %s36
    %p148 = scmp.eq.s32.totalorder %s147, 0
    %s150 = sadd.s32 %s149, 1
    %s151 = scalar_select %p148, %s149, %s150
    %p154 = pneg %p148
    %p155 = scmp.eq.s32.totalorder %s14, 1
    %p156 = por %p154, %p155
    %p157 = scmp.ne.s32.totalorder %s149, %s152
    %p158 = scmp.eq.s32.totalorder %s14, 0
    %p159 = por %p157, %p158
    %p160 = scmp.ne.s32.totalorder %s149, %s152
    %p161 = scmp.eq.s32.totalorder %s19, 1
    %p162 = por %p160, %p161
    %p163 = scmp.ne.s32.totalorder %s152, %s153
    %p164 = scmp.eq.s32.totalorder %s19, 0
    %p165 = por %p163, %p164
    %p166 = scmp.ne.s32.totalorder %s152, %s153
    %p167 = scmp.eq.s32.totalorder %s20, 1
    %p168 = por %p166, %p167
    %p170 = scmp.ne.s32.totalorder %s153, %s169
    %p171 = scmp.eq.s32.totalorder %s20, 0
    %p172 = por %p170, %p171
    %s173 = ssub.s32 %s22, %s36
    %p174 = scmp.eq.s32.totalorder %s173, 0
    %s176 = sadd.s32 %s175, 1
    %s177 = scalar_select %p174, %s175, %s176
    %p180 = pneg %p174
    %p181 = scmp.eq.s32.totalorder %s14, 1
    %p182 = por %p180, %p181
    %p183 = scmp.ne.s32.totalorder %s175, %s178
    %p184 = scmp.eq.s32.totalorder %s14, 0
    %p185 = por %p183, %p184
    %p186 = scmp.ne.s32.totalorder %s175, %s178
    %p187 = scmp.eq.s32.totalorder %s19, 1
    %p188 = por %p186, %p187
    %p189 = scmp.ne.s32.totalorder %s178, %s179
    %p190 = scmp.eq.s32.totalorder %s19, 0
    %p191 = por %p189, %p190
    %p192 = scmp.ne.s32.totalorder %s178, %s179
    %p193 = scmp.eq.s32.totalorder %s20, 1
    %p194 = por %p192, %p193
    %p196 = scmp.ne.s32.totalorder %s179, %s195
    %p197 = scmp.eq.s32.totalorder %s20, 0
    %p198 = por %p196, %p197
    %s199 = ssub.s32 %s22, %s36
    %p200 = scmp.eq.s32.totalorder %s199, 0
    %s202 = sadd.s32 %s201, 1
    %s203 = scalar_select %p200, %s201, %s202
    %p206 = pneg %p200
    %p207 = scmp.eq.s32.totalorder %s14, 1
    %p208 = por %p206, %p207
    %p209 = scmp.ne.s32.totalorder %s201, %s204
    %p210 = scmp.eq.s32.totalorder %s14, 0
    %p211 = por %p209, %p210
    %p212 = scmp.ne.s32.totalorder %s201, %s204
    %p213 = scmp.eq.s32.totalorder %s19, 1
    %p214 = por %p212, %p213
    %p215 = scmp.ne.s32.totalorder %s204, %s205
    %p216 = scmp.eq.s32.totalorder %s19, 0
    %p217 = por %p215, %p216
    %p218 = scmp.ne.s32.totalorder %s204, %s205
    %p219 = scmp.eq.s32.totalorder %s20, 1
    %p220 = por %p218, %p219
    %p222 = scmp.ne.s32.totalorder %s205, %s221
    %p223 = scmp.eq.s32.totalorder %s20, 0
    %p224 = por %p222, %p223
    %s225 = ssub.s32 %s22, %s36
    %p226 = scmp.eq.s32.totalorder %s225, 0
    %s228 = sadd.s32 %s227, 1
    %s229 = scalar_select %p226, %s227, %s228
    %p232 = pneg %p226
    %p233 = scmp.eq.s32.totalorder %s14, 1
    %p234 = por %p232, %p233
    %p235 = scmp.ne.s32.totalorder %s227, %s230
    %p236 = scmp.eq.s32.totalorder %s14, 0
    %p237 = por %p235, %p236
    %p238 = scmp.ne.s32.totalorder %s227, %s230
    %p239 = scmp.eq.s32.totalorder %s19, 1
    %p240 = por %p238, %p239
    %p241 = scmp.ne.s32.totalorder %s230, %s231
    %p242 = scmp.eq.s32.totalorder %s19, 0
    %p243 = por %p241, %p242
    %p244 = scmp.ne.s32.totalorder %s230, %s231
    %p245 = scmp.eq.s32.totalorder %s20, 1
    %p246 = por %p244, %p245
    %p248 = scmp.ne.s32.totalorder %s231, %s247
    %p249 = scmp.eq.s32.totalorder %s20, 0
    %p250 = por %p248, %p249
    %s251 = ssub.s32 %s21, %s40
    %s252 = ssub.s32 %s22, %s36
    %s253 = sor.u32 %s251, %s252
    %s254 = ssub.s32 %s23, %s32
    %s255 = sor.u32 %s253, %s254
    %p256 = scmp.eq.s32.totalorder %s255, 0
    %s258 = sadd.s32 %s257, 1
    %s259 = scalar_select %p256, %s257, %s258
    %p262 = pneg %p256
    %p263 = scmp.eq.s32.totalorder %s14, 1
    %p264 = por %p262, %p263
    %p265 = scmp.ne.s32.totalorder %s257, %s260
    %p266 = scmp.eq.s32.totalorder %s14, 0
    %p267 = por %p265, %p266
    %p268 = scmp.ne.s32.totalorder %s257, %s260
    %p269 = scmp.eq.s32.totalorder %s19, 1
    %p270 = por %p268, %p269
    %p271 = scmp.ne.s32.totalorder %s260, %s261
    %p272 = scmp.eq.s32.totalorder %s19, 0
    %p273 = por %p271, %p272
    %p274 = scmp.ne.s32.totalorder %s260, %s261
    %p275 = scmp.eq.s32.totalorder %s20, 1
    %p276 = por %p274, %p275
    %p278 = scmp.ne.s32.totalorder %s261, %s277
    %p279 = scmp.eq.s32.totalorder %s20, 0
    %p280 = por %p278, %p279
    %p281 = scmp.le.s32.totalorder 1, %s14
    %p282 = scmp.lt.s32.totalorder %s14, 3
    %p283 = pnand %p281, %p282
    %p284 = pneg %p283
    // Predicated region
    $region9: #{l2_self_attn_forward.3} parent=5 // pred_check
      _
    $region10: #{l2_self_attn_forward.3} parent=5 // pred_check_branch
      %286 = sbr.rel (%p283) target = $region12
    $region11: #{l2_self_attn_forward.3} parent=5 // pred_region
      %s287 = ssub.s32 %s14, 1
      // Predicated region
      $region13: #{l2_self_attn_forward.3} parent=11 // pred_check
        %p288 = pneg %p139
      $region14: #{l2_self_attn_forward.3} parent=11 // pred_check_branch
        %290 = sbr.rel (%p288) target = $region16
      $region15: #{l2_self_attn_forward.3} parent=11 // pred_region
        %p291 = scmp.lt.s32.totalorder %s25, 0
        %s292 = scalar_select %p291, %s25, 0
        %s293 = smul.addr %s292, 4
        %s294 = scalar_lea.vmem %s3, %s293
      $region16: #{l2_self_attn_forward.3} parent=11 // pred_fallthru
        _
      // Predicated region
      $region17: #{l2_self_attn_forward.3} parent=11 // pred_check
        %p295 = pneg %p165
      $region18: #{l2_self_attn_forward.3} parent=11 // pred_check_branch
        %297 = sbr.rel (%p295) target = $region20
      $region19: #{l2_self_attn_forward.3} parent=11 // pred_region
        %p298 = scmp.lt.s32.totalorder %s25, 0
        %s299 = scalar_select %p298, %s25, 0
        %s300 = smul.addr %s299, 4
        %s301 = scalar_lea.vmem %s4, %s300
      $region20: #{l2_self_attn_forward.3} parent=11 // pred_fallthru
        _
      // Predicated region
      $region21: #{l2_self_attn_forward.3} parent=11 // pred_check
        %p302 = pneg %p191
      $region22: #{l2_self_attn_forward.3} parent=11 // pred_check_branch
        %304 = sbr.rel (%p302) target = $region24
      $region23: #{l2_self_attn_forward.3} parent=11 // pred_region
        %p305 = scmp.lt.s32.totalorder %s25, 0
        %s306 = scalar_select %p305, %s25, 0
        %s307 = smul.addr %s306, 4
        %s308 = scalar_lea.vmem %s5, %s307
      $region24: #{l2_self_attn_forward.3} parent=11 // pred_fallthru
        _
      // Predicated region
      $region25: #{l2_self_attn_forward.3} parent=11 // pred_check
        %p309 = pneg %p217
      $region26: #{l2_self_attn_forward.3} parent=11 // pred_check_branch
        %311 = sbr.rel (%p309) target = $region28
      $region27: #{l2_self_attn_forward.3} parent=11 // pred_region
        %p312 = scmp.lt.s32.totalorder %s25, 0
        %s313 = scalar_select %p312, %s25, 0
        %s314 = scalar_lea.vmem %s6, %s313
      $region28: #{l2_self_attn_forward.3} parent=11 // pred_fallthru
        _
      // Predicated region
      $region29: #{l2_self_attn_forward.3} parent=11 // pred_check
        %p315 = pneg %p243
      $region30: #{l2_self_attn_forward.3} parent=11 // pred_check_branch
        %317 = sbr.rel (%p315) target = $region32
      $region31: #{l2_self_attn_forward.3} parent=11 // pred_region
        %p318 = scmp.lt.s32.totalorder %s25, 0
        %s319 = scalar_select %p318, %s25, 0
        %s320 = smul.addr %s319, 4
        %s321 = scalar_lea.vmem %s7, %s320
      $region32: #{l2_self_attn_forward.3} parent=11 // pred_fallthru
        _
    $region12: #{l2_self_attn_forward.3} parent=5 // pred_fallthru
      _
    %p322 = scmp.lt.s32.totalorder %s14, 2
    // Predicated region
    $region33: #{l2_self_attn_forward.3} parent=5 // pred_check
      %p323 = pneg %p322
    $region34: #{l2_self_attn_forward.3} parent=5 // pred_check_branch
      %325 = sbr.rel (%p323) target = $region36
    $region35: #{l2_self_attn_forward.3} parent=5 // pred_region
      // Predicated region
      $region37: #{l2_self_attn_forward.3} parent=35 // pred_check
        %p326 = pneg %p53
      $region38: #{l2_self_attn_forward.3} parent=35 // pred_check_branch
        %328 = sbr.rel (%p326) target = $region40
      $region39: #{l2_self_attn_forward.3} parent=35 // pred_region
        %p329 = scmp.lt.s32.totalorder %s21, 1
        %s330 = scalar_select %p329, %s21, 1
        %s331 = smul.addr %s330, 2
        %s332 = smul.addr %s331, 4
        %s333 = scalar_lea.vmem %s0, %s332
      $region40: #{l2_self_attn_forward.3} parent=35 // pred_fallthru
        _
      // Predicated region
      $region41: #{l2_self_attn_forward.3} parent=35 // pred_check
        %p334 = pneg %p81
      $region42: #{l2_self_attn_forward.3} parent=35 // pred_check_branch
        %336 = sbr.rel (%p334) target = $region44
      $region43: #{l2_self_attn_forward.3} parent=35 // pred_region
        %s337 = smul.u32 32, %s23
        %p338 = scmp.lt.s32.totalorder %s21, 1
        %s339 = scalar_select %p338, %s21, 1
        %p340 = scmp.lt.s32.totalorder %s337, 31
        %s341 = scalar_select %p340, %s337, 31
        %s342 = smul.addr %s339, 32
        %s343 = sadd.s32 %s341, %s342
        %s344 = smul.addr %s343, 8
        %s345 = scalar_lea.vmem %s1, %s344
        %s346 = smul.u32 32, %s23
      $region44: #{l2_self_attn_forward.3} parent=35 // pred_fallthru
        _
      // Predicated region
      $region45: #{l2_self_attn_forward.3} parent=35 // pred_check
        %p347 = pneg %p107
      $region46: #{l2_self_attn_forward.3} parent=35 // pred_check_branch
        %349 = sbr.rel (%p347) target = $region48
      $region47: #{l2_self_attn_forward.3} parent=35 // pred_region
        %p350 = scmp.lt.s32.totalorder %s21, 1
        %s351 = scalar_select %p350, %s21, 1
        %s352 = smul.addr %s351, 32
        %s353 = smul.addr %s352, 8
        %s354 = scalar_lea.vmem %s2, %s353
      $region48: #{l2_self_attn_forward.3} parent=35 // pred_fallthru
        _
    $region36: #{l2_self_attn_forward.3} parent=5 // pred_fallthru
      _
    %p355 = scmp.le.s32.totalorder 1, %s14
    %p356 = scmp.lt.s32.totalorder %s14, 3
    %p357 = pnand %p355, %p356
    %p358 = pneg %p357
    // Predicated region
    $region49: #{l2_self_attn_forward.3} parent=5 // pred_check
      _
    $region50: #{l2_self_attn_forward.3} parent=5 // pred_check_branch
      %360 = sbr.rel (%p357) target = $region52
    $region51: #{l2_self_attn_forward.3} parent=5 // pred_region
      %s361 = ssub.s32 %s14, 1
      %p362 = scmp.lt.s32.totalorder %s24, 1
      %s363 = scalar_select %p362, %s24, 1
      %s364 = smul.addr %s363, 2
      %s365 = smul.addr %s364, 4
      %s366 = scalar_lea.vmem %s0, %s365
      %p367 = pneg %p59
      %p368 = pneg %p56
      %s369 = smul.u32 32, %s26
      %p370 = scmp.lt.s32.totalorder %s24, 1
      %s371 = scalar_select %p370, %s24, 1
      %p372 = scmp.lt.s32.totalorder %s369, 31
      %s373 = scalar_select %p372, %s369, 31
      %s374 = smul.addr %s371, 32
      %s375 = sadd.s32 %s373, %s374
      %s376 = smul.addr %s375, 8
      %s377 = scalar_lea.vmem %s1, %s376
      %p378 = pneg %p87
      %p379 = pneg %p84
      %p380 = scmp.lt.s32.totalorder %s24, 1
      %s381 = scalar_select %p380, %s24, 1
      %s382 = smul.addr %s381, 32
      %s383 = smul.addr %s382, 8
      %s384 = scalar_lea.vmem %s2, %s383
      %p385 = pneg %p113
      %p386 = pneg %p110
      %p387 = scmp.lt.s32.totalorder %s25, 0
      %s388 = scalar_select %p387, %s25, 0
      %s389 = smul.addr %s388, 4
      %s390 = scalar_lea.vmem %s3, %s389
      %p391 = pneg %p139
      %p392 = pneg %p136
      %p393 = scmp.lt.s32.totalorder %s25, 0
      %s394 = scalar_select %p393, %s25, 0
      %s395 = smul.addr %s394, 4
      %s396 = scalar_lea.vmem %s4, %s395
      %p397 = pneg %p165
      %p398 = pneg %p162
      %p399 = scmp.lt.s32.totalorder %s25, 0
      %s400 = scalar_select %p399, %s25, 0
      %s401 = smul.addr %s400, 4
      %s402 = scalar_lea.vmem %s5, %s401
      %p403 = pneg %p191
      %p404 = pneg %p188
      %p405 = scmp.lt.s32.totalorder %s25, 0
      %s406 = scalar_select %p405, %s25, 0
      %s407 = scalar_lea.vmem %s6, %s406
      %p408 = pneg %p217
      %p409 = pneg %p214
      %p410 = scmp.lt.s32.totalorder %s25, 0
      %s411 = scalar_select %p410, %s25, 0
      %s412 = smul.addr %s411, 4
      %s413 = scalar_lea.vmem %s7, %s412
      %p414 = pneg %p243
      %p415 = pneg %p240
      %p416 = pneg %p273
      %p417 = pneg %p270
      %s418 = smul.u32 32, %s26
      %p419 = scmp.lt.s32.totalorder %s24, 1
      %s420 = scalar_select %p419, %s24, 1
      %p421 = scmp.lt.s32.totalorder %s25, 0
      %s422 = scalar_select %p421, %s25, 0
      %p423 = scmp.lt.s32.totalorder %s418, 31
      %s424 = scalar_select %p423, %s418, 31
      %s425 = smul.addr %s422, 32
      %s426 = sadd.s32 %s424, %s425
      %s427 = smul.addr %s420, 32
      %s428 = sadd.s32 %s426, %s427
      %s429 = smul.addr %s428, 8
      %s430 = scalar_lea.vmem %s8, %s429
      %p431 = scmp.lt.s32.totalorder %s24, 1
      %s432 = scalar_select %p431, %s24, 1
      %s433 = smul.addr %s432, 2
      %s434 = smul.addr %s433, 4
      %s435 = scalar_lea.vmem %s0, %s434
      %s436 = smul.u32 32, %s26
      %p437 = scmp.lt.s32.totalorder %s24, 1
      %s438 = scalar_select %p437, %s24, 1
      %p439 = scmp.lt.s32.totalorder %s436, 31
      %s440 = scalar_select %p439, %s436, 31
      %s441 = smul.addr %s438, 32
      %s442 = sadd.s32 %s440, %s441
      %s443 = smul.addr %s442, 8
      %s444 = scalar_lea.vmem %s1, %s443
      %s445 = smul.u32 32, %s26
      %p446 = scmp.lt.s32.totalorder %s24, 1
      %s447 = scalar_select %p446, %s24, 1
      %s448 = smul.addr %s447, 32
      %s449 = smul.addr %s448, 8
      %s450 = scalar_lea.vmem %s2, %s449
      %p451 = scmp.lt.s32.totalorder %s25, 0
      %s452 = scalar_select %p451, %s25, 0
      %s453 = smul.addr %s452, 4
      %s454 = scalar_lea.vmem %s3, %s453
      %p455 = scmp.lt.s32.totalorder %s25, 0
      %s456 = scalar_select %p455, %s25, 0
      %s457 = smul.addr %s456, 4
      %s458 = scalar_lea.vmem %s4, %s457
      %p459 = scmp.lt.s32.totalorder %s25, 0
      %s460 = scalar_select %p459, %s25, 0
      %s461 = smul.addr %s460, 4
      %s462 = scalar_lea.vmem %s5, %s461
      %p463 = scmp.lt.s32.totalorder %s25, 0
      %s464 = scalar_select %p463, %s25, 0
      %s465 = scalar_lea.vmem %s6, %s464
      %p466 = scmp.lt.s32.totalorder %s25, 0
      %s467 = scalar_select %p466, %s25, 0
      %s468 = smul.addr %s467, 4
      %s469 = scalar_lea.vmem %s7, %s468
      %s470 = smul.u32 32, %s26
      %p471 = scmp.lt.s32.totalorder %s24, 1
      %s472 = scalar_select %p471, %s24, 1
      %p473 = scmp.lt.s32.totalorder %s25, 0
      %s474 = scalar_select %p473, %s25, 0
      %p475 = scmp.lt.s32.totalorder %s470, 31
      %s476 = scalar_select %p475, %s470, 31
      %s477 = smul.addr %s474, 32
      %s478 = sadd.s32 %s476, %s477
      %s479 = smul.addr %s472, 32
      %s480 = sadd.s32 %s478, %s479
      %s481 = smul.addr %s480, 8
      %s482 = scalar_lea.vmem %s8, %s481
      %s483 = smul.u32 32, %s26
      %v484 = vld [vmem:[%s454] sm:$0xf]
      %v485 = vld [vmem:[%s435] sm:$0xff]
      %v486 = vld [vmem:[%s462] sm:$0xf]
      %488 = vset.pattern.permute.xlu0 0
      %489 = vperm.xlu0 %488, %v486
      %v490 = vpop.permute.xlu0 %489
      %v493 = vcombine.high %v485, %v485
      %vm494 = vcmask 31744
      %v496 = vsel %vm494, %v484, 0
      %vm498 = vcmask 1043456
      %v499 = vsel %vm498, %v485, 0
      %v501 = vsel %vm498, %v493, 0
      %503 = vmatprep.subr.mxu0 0.0
      %504 = vmatpush1.msra.mxu0 0.0
      %505 = vmatprep.subr.mxu0 0.0
      %506 = vmatpush1.msra.mxu0 0.0
      %507 = vmatprep.subr.mxu0 0.0
      %508 = vmatpush1.msra.mxu0 0.0
      %509 = vmatprep.subr.mxu0 0.0
      %510 = vmatpush1.msra.mxu0 0.0
      %511 = vmatprep.subr.mxu0 0.0
      %512 = vmatpush1.msra.mxu0 0.0
      %513 = vmatprep.subr.mxu0 0.0
      %514 = vmatpush1.msra.mxu0 0.0
      %515 = vmatprep.subr.mxu0 0.0
      %516 = vmatpush1.msra.mxu0 0.0
      %517 = vmatprep.subr.mxu0 0.0
      %518 = vmatpush1.msra.mxu0 0.0
      %519 = vmatprep.subr.mxu0 0.0
      %520 = vmatpush1.msra.mxu0 0.0
      %521 = vmatprep.subr.mxu0 0.0
      %522 = vmatpush1.msra.mxu0 0.0
      %523 = vmatprep.subr.mxu0 0.0
      %524 = vmatpush1.msra.mxu0 0.0
      %525 = vmatprep.subr.mxu0 0.0
      %526 = vmatpush1.msra.mxu0 0.0
      %527 = vmatprep.subr.mxu0 0.0
      %528 = vmatpush1.msra.mxu0 0.0
      %529 = vmatprep.subr.mxu0 0.0
      %530 = vmatpush1.msra.mxu0 0.0
      %531 = vmatprep.subr.mxu0 0.0
      %532 = vmatpush1.msra.mxu0 0.0
      %533 = vmatprep.subr.mxu0 %v501
      %534 = vmatpush1.msra.mxu0 %v499
      %535 = vmatprep.subr.mxu0 0.0
      %536 = vmatpush2.msra.mxu0 0.0
      %537 = vmatprep.subr.mxu0 0.0
      %538 = vmatpush2.msra.mxu0 0.0
      %539 = vmatprep.subr.mxu0 0.0
      %540 = vmatpush2.msra.mxu0 0.0
      %541 = vmatprep.subr.mxu0 0.0
      %542 = vmatpush2.msra.mxu0 0.0
      %543 = vmatprep.subr.mxu0 0.0
      %544 = vmatpush2.msra.mxu0 0.0
      %545 = vmatprep.subr.mxu0 0.0
      %546 = vmatpush2.msra.mxu0 0.0
      %547 = vmatprep.subr.mxu0 0.0
      %548 = vmatpush2.msra.mxu0 0.0
      %549 = vmatprep.subr.mxu0 0.0
      %550 = vmatpush2.msra.mxu0 0.0
      %551 = vmatprep.subr.mxu0 0.0
      %552 = vmatpush2.msra.mxu0 0.0
      %553 = vmatprep.subr.mxu0 0.0
      %554 = vmatpush2.msra.mxu0 0.0
      %555 = vmatprep.subr.mxu0 0.0
      %556 = vmatpush2.msra.mxu0 0.0
      %557 = vmatprep.subr.mxu0 0.0
      %558 = vmatpush2.msra.mxu0 0.0
      %559 = vmatprep.subr.mxu0 0.0
      %560 = vmatpush2.msra.mxu0 0.0
      %561 = vmatprep.subr.mxu0 0.0
      %562 = vmatpush2.msra.mxu0 0.0
      %563 = vmatprep.subr.mxu0 0.0
      %564 = vmatpush2.msra.mxu0 0.0
      %565 = vmatprep.subr.mxu0 0.0
      %566 = vmatpush2.msra.mxu0 0.0
      %567 = vmatprep.mubr.f32.mxu0 0.0
      %568 = vmatmul.mubr.f32.gmra.mxu0 %v496
      %v569 = vpop.f32.mrf.mxu0
      %v570 = vadd.f32 %v490, %v569
      %v571 = vpop.f32.mrf.mxu0
      %v572 = vadd.f32 %v490, %v571
      %573 = vdwg.mxu0
      %v574 = vmul.f32 %v570, %v570
      %v575 = vmul.f32 %v572, %v572
      %v576 = vsel %vm498, %v574, 0.0
      %v577 = vrot.slane %v576, 4
      %v578 = vadd.f32 %v576, %v577
      %v579 = vrot.slane %v578, 2
      %v580 = vadd.f32 %v578, %v579
      %v581 = vrot.slane %v580, 1
      %v582 = vadd.f32 %v580, %v581
      %v583 = vsel %vm498, %v575, 0.0
      %v584 = vrot.slane %v583, 4
      %v585 = vadd.f32 %v583, %v584
      %v586 = vrot.slane %v585, 2
      %v587 = vadd.f32 %v585, %v586
      %v588 = vrot.slane %v587, 1
      %v589 = vadd.f32 %v587, %v588
      %v590 = vld [vmem:[%s444] sm:$0xff]
      %v591 = vld [vmem:[%s444 + $0x8] sm:$0xff]
      %v592 = vld [vmem:[%s444 + $0x10] sm:$0xff]
      %v593 = vld [vmem:[%s444 + $0x18] sm:$0xff]
      %v594 = vld [vmem:[%s444 + $0x20] sm:$0xff]
      %v595 = vld [vmem:[%s444 + $0x28] sm:$0xff]
      %v596 = vld [vmem:[%s444 + $0x30] sm:$0xff]
      %v597 = vld [vmem:[%s444 + $0x38] sm:$0xff]
      %v598 = vld [vmem:[%s444 + $0x40] sm:$0xff]
      %v599 = vld [vmem:[%s444 + $0x48] sm:$0xff]
      %v600 = vld [vmem:[%s444 + $0x50] sm:$0xff]
      %v601 = vld [vmem:[%s444 + $0x58] sm:$0xff]
      %v602 = vld [vmem:[%s444 + $0x60] sm:$0xff]
      %v603 = vld [vmem:[%s444 + $0x68] sm:$0xff]
      %v604 = vld [vmem:[%s444 + $0x70] sm:$0xff]
      %v605 = vld [vmem:[%s444 + $0x78] sm:$0xff]
      %v606 = vld [vmem:[%s444 + $0x80] sm:$0xff]
      %v607 = vld [vmem:[%s444 + $0x88] sm:$0xff]
      %v608 = vld [vmem:[%s444 + $0x90] sm:$0xff]
      %v609 = vld [vmem:[%s444 + $0x98] sm:$0xff]
      %v610 = vld [vmem:[%s444 + $0xa0] sm:$0xff]
      %v611 = vld [vmem:[%s444 + $0xa8] sm:$0xff]
      %v612 = vld [vmem:[%s444 + $0xb0] sm:$0xff]
      %v613 = vld [vmem:[%s444 + $0xb8] sm:$0xff]
      %v614 = vld [vmem:[%s444 + $0xc0] sm:$0xff]
      %v615 = vld [vmem:[%s444 + $0xc8] sm:$0xff]
      %v616 = vld [vmem:[%s444 + $0xd0] sm:$0xff]
      %v617 = vld [vmem:[%s444 + $0xd8] sm:$0xff]
      %v618 = vld [vmem:[%s444 + $0xe0] sm:$0xff]
      %v619 = vld [vmem:[%s444 + $0xe8] sm:$0xff]
      %v620 = vld [vmem:[%s444 + $0xf0] sm:$0xff]
      %v621 = vld [vmem:[%s444 + $0xf8] sm:$0xff]
      %v622 = vld [vmem:[%s458] sm:$0xf]
      %v623 = vld [vmem:[%s465] sm:$0x1]
      %v625 = vlaneseq
      %v626 = vshrl.u32 %v625, 7
      %v627 = vsub.s32 0, %v626
      %v628 = vrot.slane %v623, %v627
      %v631 = vsel %vm494, %v590, 0
      %v634 = vsel %vm494, %v591, 0
      %v637 = vsel %vm494, %v592, 0
      %v640 = vsel %vm494, %v593, 0
      %v643 = vsel %vm494, %v594, 0
      %v646 = vsel %vm494, %v595, 0
      %v649 = vsel %vm494, %v596, 0
      %v652 = vsel %vm494, %v597, 0
      %v655 = vsel %vm494, %v598, 0
      %v658 = vsel %vm494, %v599, 0
      %v661 = vsel %vm494, %v600, 0
      %v664 = vsel %vm494, %v601, 0
      %v667 = vsel %vm494, %v602, 0
      %v670 = vsel %vm494, %v603, 0
      %v673 = vsel %vm494, %v604, 0
      %v676 = vsel %vm494, %v605, 0
      %v679 = vsel %vm494, %v606, 0
      %v682 = vsel %vm494, %v607, 0
      %v685 = vsel %vm494, %v608, 0
      %v688 = vsel %vm494, %v609, 0
      %v691 = vsel %vm494, %v610, 0
      %v694 = vsel %vm494, %v611, 0
      %v697 = vsel %vm494, %v612, 0
      %v700 = vsel %vm494, %v613, 0
      %v703 = vsel %vm494, %v614, 0
      %v706 = vsel %vm494, %v615, 0
      %v709 = vsel %vm494, %v616, 0
      %v712 = vsel %vm494, %v617, 0
      %v715 = vsel %vm494, %v618, 0
      %v718 = vsel %vm494, %v619, 0
      %v721 = vsel %vm494, %v620, 0
      %v724 = vsel %vm494, %v621, 0
      %v727 = vsel %vm498, %v622, 0
      %729 = vmatprep.subr.mxu0 0.0
      %730 = vmatpush1.msra.mxu0 0.0
      %731 = vmatprep.subr.mxu0 0.0
      %732 = vmatpush1.msra.mxu0 0.0
      %733 = vmatprep.subr.mxu0 0.0
      %734 = vmatpush1.msra.mxu0 0.0
      %735 = vmatprep.subr.mxu0 0.0
      %736 = vmatpush1.msra.mxu0 0.0
      %737 = vmatprep.subr.mxu0 0.0
      %738 = vmatpush1.msra.mxu0 0.0
      %739 = vmatprep.subr.mxu0 0.0
      %740 = vmatpush1.msra.mxu0 0.0
      %741 = vmatprep.subr.mxu0 0.0
      %742 = vmatpush1.msra.mxu0 0.0
      %743 = vmatprep.subr.mxu0 0.0
      %744 = vmatpush1.msra.mxu0 0.0
      %745 = vmatprep.subr.mxu0 0.0
      %746 = vmatpush1.msra.mxu0 0.0
      %747 = vmatprep.subr.mxu0 0.0
      %748 = vmatpush1.msra.mxu0 0.0
      %749 = vmatprep.subr.mxu0 0.0
      %750 = vmatpush1.msra.mxu0 0.0
      %751 = vmatprep.subr.mxu0 0.0
      %752 = vmatpush1.msra.mxu0 0.0
      %753 = vmatprep.subr.mxu0 0.0
      %754 = vmatpush1.msra.mxu0 0.0
      %755 = vmatprep.subr.mxu0 0.0
      %756 = vmatpush1.msra.mxu0 0.0
      %757 = vmatprep.subr.mxu0 0.0
      %758 = vmatpush1.msra.mxu0 0.0
      %759 = vmatprep.subr.mxu0 0.0
      %760 = vmatpush1.msra.mxu0 %v727
      %761 = vmatprep.subr.mxu0 0.0
      %762 = vmatpush2.msra.mxu0 0.0
      %763 = vmatprep.subr.mxu0 0.0
      %764 = vmatpush2.msra.mxu0 0.0
      %765 = vmatprep.subr.mxu0 0.0
      %766 = vmatpush2.msra.mxu0 0.0
      %767 = vmatprep.subr.mxu0 0.0
      %768 = vmatpush2.msra.mxu0 0.0
      %769 = vmatprep.subr.mxu0 0.0
      %770 = vmatpush2.msra.mxu0 0.0
      %771 = vmatprep.subr.mxu0 0.0
      %772 = vmatpush2.msra.mxu0 0.0
      %773 = vmatprep.subr.mxu0 0.0
      %774 = vmatpush2.msra.mxu0 0.0
      %775 = vmatprep.subr.mxu0 0.0
      %776 = vmatpush2.msra.mxu0 0.0
      %777 = vmatprep.subr.mxu0 0.0
      %778 = vmatpush2.msra.mxu0 0.0
      %779 = vmatprep.subr.mxu0 0.0
      %780 = vmatpush2.msra.mxu0 0.0
      %781 = vmatprep.subr.mxu0 0.0
      %782 = vmatpush2.msra.mxu0 0.0
      %783 = vmatprep.subr.mxu0 0.0
      %784 = vmatpush2.msra.mxu0 0.0
      %785 = vmatprep.subr.mxu0 0.0
      %786 = vmatpush2.msra.mxu0 0.0
      %787 = vmatprep.subr.mxu0 0.0
      %788 = vmatpush2.msra.mxu0 0.0
      %789 = vmatprep.subr.mxu0 0.0
      %790 = vmatpush2.msra.mxu0 0.0
      %791 = vmatprep.subr.mxu0 0.0
      %792 = vmatpush2.msra.mxu0 0.0
      %793 = vmatprep.mubr.f32.mxu0 0.0
      %794 = vmatmul.mubr.f32.gmra.mxu0 %v631
      %v795 = vpop.f32.mrf.mxu0
      %v796 = vadd.f32 %v628, %v795
      %v797 = vpop.f32.mrf.mxu0
      %798 = vmatprep.mubr.f32.mxu0 0.0
      %799 = vmatmul.mubr.f32.gmra.mxu0 %v634
      %v800 = vpop.f32.mrf.mxu0
      %v801 = vadd.f32 %v628, %v800
      %v802 = vpop.f32.mrf.mxu0
      %803 = vmatprep.mubr.f32.mxu0 0.0
      %804 = vmatmul.mubr.f32.gmra.mxu0 %v637
      %v805 = vpop.f32.mrf.mxu0
      %v806 = vadd.f32 %v628, %v805
      %v807 = vpop.f32.mrf.mxu0
      %808 = vmatprep.mubr.f32.mxu0 0.0
      %809 = vmatmul.mubr.f32.gmra.mxu0 %v640
      %v810 = vpop.f32.mrf.mxu0
      %v811 = vadd.f32 %v628, %v810
      %v812 = vpop.f32.mrf.mxu0
      %813 = vmatprep.mubr.f32.mxu0 0.0
      %814 = vmatmul.mubr.f32.gmra.mxu0 %v643
      %v815 = vpop.f32.mrf.mxu0
      %v816 = vadd.f32 %v628, %v815
      %v817 = vpop.f32.mrf.mxu0
      %818 = vmatprep.mubr.f32.mxu0 0.0
      %819 = vmatmul.mubr.f32.gmra.mxu0 %v646
      %v820 = vpop.f32.mrf.mxu0
      %v821 = vadd.f32 %v628, %v820
      %v822 = vpop.f32.mrf.mxu0
      %823 = vmatprep.mubr.f32.mxu0 0.0
      %824 = vmatmul.mubr.f32.gmra.mxu0 %v649
      %v825 = vpop.f32.mrf.mxu0
      %v826 = vadd.f32 %v628, %v825
      %v827 = vpop.f32.mrf.mxu0
      %828 = vmatprep.mubr.f32.mxu0 0.0
      %829 = vmatmul.mubr.f32.gmra.mxu0 %v652
      %v830 = vpop.f32.mrf.mxu0
      %v831 = vadd.f32 %v628, %v830
      %v832 = vpop.f32.mrf.mxu0
      %833 = vmatprep.mubr.f32.mxu0 0.0
      %834 = vmatmul.mubr.f32.gmra.mxu0 %v655
      %v835 = vpop.f32.mrf.mxu0
      %v836 = vadd.f32 %v628, %v835
      %v837 = vpop.f32.mrf.mxu0
      %838 = vmatprep.mubr.f32.mxu0 0.0
      %839 = vmatmul.mubr.f32.gmra.mxu0 %v658
      %v840 = vpop.f32.mrf.mxu0
      %v841 = vadd.f32 %v628, %v840
      %v842 = vpop.f32.mrf.mxu0
      %843 = vmatprep.mubr.f32.mxu0 0.0
      %844 = vmatmul.mubr.f32.gmra.mxu0 %v661
      %v845 = vpop.f32.mrf.mxu0
      %v846 = vadd.f32 %v628, %v845
      %v847 = vpop.f32.mrf.mxu0
      %848 = vmatprep.mubr.f32.mxu0 0.0
      %849 = vmatmul.mubr.f32.gmra.mxu0 %v664
      %v850 = vpop.f32.mrf.mxu0
      %v851 = vadd.f32 %v628, %v850
      %v852 = vpop.f32.mrf.mxu0
      %853 = vmatprep.mubr.f32.mxu0 0.0
      %854 = vmatmul.mubr.f32.gmra.mxu0 %v667
      %v855 = vpop.f32.mrf.mxu0
      %v856 = vadd.f32 %v628, %v855
      %v857 = vpop.f32.mrf.mxu0
      %858 = vmatprep.mubr.f32.mxu0 0.0
      %859 = vmatmul.mubr.f32.gmra.mxu0 %v670
      %v860 = vpop.f32.mrf.mxu0
      %v861 = vadd.f32 %v628, %v860
      %v862 = vpop.f32.mrf.mxu0
      %863 = vmatprep.mubr.f32.mxu0 0.0
      %864 = vmatmul.mubr.f32.gmra.mxu0 %v673
      %v865 = vpop.f32.mrf.mxu0
      %v866 = vadd.f32 %v628, %v865
      %v867 = vpop.f32.mrf.mxu0
      %868 = vmatprep.mubr.f32.mxu0 0.0
      %869 = vmatmul.mubr.f32.gmra.mxu0 %v676
      %v870 = vpop.f32.mrf.mxu0
      %v871 = vadd.f32 %v628, %v870
      %v872 = vpop.f32.mrf.mxu0
      %873 = vmatprep.mubr.f32.mxu0 0.0
      %874 = vmatmul.mubr.f32.gmra.mxu0 %v679
      %v875 = vpop.f32.mrf.mxu0
      %v876 = vadd.f32 %v628, %v875
      %v877 = vpop.f32.mrf.mxu0
      %878 = vmatprep.mubr.f32.mxu0 0.0
      %879 = vmatmul.mubr.f32.gmra.mxu0 %v682
      %v880 = vpop.f32.mrf.mxu0
      %v881 = vadd.f32 %v628, %v880
      %v882 = vpop.f32.mrf.mxu0
      %883 = vmatprep.mubr.f32.mxu0 0.0
      %884 = vmatmul.mubr.f32.gmra.mxu0 %v685
      %v885 = vpop.f32.mrf.mxu0
      %v886 = vadd.f32 %v628, %v885
      %v887 = vpop.f32.mrf.mxu0
      %888 = vmatprep.mubr.f32.mxu0 0.0
      %889 = vmatmul.mubr.f32.gmra.mxu0 %v688
      %v890 = vpop.f32.mrf.mxu0
      %v891 = vadd.f32 %v628, %v890
      %v892 = vpop.f32.mrf.mxu0
      %893 = vmatprep.mubr.f32.mxu0 0.0
      %894 = vmatmul.mubr.f32.gmra.mxu0 %v691
      %v895 = vpop.f32.mrf.mxu0
      %v896 = vadd.f32 %v628, %v895
      %v897 = vpop.f32.mrf.mxu0
      %898 = vmatprep.mubr.f32.mxu0 0.0
      %899 = vmatmul.mubr.f32.gmra.mxu0 %v694
      %v900 = vpop.f32.mrf.mxu0
      %v901 = vadd.f32 %v628, %v900
      %v902 = vpop.f32.mrf.mxu0
      %903 = vmatprep.mubr.f32.mxu0 0.0
      %904 = vmatmul.mubr.f32.gmra.mxu0 %v697
      %v905 = vpop.f32.mrf.mxu0
      %v906 = vadd.f32 %v628, %v905
      %v907 = vpop.f32.mrf.mxu0
      %908 = vmatprep.mubr.f32.mxu0 0.0
      %909 = vmatmul.mubr.f32.gmra.mxu0 %v700
      %v910 = vpop.f32.mrf.mxu0
      %v911 = vadd.f32 %v628, %v910
      %v912 = vpop.f32.mrf.mxu0
      %913 = vmatprep.mubr.f32.mxu0 0.0
      %914 = vmatmul.mubr.f32.gmra.mxu0 %v703
      %v915 = vpop.f32.mrf.mxu0
      %v916 = vadd.f32 %v628, %v915
      %v917 = vpop.f32.mrf.mxu0
      %918 = vmatprep.mubr.f32.mxu0 0.0
      %919 = vmatmul.mubr.f32.gmra.mxu0 %v706
      %v920 = vpop.f32.mrf.mxu0
      %v921 = vadd.f32 %v628, %v920
      %v922 = vpop.f32.mrf.mxu0
      %923 = vmatprep.mubr.f32.mxu0 0.0
      %924 = vmatmul.mubr.f32.gmra.mxu0 %v709
      %v925 = vpop.f32.mrf.mxu0
      %v926 = vadd.f32 %v628, %v925
      %v927 = vpop.f32.mrf.mxu0
      %928 = vmatprep.mubr.f32.mxu0 0.0
      %929 = vmatmul.mubr.f32.gmra.mxu0 %v712
      %v930 = vpop.f32.mrf.mxu0
      %v931 = vadd.f32 %v628, %v930
      %v932 = vpop.f32.mrf.mxu0
      %933 = vmatprep.mubr.f32.mxu0 0.0
      %934 = vmatmul.mubr.f32.gmra.mxu0 %v715
      %v935 = vpop.f32.mrf.mxu0
      %v936 = vadd.f32 %v628, %v935
      %v937 = vpop.f32.mrf.mxu0
      %938 = vmatprep.mubr.f32.mxu0 0.0
      %939 = vmatmul.mubr.f32.gmra.mxu0 %v718
      %v940 = vpop.f32.mrf.mxu0
      %v941 = vadd.f32 %v628, %v940
      %v942 = vpop.f32.mrf.mxu0
      %943 = vmatprep.mubr.f32.mxu0 0.0
      %944 = vmatmul.mubr.f32.gmra.mxu0 %v721
      %v945 = vpop.f32.mrf.mxu0
      %v946 = vadd.f32 %v628, %v945
      %v947 = vpop.f32.mrf.mxu0
      %948 = vmatprep.mubr.f32.mxu0 0.0
      %949 = vmatmul.mubr.f32.gmra.mxu0 %v724
      %v950 = vpop.f32.mrf.mxu0
      %v951 = vadd.f32 %v628, %v950
      %v952 = vpop.f32.mrf.mxu0
      %953 = vdwg.mxu0
      %v955 = vsel %vm494, %v796, 0
      %v958 = vsel %vm494, %v801, 0
      %v961 = vsel %vm494, %v806, 0
      %v964 = vsel %vm494, %v811, 0
      %v967 = vsel %vm494, %v816, 0
      %v970 = vsel %vm494, %v821, 0
      %v973 = vsel %vm494, %v826, 0
      %v976 = vsel %vm494, %v831, 0
      %v979 = vsel %vm494, %v836, 0
      %v982 = vsel %vm494, %v841, 0
      %v985 = vsel %vm494, %v846, 0
      %v988 = vsel %vm494, %v851, 0
      %v991 = vsel %vm494, %v856, 0
      %v994 = vsel %vm494, %v861, 0
      %v997 = vsel %vm494, %v866, 0
      %v1000 = vsel %vm494, %v871, 0
      %v1003 = vsel %vm494, %v876, 0
      %v1006 = vsel %vm494, %v881, 0
      %v1009 = vsel %vm494, %v886, 0
      %v1012 = vsel %vm494, %v891, 0
      %v1015 = vsel %vm494, %v896, 0
      %v1018 = vsel %vm494, %v901, 0
      %v1021 = vsel %vm494, %v906, 0
      %v1024 = vsel %vm494, %v911, 0
      %v1027 = vsel %vm494, %v916, 0
      %v1030 = vsel %vm494, %v921, 0
      %v1033 = vsel %vm494, %v926, 0
      %v1036 = vsel %vm494, %v931, 0
      %v1039 = vsel %vm494, %v936, 0
      %v1042 = vsel %vm494, %v941, 0
      %v1045 = vsel %vm494, %v946, 0
      %v1048 = vsel %vm494, %v951, 0
      %v1051 = vsel %vm498, %v570, 0
      %v1054 = vsel %vm498, %v572, 0
      %1056 = vmatprep.subr.mxu0 0.0
      %1057 = vmatpush1.msra.mxu0 0.0
      %1058 = vmatprep.subr.mxu0 0.0
      %1059 = vmatpush1.msra.mxu0 0.0
      %1060 = vmatprep.subr.mxu0 0.0
      %1061 = vmatpush1.msra.mxu0 0.0
      %1062 = vmatprep.subr.mxu0 0.0
      %1063 = vmatpush1.msra.mxu0 0.0
      %1064 = vmatprep.subr.mxu0 0.0
      %1065 = vmatpush1.msra.mxu0 0.0
      %1066 = vmatprep.subr.mxu0 0.0
      %1067 = vmatpush1.msra.mxu0 0.0
      %1068 = vmatprep.subr.mxu0 0.0
      %1069 = vmatpush1.msra.mxu0 0.0
      %1070 = vmatprep.subr.mxu0 0.0
      %1071 = vmatpush1.msra.mxu0 0.0
      %1072 = vmatprep.subr.mxu0 0.0
      %1073 = vmatpush1.msra.mxu0 0.0
      %1074 = vmatprep.subr.mxu0 0.0
      %1075 = vmatpush1.msra.mxu0 0.0
      %1076 = vmatprep.subr.mxu0 0.0
      %1077 = vmatpush1.msra.mxu0 0.0
      %1078 = vmatprep.subr.mxu0 0.0
      %1079 = vmatpush1.msra.mxu0 0.0
      %1080 = vmatprep.subr.mxu0 0.0
      %1081 = vmatpush1.msra.mxu0 0.0
      %1082 = vmatprep.subr.mxu0 0.0
      %1083 = vmatpush1.msra.mxu0 0.0
      %1084 = vmatprep.subr.mxu0 0.0
      %1085 = vmatpush1.msra.mxu0 0.0
      %1086 = vmatprep.subr.mxu0 %v1054
      %1087 = vmatpush1.msra.mxu0 %v1051
      %1088 = vmatprep.subr.mxu0 0.0
      %1089 = vmatpush2.msra.mxu0 0.0
      %1090 = vmatprep.subr.mxu0 0.0
      %1091 = vmatpush2.msra.mxu0 0.0
      %1092 = vmatprep.subr.mxu0 0.0
      %1093 = vmatpush2.msra.mxu0 0.0
      %1094 = vmatprep.subr.mxu0 0.0
      %1095 = vmatpush2.msra.mxu0 0.0
      %1096 = vmatprep.subr.mxu0 0.0
      %1097 = vmatpush2.msra.mxu0 0.0
      %1098 = vmatprep.subr.mxu0 0.0
      %1099 = vmatpush2.msra.mxu0 0.0
      %1100 = vmatprep.subr.mxu0 0.0
      %1101 = vmatpush2.msra.mxu0 0.0
      %1102 = vmatprep.subr.mxu0 0.0
      %1103 = vmatpush2.msra.mxu0 0.0
      %1104 = vmatprep.subr.mxu0 0.0
      %1105 = vmatpush2.msra.mxu0 0.0
      %1106 = vmatprep.subr.mxu0 0.0
      %1107 = vmatpush2.msra.mxu0 0.0
      %1108 = vmatprep.subr.mxu0 0.0
      %1109 = vmatpush2.msra.mxu0 0.0
      %1110 = vmatprep.subr.mxu0 0.0
      %1111 = vmatpush2.msra.mxu0 0.0
      %1112 = vmatprep.subr.mxu0 0.0
      %1113 = vmatpush2.msra.mxu0 0.0
      %1114 = vmatprep.subr.mxu0 0.0
      %1115 = vmatpush2.msra.mxu0 0.0
      %1116 = vmatprep.subr.mxu0 0.0
      %1117 = vmatpush2.msra.mxu0 0.0
      %1118 = vmatprep.subr.mxu0 0.0
      %1119 = vmatpush2.msra.mxu0 0.0
      %1120 = vmatprep.mubr.f32.mxu0 0.0
      %1121 = vmatmul.mubr.f32.gmra.mxu0 %v955
      %v1122 = vpop.f32.mrf.mxu0
      %v1123 = vadd.f32 0.0, %v1122
      %v1124 = vpop.f32.mrf.mxu0
      %v1125 = vadd.f32 0.0, %v1124
      %1126 = vmatprep.mubr.f32.mxu0 0.0
      %1127 = vmatmul.mubr.f32.gmra.mxu0 %v958
      %v1128 = vpop.f32.mrf.mxu0
      %v1129 = vadd.f32 0.0, %v1128
      %v1130 = vpop.f32.mrf.mxu0
      %v1131 = vadd.f32 0.0, %v1130
      %1132 = vmatprep.mubr.f32.mxu0 0.0
      %1133 = vmatmul.mubr.f32.gmra.mxu0 %v961
      %v1134 = vpop.f32.mrf.mxu0
      %v1135 = vadd.f32 0.0, %v1134
      %v1136 = vpop.f32.mrf.mxu0
      %v1137 = vadd.f32 0.0, %v1136
      %1138 = vmatprep.mubr.f32.mxu0 0.0
      %1139 = vmatmul.mubr.f32.gmra.mxu0 %v964
      %v1140 = vpop.f32.mrf.mxu0
      %v1141 = vadd.f32 0.0, %v1140
      %v1142 = vpop.f32.mrf.mxu0
      %v1143 = vadd.f32 0.0, %v1142
      %1144 = vmatprep.mubr.f32.mxu0 0.0
      %1145 = vmatmul.mubr.f32.gmra.mxu0 %v967
      %v1146 = vpop.f32.mrf.mxu0
      %v1147 = vadd.f32 0.0, %v1146
      %v1148 = vpop.f32.mrf.mxu0
      %v1149 = vadd.f32 0.0, %v1148
      %1150 = vmatprep.mubr.f32.mxu0 0.0
      %1151 = vmatmul.mubr.f32.gmra.mxu0 %v970
      %v1152 = vpop.f32.mrf.mxu0
      %v1153 = vadd.f32 0.0, %v1152
      %v1154 = vpop.f32.mrf.mxu0
      %v1155 = vadd.f32 0.0, %v1154
      %1156 = vmatprep.mubr.f32.mxu0 0.0
      %1157 = vmatmul.mubr.f32.gmra.mxu0 %v973
      %v1158 = vpop.f32.mrf.mxu0
      %v1159 = vadd.f32 0.0, %v1158
      %v1160 = vpop.f32.mrf.mxu0
      %v1161 = vadd.f32 0.0, %v1160
      %1162 = vmatprep.mubr.f32.mxu0 0.0
      %1163 = vmatmul.mubr.f32.gmra.mxu0 %v976
      %v1164 = vpop.f32.mrf.mxu0
      %v1165 = vadd.f32 0.0, %v1164
      %v1166 = vpop.f32.mrf.mxu0
      %v1167 = vadd.f32 0.0, %v1166
      %1168 = vmatprep.mubr.f32.mxu0 0.0
      %1169 = vmatmul.mubr.f32.gmra.mxu0 %v979
      %v1170 = vpop.f32.mrf.mxu0
      %v1171 = vadd.f32 0.0, %v1170
      %v1172 = vpop.f32.mrf.mxu0
      %v1173 = vadd.f32 0.0, %v1172
      %1174 = vmatprep.mubr.f32.mxu0 0.0
      %1175 = vmatmul.mubr.f32.gmra.mxu0 %v982
      %v1176 = vpop.f32.mrf.mxu0
      %v1177 = vadd.f32 0.0, %v1176
      %v1178 = vpop.f32.mrf.mxu0
      %v1179 = vadd.f32 0.0, %v1178
      %1180 = vmatprep.mubr.f32.mxu0 0.0
      %1181 = vmatmul.mubr.f32.gmra.mxu0 %v985
      %v1182 = vpop.f32.mrf.mxu0
      %v1183 = vadd.f32 0.0, %v1182
      %v1184 = vpop.f32.mrf.mxu0
      %v1185 = vadd.f32 0.0, %v1184
      %1186 = vmatprep.mubr.f32.mxu0 0.0
      %1187 = vmatmul.mubr.f32.gmra.mxu0 %v988
      %v1188 = vpop.f32.mrf.mxu0
      %v1189 = vadd.f32 0.0, %v1188
      %v1190 = vpop.f32.mrf.mxu0
      %v1191 = vadd.f32 0.0, %v1190
      %1192 = vmatprep.mubr.f32.mxu0 0.0
      %1193 = vmatmul.mubr.f32.gmra.mxu0 %v991
      %v1194 = vpop.f32.mrf.mxu0
      %v1195 = vadd.f32 0.0, %v1194
      %v1196 = vpop.f32.mrf.mxu0
      %v1197 = vadd.f32 0.0, %v1196
      %1198 = vmatprep.mubr.f32.mxu0 0.0
      %1199 = vmatmul.mubr.f32.gmra.mxu0 %v994
      %v1200 = vpop.f32.mrf.mxu0
      %v1201 = vadd.f32 0.0, %v1200
      %v1202 = vpop.f32.mrf.mxu0
      %v1203 = vadd.f32 0.0, %v1202
      %1204 = vmatprep.mubr.f32.mxu0 0.0
      %1205 = vmatmul.mubr.f32.gmra.mxu0 %v997
      %v1206 = vpop.f32.mrf.mxu0
      %v1207 = vadd.f32 0.0, %v1206
      %v1208 = vpop.f32.mrf.mxu0
      %v1209 = vadd.f32 0.0, %v1208
      %1210 = vmatprep.mubr.f32.mxu0 0.0
      %1211 = vmatmul.mubr.f32.gmra.mxu0 %v1000
      %v1212 = vpop.f32.mrf.mxu0
      %v1213 = vadd.f32 0.0, %v1212
      %v1214 = vpop.f32.mrf.mxu0
      %v1215 = vadd.f32 0.0, %v1214
      %1216 = vmatprep.mubr.f32.mxu0 0.0
      %1217 = vmatmul.mubr.f32.gmra.mxu0 %v1003
      %v1218 = vpop.f32.mrf.mxu0
      %v1219 = vadd.f32 0.0, %v1218
      %v1220 = vpop.f32.mrf.mxu0
      %v1221 = vadd.f32 0.0, %v1220
      %1222 = vmatprep.mubr.f32.mxu0 0.0
      %1223 = vmatmul.mubr.f32.gmra.mxu0 %v1006
      %v1224 = vpop.f32.mrf.mxu0
      %v1225 = vadd.f32 0.0, %v1224
      %v1226 = vpop.f32.mrf.mxu0
      %v1227 = vadd.f32 0.0, %v1226
      %1228 = vmatprep.mubr.f32.mxu0 0.0
      %1229 = vmatmul.mubr.f32.gmra.mxu0 %v1009
      %v1230 = vpop.f32.mrf.mxu0
      %v1231 = vadd.f32 0.0, %v1230
      %v1232 = vpop.f32.mrf.mxu0
      %v1233 = vadd.f32 0.0, %v1232
      %1234 = vmatprep.mubr.f32.mxu0 0.0
      %1235 = vmatmul.mubr.f32.gmra.mxu0 %v1012
      %v1236 = vpop.f32.mrf.mxu0
      %v1237 = vadd.f32 0.0, %v1236
      %v1238 = vpop.f32.mrf.mxu0
      %v1239 = vadd.f32 0.0, %v1238
      %1240 = vmatprep.mubr.f32.mxu0 0.0
      %1241 = vmatmul.mubr.f32.gmra.mxu0 %v1015
      %v1242 = vpop.f32.mrf.mxu0
      %v1243 = vadd.f32 0.0, %v1242
      %v1244 = vpop.f32.mrf.mxu0
      %v1245 = vadd.f32 0.0, %v1244
      %1246 = vmatprep.mubr.f32.mxu0 0.0
      %1247 = vmatmul.mubr.f32.gmra.mxu0 %v1018
      %v1248 = vpop.f32.mrf.mxu0
      %v1249 = vadd.f32 0.0, %v1248
      %v1250 = vpop.f32.mrf.mxu0
      %v1251 = vadd.f32 0.0, %v1250
      %1252 = vmatprep.mubr.f32.mxu0 0.0
      %1253 = vmatmul.mubr.f32.gmra.mxu0 %v1021
      %v1254 = vpop.f32.mrf.mxu0
      %v1255 = vadd.f32 0.0, %v1254
      %v1256 = vpop.f32.mrf.mxu0
      %v1257 = vadd.f32 0.0, %v1256
      %1258 = vmatprep.mubr.f32.mxu0 0.0
      %1259 = vmatmul.mubr.f32.gmra.mxu0 %v1024
      %v1260 = vpop.f32.mrf.mxu0
      %v1261 = vadd.f32 0.0, %v1260
      %v1262 = vpop.f32.mrf.mxu0
      %v1263 = vadd.f32 0.0, %v1262
      %1264 = vmatprep.mubr.f32.mxu0 0.0
      %1265 = vmatmul.mubr.f32.gmra.mxu0 %v1027
      %v1266 = vpop.f32.mrf.mxu0
      %v1267 = vadd.f32 0.0, %v1266
      %v1268 = vpop.f32.mrf.mxu0
      %v1269 = vadd.f32 0.0, %v1268
      %1270 = vmatprep.mubr.f32.mxu0 0.0
      %1271 = vmatmul.mubr.f32.gmra.mxu0 %v1030
      %v1272 = vpop.f32.mrf.mxu0
      %v1273 = vadd.f32 0.0, %v1272
      %v1274 = vpop.f32.mrf.mxu0
      %v1275 = vadd.f32 0.0, %v1274
      %1276 = vmatprep.mubr.f32.mxu0 0.0
      %1277 = vmatmul.mubr.f32.gmra.mxu0 %v1033
      %v1278 = vpop.f32.mrf.mxu0
      %v1279 = vadd.f32 0.0, %v1278
      %v1280 = vpop.f32.mrf.mxu0
      %v1281 = vadd.f32 0.0, %v1280
      %1282 = vmatprep.mubr.f32.mxu0 0.0
      %1283 = vmatmul.mubr.f32.gmra.mxu0 %v1036
      %v1284 = vpop.f32.mrf.mxu0
      %v1285 = vadd.f32 0.0, %v1284
      %v1286 = vpop.f32.mrf.mxu0
      %v1287 = vadd.f32 0.0, %v1286
      %1288 = vmatprep.mubr.f32.mxu0 0.0
      %1289 = vmatmul.mubr.f32.gmra.mxu0 %v1039
      %v1290 = vpop.f32.mrf.mxu0
      %v1291 = vadd.f32 0.0, %v1290
      %v1292 = vpop.f32.mrf.mxu0
      %v1293 = vadd.f32 0.0, %v1292
      %1294 = vmatprep.mubr.f32.mxu0 0.0
      %1295 = vmatmul.mubr.f32.gmra.mxu0 %v1042
      %v1296 = vpop.f32.mrf.mxu0
      %v1297 = vadd.f32 0.0, %v1296
      %v1298 = vpop.f32.mrf.mxu0
      %v1299 = vadd.f32 0.0, %v1298
      %1300 = vmatprep.mubr.f32.mxu0 0.0
      %1301 = vmatmul.mubr.f32.gmra.mxu0 %v1045
      %v1302 = vpop.f32.mrf.mxu0
      %v1303 = vadd.f32 0.0, %v1302
      %v1304 = vpop.f32.mrf.mxu0
      %v1305 = vadd.f32 0.0, %v1304
      %1306 = vmatprep.mubr.f32.mxu0 0.0
      %1307 = vmatmul.mubr.f32.gmra.mxu0 %v1048
      %v1308 = vpop.f32.mrf.mxu0
      %v1309 = vadd.f32 0.0, %v1308
      %v1310 = vpop.f32.mrf.mxu0
      %v1311 = vadd.f32 0.0, %v1310
      %1312 = vdwg.mxu0
      %v1313 = vmul.f32 %v1123, 2.0
      %v1314 = vmul.f32 %v1125, 2.0
      %v1315 = vmul.f32 %v1129, 2.0
      %v1316 = vmul.f32 %v1131, 2.0
      %v1317 = vmul.f32 %v1135, 2.0
      %v1318 = vmul.f32 %v1137, 2.0
      %v1319 = vmul.f32 %v1141, 2.0
      %v1320 = vmul.f32 %v1143, 2.0
      %v1321 = vmul.f32 %v1147, 2.0
      %v1322 = vmul.f32 %v1149, 2.0
      %v1323 = vmul.f32 %v1153, 2.0
      %v1324 = vmul.f32 %v1155, 2.0
      %v1325 = vmul.f32 %v1159, 2.0
      %v1326 = vmul.f32 %v1161, 2.0
      %v1327 = vmul.f32 %v1165, 2.0
      %v1328 = vmul.f32 %v1167, 2.0
      %v1329 = vmul.f32 %v1171, 2.0
      %v1330 = vmul.f32 %v1173, 2.0
      %v1331 = vmul.f32 %v1177, 2.0
      %v1332 = vmul.f32 %v1179, 2.0
      %v1333 = vmul.f32 %v1183, 2.0
      %v1334 = vmul.f32 %v1185, 2.0
      %v1335 = vmul.f32 %v1189, 2.0
      %v1336 = vmul.f32 %v1191, 2.0
      %v1337 = vmul.f32 %v1195, 2.0
      %v1338 = vmul.f32 %v1197, 2.0
      %v1339 = vmul.f32 %v1201, 2.0
      %v1340 = vmul.f32 %v1203, 2.0
      %v1341 = vmul.f32 %v1207, 2.0
      %v1342 = vmul.f32 %v1209, 2.0
      %v1343 = vmul.f32 %v1213, 2.0
      %v1344 = vmul.f32 %v1215, 2.0
      %v1345 = vmul.f32 %v1219, 2.0
      %v1346 = vmul.f32 %v1221, 2.0
      %v1347 = vmul.f32 %v1225, 2.0
      %v1348 = vmul.f32 %v1227, 2.0
      %v1349 = vmul.f32 %v1231, 2.0
      %v1350 = vmul.f32 %v1233, 2.0
      %v1351 = vmul.f32 %v1237, 2.0
      %v1352 = vmul.f32 %v1239, 2.0
      %v1353 = vmul.f32 %v1243, 2.0
      %v1354 = vmul.f32 %v1245, 2.0
      %v1355 = vmul.f32 %v1249, 2.0
      %v1356 = vmul.f32 %v1251, 2.0
      %v1357 = vmul.f32 %v1255, 2.0
      %v1358 = vmul.f32 %v1257, 2.0
      %v1359 = vmul.f32 %v1261, 2.0
      %v1360 = vmul.f32 %v1263, 2.0
      %v1361 = vmul.f32 %v1267, 2.0
      %v1362 = vmul.f32 %v1269, 2.0
      %v1363 = vmul.f32 %v1273, 2.0
      %v1364 = vmul.f32 %v1275, 2.0
      %v1365 = vmul.f32 %v1279, 2.0
      %v1366 = vmul.f32 %v1281, 2.0
      %v1367 = vmul.f32 %v1285, 2.0
      %v1368 = vmul.f32 %v1287, 2.0
      %v1369 = vmul.f32 %v1291, 2.0
      %v1370 = vmul.f32 %v1293, 2.0
      %v1371 = vmul.f32 %v1297, 2.0
      %v1372 = vmul.f32 %v1299, 2.0
      %v1373 = vmul.f32 %v1303, 2.0
      %v1374 = vmul.f32 %v1305, 2.0
      %v1375 = vmul.f32 %v1309, 2.0
      %v1376 = vmul.f32 %v1311, 2.0
      %v1377 = vsub.f32 %v582, %v1313
      %v1378 = vsub.f32 %v589, %v1314
      %v1379 = vsub.f32 %v582, %v1315
      %v1380 = vsub.f32 %v589, %v1316
      %v1381 = vsub.f32 %v582, %v1317
      %v1382 = vsub.f32 %v589, %v1318
      %v1383 = vsub.f32 %v582, %v1319
      %v1384 = vsub.f32 %v589, %v1320
      %v1385 = vsub.f32 %v582, %v1321
      %v1386 = vsub.f32 %v589, %v1322
      %v1387 = vsub.f32 %v582, %v1323
      %v1388 = vsub.f32 %v589, %v1324
      %v1389 = vsub.f32 %v582, %v1325
      %v1390 = vsub.f32 %v589, %v1326
      %v1391 = vsub.f32 %v582, %v1327
      %v1392 = vsub.f32 %v589, %v1328
      %v1393 = vsub.f32 %v582, %v1329
      %v1394 = vsub.f32 %v589, %v1330
      %v1395 = vsub.f32 %v582, %v1331
      %v1396 = vsub.f32 %v589, %v1332
      %v1397 = vsub.f32 %v582, %v1333
      %v1398 = vsub.f32 %v589, %v1334
      %v1399 = vsub.f32 %v582, %v1335
      %v1400 = vsub.f32 %v589, %v1336
      %v1401 = vsub.f32 %v582, %v1337
      %v1402 = vsub.f32 %v589, %v1338
      %v1403 = vsub.f32 %v582, %v1339
      %v1404 = vsub.f32 %v589, %v1340
      %v1405 = vsub.f32 %v582, %v1341
      %v1406 = vsub.f32 %v589, %v1342
      %v1407 = vsub.f32 %v582, %v1343
      %v1408 = vsub.f32 %v589, %v1344
      %v1409 = vsub.f32 %v582, %v1345
      %v1410 = vsub.f32 %v589, %v1346
      %v1411 = vsub.f32 %v582, %v1347
      %v1412 = vsub.f32 %v589, %v1348
      %v1413 = vsub.f32 %v582, %v1349
      %v1414 = vsub.f32 %v589, %v1350
      %v1415 = vsub.f32 %v582, %v1351
      %v1416 = vsub.f32 %v589, %v1352
      %v1417 = vsub.f32 %v582, %v1353
      %v1418 = vsub.f32 %v589, %v1354
      %v1419 = vsub.f32 %v582, %v1355
      %v1420 = vsub.f32 %v589, %v1356
      %v1421 = vsub.f32 %v582, %v1357
      %v1422 = vsub.f32 %v589, %v1358
      %v1423 = vsub.f32 %v582, %v1359
      %v1424 = vsub.f32 %v589, %v1360
      %v1425 = vsub.f32 %v582, %v1361
      %v1426 = vsub.f32 %v589, %v1362
      %v1427 = vsub.f32 %v582, %v1363
      %v1428 = vsub.f32 %v589, %v1364
      %v1429 = vsub.f32 %v582, %v1365
      %v1430 = vsub.f32 %v589, %v1366
      %v1431 = vsub.f32 %v582, %v1367
      %v1432 = vsub.f32 %v589, %v1368
      %v1433 = vsub.f32 %v582, %v1369
      %v1434 = vsub.f32 %v589, %v1370
      %v1435 = vsub.f32 %v582, %v1371
      %v1436 = vsub.f32 %v589, %v1372
      %v1437 = vsub.f32 %v582, %v1373
      %v1438 = vsub.f32 %v589, %v1374
      %v1439 = vsub.f32 %v582, %v1375
      %v1440 = vsub.f32 %v589, %v1376
      %v1441 = vmul.f32 %v1377, -0.5
      %v1442 = vmul.f32 %v1378, -0.5
      %v1443 = vmul.f32 %v1379, -0.5
      %v1444 = vmul.f32 %v1380, -0.5
      %v1445 = vmul.f32 %v1381, -0.5
      %v1446 = vmul.f32 %v1382, -0.5
      %v1447 = vmul.f32 %v1383, -0.5
      %v1448 = vmul.f32 %v1384, -0.5
      %v1449 = vmul.f32 %v1385, -0.5
      %v1450 = vmul.f32 %v1386, -0.5
      %v1451 = vmul.f32 %v1387, -0.5
      %v1452 = vmul.f32 %v1388, -0.5
      %v1453 = vmul.f32 %v1389, -0.5
      %v1454 = vmul.f32 %v1390, -0.5
      %v1455 = vmul.f32 %v1391, -0.5
      %v1456 = vmul.f32 %v1392, -0.5
      %v1457 = vmul.f32 %v1393, -0.5
      %v1458 = vmul.f32 %v1394, -0.5
      %v1459 = vmul.f32 %v1395, -0.5
      %v1460 = vmul.f32 %v1396, -0.5
      %v1461 = vmul.f32 %v1397, -0.5
      %v1462 = vmul.f32 %v1398, -0.5
      %v1463 = vmul.f32 %v1399, -0.5
      %v1464 = vmul.f32 %v1400, -0.5
      %v1465 = vmul.f32 %v1401, -0.5
      %v1466 = vmul.f32 %v1402, -0.5
      %v1467 = vmul.f32 %v1403, -0.5
      %v1468 = vmul.f32 %v1404, -0.5
      %v1469 = vmul.f32 %v1405, -0.5
      %v1470 = vmul.f32 %v1406, -0.5
      %v1471 = vmul.f32 %v1407, -0.5
      %v1472 = vmul.f32 %v1408, -0.5
      %v1473 = vmul.f32 %v1409, -0.5
      %v1474 = vmul.f32 %v1410, -0.5
      %v1475 = vmul.f32 %v1411, -0.5
      %v1476 = vmul.f32 %v1412, -0.5
      %v1477 = vmul.f32 %v1413, -0.5
      %v1478 = vmul.f32 %v1414, -0.5
      %v1479 = vmul.f32 %v1415, -0.5
      %v1480 = vmul.f32 %v1416, -0.5
      %v1481 = vmul.f32 %v1417, -0.5
      %v1482 = vmul.f32 %v1418, -0.5
      %v1483 = vmul.f32 %v1419, -0.5
      %v1484 = vmul.f32 %v1420, -0.5
      %v1485 = vmul.f32 %v1421, -0.5
      %v1486 = vmul.f32 %v1422, -0.5
      %v1487 = vmul.f32 %v1423, -0.5
      %v1488 = vmul.f32 %v1424, -0.5
      %v1489 = vmul.f32 %v1425, -0.5
      %v1490 = vmul.f32 %v1426, -0.5
      %v1491 = vmul.f32 %v1427, -0.5
      %v1492 = vmul.f32 %v1428, -0.5
      %v1493 = vmul.f32 %v1429, -0.5
      %v1494 = vmul.f32 %v1430, -0.5
      %v1495 = vmul.f32 %v1431, -0.5
      %v1496 = vmul.f32 %v1432, -0.5
      %v1497 = vmul.f32 %v1433, -0.5
      %v1498 = vmul.f32 %v1434, -0.5
      %v1499 = vmul.f32 %v1435, -0.5
      %v1500 = vmul.f32 %v1436, -0.5
      %v1501 = vmul.f32 %v1437, -0.5
      %v1502 = vmul.f32 %v1438, -0.5
      %v1503 = vmul.f32 %v1439, -0.5
      %v1504 = vmul.f32 %v1440, -0.5
      %v1505 = vmax.f32 %v1441, %v1442
      %1506 = vmax.xlane.f32.xlu0 %v1505
      %v1507 = vpop.xlane.xlu0 %1506
      %v1508 = vmax.f32 %v1443, %v1444
      %1509 = vmax.xlane.f32.xlu0 %v1508
      %v1510 = vpop.xlane.xlu0 %1509
      %v1511 = vmax.f32 %v1445, %v1446
      %1512 = vmax.xlane.f32.xlu0 %v1511
      %v1513 = vpop.xlane.xlu0 %1512
      %v1514 = vmax.f32 %v1447, %v1448
      %1515 = vmax.xlane.f32.xlu0 %v1514
      %v1516 = vpop.xlane.xlu0 %1515
      %v1517 = vmax.f32 %v1449, %v1450
      %1518 = vmax.xlane.f32.xlu0 %v1517
      %v1519 = vpop.xlane.xlu0 %1518
      %v1520 = vmax.f32 %v1451, %v1452
      %1521 = vmax.xlane.f32.xlu0 %v1520
      %v1522 = vpop.xlane.xlu0 %1521
      %v1523 = vmax.f32 %v1453, %v1454
      %1524 = vmax.xlane.f32.xlu0 %v1523
      %v1525 = vpop.xlane.xlu0 %1524
      %v1526 = vmax.f32 %v1455, %v1456
      %1527 = vmax.xlane.f32.xlu0 %v1526
      %v1528 = vpop.xlane.xlu0 %1527
      %v1529 = vmax.f32 %v1457, %v1458
      %1530 = vmax.xlane.f32.xlu0 %v1529
      %v1531 = vpop.xlane.xlu0 %1530
      %v1532 = vmax.f32 %v1459, %v1460
      %1533 = vmax.xlane.f32.xlu0 %v1532
      %v1534 = vpop.xlane.xlu0 %1533
      %v1535 = vmax.f32 %v1461, %v1462
      %1536 = vmax.xlane.f32.xlu0 %v1535
      %v1537 = vpop.xlane.xlu0 %1536
      %v1538 = vmax.f32 %v1463, %v1464
      %1539 = vmax.xlane.f32.xlu0 %v1538
      %v1540 = vpop.xlane.xlu0 %1539
      %v1541 = vmax.f32 %v1465, %v1466
      %1542 = vmax.xlane.f32.xlu0 %v1541
      %v1543 = vpop.xlane.xlu0 %1542
      %v1544 = vmax.f32 %v1467, %v1468
      %1545 = vmax.xlane.f32.xlu0 %v1544
      %v1546 = vpop.xlane.xlu0 %1545
      %v1547 = vmax.f32 %v1469, %v1470
      %1548 = vmax.xlane.f32.xlu0 %v1547
      %v1549 = vpop.xlane.xlu0 %1548
      %v1550 = vmax.f32 %v1471, %v1472
      %1551 = vmax.xlane.f32.xlu0 %v1550
      %v1552 = vpop.xlane.xlu0 %1551
      %v1553 = vmax.f32 %v1473, %v1474
      %1554 = vmax.xlane.f32.xlu0 %v1553
      %v1555 = vpop.xlane.xlu0 %1554
      %v1556 = vmax.f32 %v1475, %v1476
      %1557 = vmax.xlane.f32.xlu0 %v1556
      %v1558 = vpop.xlane.xlu0 %1557
      %v1559 = vmax.f32 %v1477, %v1478
      %1560 = vmax.xlane.f32.xlu0 %v1559
      %v1561 = vpop.xlane.xlu0 %1560
      %v1562 = vmax.f32 %v1479, %v1480
      %1563 = vmax.xlane.f32.xlu0 %v1562
      %v1564 = vpop.xlane.xlu0 %1563
      %v1565 = vmax.f32 %v1481, %v1482
      %1566 = vmax.xlane.f32.xlu0 %v1565
      %v1567 = vpop.xlane.xlu0 %1566
      %v1568 = vmax.f32 %v1483, %v1484
      %1569 = vmax.xlane.f32.xlu0 %v1568
      %v1570 = vpop.xlane.xlu0 %1569
      %v1571 = vmax.f32 %v1485, %v1486
      %1572 = vmax.xlane.f32.xlu0 %v1571
      %v1573 = vpop.xlane.xlu0 %1572
      %v1574 = vmax.f32 %v1487, %v1488
      %1575 = vmax.xlane.f32.xlu0 %v1574
      %v1576 = vpop.xlane.xlu0 %1575
      %v1577 = vmax.f32 %v1489, %v1490
      %1578 = vmax.xlane.f32.xlu0 %v1577
      %v1579 = vpop.xlane.xlu0 %1578
      %v1580 = vmax.f32 %v1491, %v1492
      %1581 = vmax.xlane.f32.xlu0 %v1580
      %v1582 = vpop.xlane.xlu0 %1581
      %v1583 = vmax.f32 %v1493, %v1494
      %1584 = vmax.xlane.f32.xlu0 %v1583
      %v1585 = vpop.xlane.xlu0 %1584
      %v1586 = vmax.f32 %v1495, %v1496
      %1587 = vmax.xlane.f32.xlu0 %v1586
      %v1588 = vpop.xlane.xlu0 %1587
      %v1589 = vmax.f32 %v1497, %v1498
      %1590 = vmax.xlane.f32.xlu0 %v1589
      %v1591 = vpop.xlane.xlu0 %1590
      %v1592 = vmax.f32 %v1499, %v1500
      %1593 = vmax.xlane.f32.xlu0 %v1592
      %v1594 = vpop.xlane.xlu0 %1593
      %v1595 = vmax.f32 %v1501, %v1502
      %1596 = vmax.xlane.f32.xlu0 %v1595
      %v1597 = vpop.xlane.xlu0 %1596
      %v1598 = vmax.f32 %v1503, %v1504
      %1599 = vmax.xlane.f32.xlu0 %v1598
      %v1600 = vpop.xlane.xlu0 %1599
      %v1601 = vsub.f32 %v1441, %v1507
      %v1602 = vsub.f32 %v1442, %v1507
      %v1603 = vsub.f32 %v1443, %v1510
      %v1604 = vsub.f32 %v1444, %v1510
      %v1605 = vsub.f32 %v1445, %v1513
      %v1606 = vsub.f32 %v1446, %v1513
      %v1607 = vsub.f32 %v1447, %v1516
      %v1608 = vsub.f32 %v1448, %v1516
      %v1609 = vsub.f32 %v1449, %v1519
      %v1610 = vsub.f32 %v1450, %v1519
      %v1611 = vsub.f32 %v1451, %v1522
      %v1612 = vsub.f32 %v1452, %v1522
      %v1613 = vsub.f32 %v1453, %v1525
      %v1614 = vsub.f32 %v1454, %v1525
      %v1615 = vsub.f32 %v1455, %v1528
      %v1616 = vsub.f32 %v1456, %v1528
      %v1617 = vsub.f32 %v1457, %v1531
      %v1618 = vsub.f32 %v1458, %v1531
      %v1619 = vsub.f32 %v1459, %v1534
      %v1620 = vsub.f32 %v1460, %v1534
      %v1621 = vsub.f32 %v1461, %v1537
      %v1622 = vsub.f32 %v1462, %v1537
      %v1623 = vsub.f32 %v1463, %v1540
      %v1624 = vsub.f32 %v1464, %v1540
      %v1625 = vsub.f32 %v1465, %v1543
      %v1626 = vsub.f32 %v1466, %v1543
      %v1627 = vsub.f32 %v1467, %v1546
      %v1628 = vsub.f32 %v1468, %v1546
      %v1629 = vsub.f32 %v1469, %v1549
      %v1630 = vsub.f32 %v1470, %v1549
      %v1631 = vsub.f32 %v1471, %v1552
      %v1632 = vsub.f32 %v1472, %v1552
      %v1633 = vsub.f32 %v1473, %v1555
      %v1634 = vsub.f32 %v1474, %v1555
      %v1635 = vsub.f32 %v1475, %v1558
      %v1636 = vsub.f32 %v1476, %v1558
      %v1637 = vsub.f32 %v1477, %v1561
      %v1638 = vsub.f32 %v1478, %v1561
      %v1639 = vsub.f32 %v1479, %v1564
      %v1640 = vsub.f32 %v1480, %v1564
      %v1641 = vsub.f32 %v1481, %v1567
      %v1642 = vsub.f32 %v1482, %v1567
      %v1643 = vsub.f32 %v1483, %v1570
      %v1644 = vsub.f32 %v1484, %v1570
      %v1645 = vsub.f32 %v1485, %v1573
      %v1646 = vsub.f32 %v1486, %v1573
      %v1647 = vsub.f32 %v1487, %v1576
      %v1648 = vsub.f32 %v1488, %v1576
      %v1649 = vsub.f32 %v1489, %v1579
      %v1650 = vsub.f32 %v1490, %v1579
      %v1651 = vsub.f32 %v1491, %v1582
      %v1652 = vsub.f32 %v1492, %v1582
      %v1653 = vsub.f32 %v1493, %v1585
      %v1654 = vsub.f32 %v1494, %v1585
      %v1655 = vsub.f32 %v1495, %v1588
      %v1656 = vsub.f32 %v1496, %v1588
      %v1657 = vsub.f32 %v1497, %v1591
      %v1658 = vsub.f32 %v1498, %v1591
      %v1659 = vsub.f32 %v1499, %v1594
      %v1660 = vsub.f32 %v1500, %v1594
      %v1661 = vsub.f32 %v1501, %v1597
      %v1662 = vsub.f32 %v1502, %v1597
      %v1663 = vsub.f32 %v1503, %v1600
      %v1664 = vsub.f32 %v1504, %v1600
      %v1665 = vmul.f32 %v1601, 1.442695
      %v1666 = vpow.pop %v1665
      %v1667 = vmul.f32 %v1602, 1.442695
      %v1668 = vpow.pop %v1667
      %v1669 = vmul.f32 %v1603, 1.442695
      %v1670 = vpow.pop %v1669
      %v1671 = vmul.f32 %v1604, 1.442695
      %v1672 = vpow.pop %v1671
      %v1673 = vmul.f32 %v1605, 1.442695
      %v1674 = vpow.pop %v1673
      %v1675 = vmul.f32 %v1606, 1.442695
      %v1676 = vpow.pop %v1675
      %v1677 = vmul.f32 %v1607, 1.442695
      %v1678 = vpow.pop %v1677
      %v1679 = vmul.f32 %v1608, 1.442695
      %v1680 = vpow.pop %v1679
      %v1681 = vmul.f32 %v1609, 1.442695
      %v1682 = vpow.pop %v1681
      %v1683 = vmul.f32 %v1610, 1.442695
      %v1684 = vpow.pop %v1683
      %v1685 = vmul.f32 %v1611, 1.442695
      %v1686 = vpow.pop %v1685
      %v1687 = vmul.f32 %v1612, 1.442695
      %v1688 = vpow.pop %v1687
      %v1689 = vmul.f32 %v1613, 1.442695
      %v1690 = vpow.pop %v1689
      %v1691 = vmul.f32 %v1614, 1.442695
      %v1692 = vpow.pop %v1691
      %v1693 = vmul.f32 %v1615, 1.442695
      %v1694 = vpow.pop %v1693
      %v1695 = vmul.f32 %v1616, 1.442695
      %v1696 = vpow.pop %v1695
      %v1697 = vmul.f32 %v1617, 1.442695
      %v1698 = vpow.pop %v1697
      %v1699 = vmul.f32 %v1618, 1.442695
      %v1700 = vpow.pop %v1699
      %v1701 = vmul.f32 %v1619, 1.442695
      %v1702 = vpow.pop %v1701
      %v1703 = vmul.f32 %v1620, 1.442695
      %v1704 = vpow.pop %v1703
      %v1705 = vmul.f32 %v1621, 1.442695
      %v1706 = vpow.pop %v1705
      %v1707 = vmul.f32 %v1622, 1.442695
      %v1708 = vpow.pop %v1707
      %v1709 = vmul.f32 %v1623, 1.442695
      %v1710 = vpow.pop %v1709
      %v1711 = vmul.f32 %v1624, 1.442695
      %v1712 = vpow.pop %v1711
      %v1713 = vmul.f32 %v1625, 1.442695
      %v1714 = vpow.pop %v1713
      %v1715 = vmul.f32 %v1626, 1.442695
      %v1716 = vpow.pop %v1715
      %v1717 = vmul.f32 %v1627, 1.442695
      %v1718 = vpow.pop %v1717
      %v1719 = vmul.f32 %v1628, 1.442695
      %v1720 = vpow.pop %v1719
      %v1721 = vmul.f32 %v1629, 1.442695
      %v1722 = vpow.pop %v1721
      %v1723 = vmul.f32 %v1630, 1.442695
      %v1724 = vpow.pop %v1723
      %v1725 = vmul.f32 %v1631, 1.442695
      %v1726 = vpow.pop %v1725
      %v1727 = vmul.f32 %v1632, 1.442695
      %v1728 = vpow.pop %v1727
      %v1729 = vmul.f32 %v1633, 1.442695
      %v1730 = vpow.pop %v1729
      %v1731 = vmul.f32 %v1634, 1.442695
      %v1732 = vpow.pop %v1731
      %v1733 = vmul.f32 %v1635, 1.442695
      %v1734 = vpow.pop %v1733
      %v1735 = vmul.f32 %v1636, 1.442695
      %v1736 = vpow.pop %v1735
      %v1737 = vmul.f32 %v1637, 1.442695
      %v1738 = vpow.pop %v1737
      %v1739 = vmul.f32 %v1638, 1.442695
      %v1740 = vpow.pop %v1739
      %v1741 = vmul.f32 %v1639, 1.442695
      %v1742 = vpow.pop %v1741
      %v1743 = vmul.f32 %v1640, 1.442695
      %v1744 = vpow.pop %v1743
      %v1745 = vmul.f32 %v1641, 1.442695
      %v1746 = vpow.pop %v1745
      %v1747 = vmul.f32 %v1642, 1.442695
      %v1748 = vpow.pop %v1747
      %v1749 = vmul.f32 %v1643, 1.442695
      %v1750 = vpow.pop %v1749
      %v1751 = vmul.f32 %v1644, 1.442695
      %v1752 = vpow.pop %v1751
      %v1753 = vmul.f32 %v1645, 1.442695
      %v1754 = vpow.pop %v1753
      %v1755 = vmul.f32 %v1646, 1.442695
      %v1756 = vpow.pop %v1755
      %v1757 = vmul.f32 %v1647, 1.442695
      %v1758 = vpow.pop %v1757
      %v1759 = vmul.f32 %v1648, 1.442695
      %v1760 = vpow.pop %v1759
      %v1761 = vmul.f32 %v1649, 1.442695
      %v1762 = vpow.pop %v1761
      %v1763 = vmul.f32 %v1650, 1.442695
      %v1764 = vpow.pop %v1763
      %v1765 = vmul.f32 %v1651, 1.442695
      %v1766 = vpow.pop %v1765
      %v1767 = vmul.f32 %v1652, 1.442695
      %v1768 = vpow.pop %v1767
      %v1769 = vmul.f32 %v1653, 1.442695
      %v1770 = vpow.pop %v1769
      %v1771 = vmul.f32 %v1654, 1.442695
      %v1772 = vpow.pop %v1771
      %v1773 = vmul.f32 %v1655, 1.442695
      %v1774 = vpow.pop %v1773
      %v1775 = vmul.f32 %v1656, 1.442695
      %v1776 = vpow.pop %v1775
      %v1777 = vmul.f32 %v1657, 1.442695
      %v1778 = vpow.pop %v1777
      %v1779 = vmul.f32 %v1658, 1.442695
      %v1780 = vpow.pop %v1779
      %v1781 = vmul.f32 %v1659, 1.442695
      %v1782 = vpow.pop %v1781
      %v1783 = vmul.f32 %v1660, 1.442695
      %v1784 = vpow.pop %v1783
      %v1785 = vmul.f32 %v1661, 1.442695
      %v1786 = vpow.pop %v1785
      %v1787 = vmul.f32 %v1662, 1.442695
      %v1788 = vpow.pop %v1787
      %v1789 = vmul.f32 %v1663, 1.442695
      %v1790 = vpow.pop %v1789
      %v1791 = vmul.f32 %v1664, 1.442695
      %v1792 = vpow.pop %v1791
      %v1793 = vadd.f32 %v1666, %v1668
      %1794 = vadd.xlane.f32.xlu0 %v1793
      %v1795 = vpop.xlane.xlu0 %1794
      %v1796 = vadd.f32 %v1670, %v1672
      %1797 = vadd.xlane.f32.xlu0 %v1796
      %v1798 = vpop.xlane.xlu0 %1797
      %v1799 = vadd.f32 %v1674, %v1676
      %1800 = vadd.xlane.f32.xlu0 %v1799
      %v1801 = vpop.xlane.xlu0 %1800
      %v1802 = vadd.f32 %v1678, %v1680
      %1803 = vadd.xlane.f32.xlu0 %v1802
      %v1804 = vpop.xlane.xlu0 %1803
      %v1805 = vadd.f32 %v1682, %v1684
      %1806 = vadd.xlane.f32.xlu0 %v1805
      %v1807 = vpop.xlane.xlu0 %1806
      %v1808 = vadd.f32 %v1686, %v1688
      %1809 = vadd.xlane.f32.xlu0 %v1808
      %v1810 = vpop.xlane.xlu0 %1809
      %v1811 = vadd.f32 %v1690, %v1692
      %1812 = vadd.xlane.f32.xlu0 %v1811
      %v1813 = vpop.xlane.xlu0 %1812
      %v1814 = vadd.f32 %v1694, %v1696
      %1815 = vadd.xlane.f32.xlu0 %v1814
      %v1816 = vpop.xlane.xlu0 %1815
      %v1817 = vadd.f32 %v1698, %v1700
      %1818 = vadd.xlane.f32.xlu0 %v1817
      %v1819 = vpop.xlane.xlu0 %1818
      %v1820 = vadd.f32 %v1702, %v1704
      %1821 = vadd.xlane.f32.xlu0 %v1820
      %v1822 = vpop.xlane.xlu0 %1821
      %v1823 = vadd.f32 %v1706, %v1708
      %1824 = vadd.xlane.f32.xlu0 %v1823
      %v1825 = vpop.xlane.xlu0 %1824
      %v1826 = vadd.f32 %v1710, %v1712
      %1827 = vadd.xlane.f32.xlu0 %v1826
      %v1828 = vpop.xlane.xlu0 %1827
      %v1829 = vadd.f32 %v1714, %v1716
      %1830 = vadd.xlane.f32.xlu0 %v1829
      %v1831 = vpop.xlane.xlu0 %1830
      %v1832 = vadd.f32 %v1718, %v1720
      %1833 = vadd.xlane.f32.xlu0 %v1832
      %v1834 = vpop.xlane.xlu0 %1833
      %v1835 = vadd.f32 %v1722, %v1724
      %1836 = vadd.xlane.f32.xlu0 %v1835
      %v1837 = vpop.xlane.xlu0 %1836
      %v1838 = vadd.f32 %v1726, %v1728
      %1839 = vadd.xlane.f32.xlu0 %v1838
      %v1840 = vpop.xlane.xlu0 %1839
      %v1841 = vadd.f32 %v1730, %v1732
      %1842 = vadd.xlane.f32.xlu0 %v1841
      %v1843 = vpop.xlane.xlu0 %1842
      %v1844 = vadd.f32 %v1734, %v1736
      %1845 = vadd.xlane.f32.xlu0 %v1844
      %v1846 = vpop.xlane.xlu0 %1845
      %v1847 = vadd.f32 %v1738, %v1740
      %1848 = vadd.xlane.f32.xlu0 %v1847
      %v1849 = vpop.xlane.xlu0 %1848
      %v1850 = vadd.f32 %v1742, %v1744
      %1851 = vadd.xlane.f32.xlu0 %v1850
      %v1852 = vpop.xlane.xlu0 %1851
      %v1853 = vadd.f32 %v1746, %v1748
      %1854 = vadd.xlane.f32.xlu0 %v1853
      %v1855 = vpop.xlane.xlu0 %1854
      %v1856 = vadd.f32 %v1750, %v1752
      %1857 = vadd.xlane.f32.xlu0 %v1856
      %v1858 = vpop.xlane.xlu0 %1857
      %v1859 = vadd.f32 %v1754, %v1756
      %1860 = vadd.xlane.f32.xlu0 %v1859
      %v1861 = vpop.xlane.xlu0 %1860
      %v1862 = vadd.f32 %v1758, %v1760
      %1863 = vadd.xlane.f32.xlu0 %v1862
      %v1864 = vpop.xlane.xlu0 %1863
      %v1865 = vadd.f32 %v1762, %v1764
      %1866 = vadd.xlane.f32.xlu0 %v1865
      %v1867 = vpop.xlane.xlu0 %1866
      %v1868 = vadd.f32 %v1766, %v1768
      %1869 = vadd.xlane.f32.xlu0 %v1868
      %v1870 = vpop.xlane.xlu0 %1869
      %v1871 = vadd.f32 %v1770, %v1772
      %1872 = vadd.xlane.f32.xlu0 %v1871
      %v1873 = vpop.xlane.xlu0 %1872
      %v1874 = vadd.f32 %v1774, %v1776
      %1875 = vadd.xlane.f32.xlu0 %v1874
      %v1876 = vpop.xlane.xlu0 %1875
      %v1877 = vadd.f32 %v1778, %v1780
      %1878 = vadd.xlane.f32.xlu0 %v1877
      %v1879 = vpop.xlane.xlu0 %1878
      %v1880 = vadd.f32 %v1782, %v1784
      %1881 = vadd.xlane.f32.xlu0 %v1880
      %v1882 = vpop.xlane.xlu0 %1881
      %v1883 = vadd.f32 %v1786, %v1788
      %1884 = vadd.xlane.f32.xlu0 %v1883
      %v1885 = vpop.xlane.xlu0 %1884
      %v1886 = vadd.f32 %v1790, %v1792
      %1887 = vadd.xlane.f32.xlu0 %v1886
      %v1888 = vpop.xlane.xlu0 %1887
      %v1889 = vld [vmem:[%s450] sm:$0xff]
      %v1890 = vld [vmem:[%s450 + $0x8] sm:$0xff]
      %v1891 = vld [vmem:[%s450 + $0x10] sm:$0xff]
      %v1892 = vld [vmem:[%s450 + $0x18] sm:$0xff]
      %v1893 = vld [vmem:[%s450 + $0x20] sm:$0xff]
      %v1894 = vld [vmem:[%s450 + $0x28] sm:$0xff]
      %v1895 = vld [vmem:[%s450 + $0x30] sm:$0xff]
      %v1896 = vld [vmem:[%s450 + $0x38] sm:$0xff]
      %v1897 = vld [vmem:[%s450 + $0x40] sm:$0xff]
      %v1898 = vld [vmem:[%s450 + $0x48] sm:$0xff]
      %v1899 = vld [vmem:[%s450 + $0x50] sm:$0xff]
      %v1900 = vld [vmem:[%s450 + $0x58] sm:$0xff]
      %v1901 = vld [vmem:[%s450 + $0x60] sm:$0xff]
      %v1902 = vld [vmem:[%s450 + $0x68] sm:$0xff]
      %v1903 = vld [vmem:[%s450 + $0x70] sm:$0xff]
      %v1904 = vld [vmem:[%s450 + $0x78] sm:$0xff]
      %v1905 = vld [vmem:[%s450 + $0x80] sm:$0xff]
      %v1906 = vld [vmem:[%s450 + $0x88] sm:$0xff]
      %v1907 = vld [vmem:[%s450 + $0x90] sm:$0xff]
      %v1908 = vld [vmem:[%s450 + $0x98] sm:$0xff]
      %v1909 = vld [vmem:[%s450 + $0xa0] sm:$0xff]
      %v1910 = vld [vmem:[%s450 + $0xa8] sm:$0xff]
      %v1911 = vld [vmem:[%s450 + $0xb0] sm:$0xff]
      %v1912 = vld [vmem:[%s450 + $0xb8] sm:$0xff]
      %v1913 = vld [vmem:[%s450 + $0xc0] sm:$0xff]
      %v1914 = vld [vmem:[%s450 + $0xc8] sm:$0xff]
      %v1915 = vld [vmem:[%s450 + $0xd0] sm:$0xff]
      %v1916 = vld [vmem:[%s450 + $0xd8] sm:$0xff]
      %v1917 = vld [vmem:[%s450 + $0xe0] sm:$0xff]
      %v1918 = vld [vmem:[%s450 + $0xe8] sm:$0xff]
      %v1919 = vld [vmem:[%s450 + $0xf0] sm:$0xff]
      %v1920 = vld [vmem:[%s450 + $0xf8] sm:$0xff]
      %1921 = vmatprep.subr.mxu0 0.0
      %1922 = vmatpush1.msra.mxu0 %v1904
      %1923 = vmatprep.subr.mxu0 0.0
      %1924 = vmatpush1.msra.mxu0 %v1903
      %1925 = vmatprep.subr.mxu0 0.0
      %1926 = vmatpush1.msra.mxu0 %v1902
      %1927 = vmatprep.subr.mxu0 0.0
      %1928 = vmatpush1.msra.mxu0 %v1901
      %1929 = vmatprep.subr.mxu0 0.0
      %1930 = vmatpush1.msra.mxu0 %v1900
      %1931 = vmatprep.subr.mxu0 0.0
      %1932 = vmatpush1.msra.mxu0 %v1899
      %1933 = vmatprep.subr.mxu0 0.0
      %1934 = vmatpush1.msra.mxu0 %v1898
      %1935 = vmatprep.subr.mxu0 0.0
      %1936 = vmatpush1.msra.mxu0 %v1897
      %1937 = vmatprep.subr.mxu0 0.0
      %1938 = vmatpush1.msra.mxu0 %v1896
      %1939 = vmatprep.subr.mxu0 0.0
      %1940 = vmatpush1.msra.mxu0 %v1895
      %1941 = vmatprep.subr.mxu0 0.0
      %1942 = vmatpush1.msra.mxu0 %v1894
      %1943 = vmatprep.subr.mxu0 0.0
      %1944 = vmatpush1.msra.mxu0 %v1893
      %1945 = vmatprep.subr.mxu0 0.0
      %1946 = vmatpush1.msra.mxu0 %v1892
      %1947 = vmatprep.subr.mxu0 0.0
      %1948 = vmatpush1.msra.mxu0 %v1891
      %1949 = vmatprep.subr.mxu0 0.0
      %1950 = vmatpush1.msra.mxu0 %v1890
      %1951 = vmatprep.subr.mxu0 0.0
      %1952 = vmatpush1.msra.mxu0 %v1889
      %1953 = vmatprep.subr.mxu0 0.0
      %1954 = vmatpush2.msra.mxu0 %v1920
      %1955 = vmatprep.subr.mxu0 0.0
      %1956 = vmatpush2.msra.mxu0 %v1919
      %1957 = vmatprep.subr.mxu0 0.0
      %1958 = vmatpush2.msra.mxu0 %v1918
      %1959 = vmatprep.subr.mxu0 0.0
      %1960 = vmatpush2.msra.mxu0 %v1917
      %1961 = vmatprep.subr.mxu0 0.0
      %1962 = vmatpush2.msra.mxu0 %v1916
      %1963 = vmatprep.subr.mxu0 0.0
      %1964 = vmatpush2.msra.mxu0 %v1915
      %1965 = vmatprep.subr.mxu0 0.0
      %1966 = vmatpush2.msra.mxu0 %v1914
      %1967 = vmatprep.subr.mxu0 0.0
      %1968 = vmatpush2.msra.mxu0 %v1913
      %1969 = vmatprep.subr.mxu0 0.0
      %1970 = vmatpush2.msra.mxu0 %v1912
      %1971 = vmatprep.subr.mxu0 0.0
      %1972 = vmatpush2.msra.mxu0 %v1911
      %1973 = vmatprep.subr.mxu0 0.0
      %1974 = vmatpush2.msra.mxu0 %v1910
      %1975 = vmatprep.subr.mxu0 0.0
      %1976 = vmatpush2.msra.mxu0 %v1909
      %1977 = vmatprep.subr.mxu0 0.0
      %1978 = vmatpush2.msra.mxu0 %v1908
      %1979 = vmatprep.subr.mxu0 0.0
      %1980 = vmatpush2.msra.mxu0 %v1907
      %1981 = vmatprep.subr.mxu0 0.0
      %1982 = vmatpush2.msra.mxu0 %v1906
      %1983 = vmatprep.subr.mxu0 0.0
      %1984 = vmatpush2.msra.mxu0 %v1905
      %1985 = vmatprep.mubr.f32.mxu0 %v1668
      %1986 = vmatmul.mubr.f32.gmra.mxu0 %v1666
      %v1987 = vpop.f32.mrf.mxu0
      %v1988 = vadd.f32 0.0, %v1987
      %v1989 = vpop.f32.mrf.mxu0
      %1990 = vmatprep.mubr.f32.mxu0 %v1672
      %1991 = vmatmul.mubr.f32.gmra.mxu0 %v1670
      %v1992 = vpop.f32.mrf.mxu0
      %v1993 = vadd.f32 0.0, %v1992
      %v1994 = vpop.f32.mrf.mxu0
      %1995 = vmatprep.mubr.f32.mxu0 %v1676
      %1996 = vmatmul.mubr.f32.gmra.mxu0 %v1674
      %v1997 = vpop.f32.mrf.mxu0
      %v1998 = vadd.f32 0.0, %v1997
      %v1999 = vpop.f32.mrf.mxu0
      %2000 = vmatprep.mubr.f32.mxu0 %v1680
      %2001 = vmatmul.mubr.f32.gmra.mxu0 %v1678
      %v2002 = vpop.f32.mrf.mxu0
      %v2003 = vadd.f32 0.0, %v2002
      %v2004 = vpop.f32.mrf.mxu0
      %2005 = vmatprep.mubr.f32.mxu0 %v1684
      %2006 = vmatmul.mubr.f32.gmra.mxu0 %v1682
      %v2007 = vpop.f32.mrf.mxu0
      %v2008 = vadd.f32 0.0, %v2007
      %v2009 = vpop.f32.mrf.mxu0
      %2010 = vmatprep.mubr.f32.mxu0 %v1688
      %2011 = vmatmul.mubr.f32.gmra.mxu0 %v1686
      %v2012 = vpop.f32.mrf.mxu0
      %v2013 = vadd.f32 0.0, %v2012
      %v2014 = vpop.f32.mrf.mxu0
      %2015 = vmatprep.mubr.f32.mxu0 %v1692
      %2016 = vmatmul.mubr.f32.gmra.mxu0 %v1690
      %v2017 = vpop.f32.mrf.mxu0
      %v2018 = vadd.f32 0.0, %v2017
      %v2019 = vpop.f32.mrf.mxu0
      %2020 = vmatprep.mubr.f32.mxu0 %v1696
      %2021 = vmatmul.mubr.f32.gmra.mxu0 %v1694
      %v2022 = vpop.f32.mrf.mxu0
      %v2023 = vadd.f32 0.0, %v2022
      %v2024 = vpop.f32.mrf.mxu0
      %2025 = vmatprep.mubr.f32.mxu0 %v1700
      %2026 = vmatmul.mubr.f32.gmra.mxu0 %v1698
      %v2027 = vpop.f32.mrf.mxu0
      %v2028 = vadd.f32 0.0, %v2027
      %v2029 = vpop.f32.mrf.mxu0
      %2030 = vmatprep.mubr.f32.mxu0 %v1704
      %2031 = vmatmul.mubr.f32.gmra.mxu0 %v1702
      %v2032 = vpop.f32.mrf.mxu0
      %v2033 = vadd.f32 0.0, %v2032
      %v2034 = vpop.f32.mrf.mxu0
      %2035 = vmatprep.mubr.f32.mxu0 %v1708
      %2036 = vmatmul.mubr.f32.gmra.mxu0 %v1706
      %v2037 = vpop.f32.mrf.mxu0
      %v2038 = vadd.f32 0.0, %v2037
      %v2039 = vpop.f32.mrf.mxu0
      %2040 = vmatprep.mubr.f32.mxu0 %v1712
      %2041 = vmatmul.mubr.f32.gmra.mxu0 %v1710
      %v2042 = vpop.f32.mrf.mxu0
      %v2043 = vadd.f32 0.0, %v2042
      %v2044 = vpop.f32.mrf.mxu0
      %2045 = vmatprep.mubr.f32.mxu0 %v1716
      %2046 = vmatmul.mubr.f32.gmra.mxu0 %v1714
      %v2047 = vpop.f32.mrf.mxu0
      %v2048 = vadd.f32 0.0, %v2047
      %v2049 = vpop.f32.mrf.mxu0
      %2050 = vmatprep.mubr.f32.mxu0 %v1720
      %2051 = vmatmul.mubr.f32.gmra.mxu0 %v1718
      %v2052 = vpop.f32.mrf.mxu0
      %v2053 = vadd.f32 0.0, %v2052
      %v2054 = vpop.f32.mrf.mxu0
      %2055 = vmatprep.mubr.f32.mxu0 %v1724
      %2056 = vmatmul.mubr.f32.gmra.mxu0 %v1722
      %v2057 = vpop.f32.mrf.mxu0
      %v2058 = vadd.f32 0.0, %v2057
      %v2059 = vpop.f32.mrf.mxu0
      %2060 = vmatprep.mubr.f32.mxu0 %v1728
      %2061 = vmatmul.mubr.f32.gmra.mxu0 %v1726
      %v2062 = vpop.f32.mrf.mxu0
      %v2063 = vadd.f32 0.0, %v2062
      %v2064 = vpop.f32.mrf.mxu0
      %2065 = vmatprep.mubr.f32.mxu0 %v1732
      %2066 = vmatmul.mubr.f32.gmra.mxu0 %v1730
      %v2067 = vpop.f32.mrf.mxu0
      %v2068 = vadd.f32 0.0, %v2067
      %v2069 = vpop.f32.mrf.mxu0
      %2070 = vmatprep.mubr.f32.mxu0 %v1736
      %2071 = vmatmul.mubr.f32.gmra.mxu0 %v1734
      %v2072 = vpop.f32.mrf.mxu0
      %v2073 = vadd.f32 0.0, %v2072
      %v2074 = vpop.f32.mrf.mxu0
      %2075 = vmatprep.mubr.f32.mxu0 %v1740
      %2076 = vmatmul.mubr.f32.gmra.mxu0 %v1738
      %v2077 = vpop.f32.mrf.mxu0
      %v2078 = vadd.f32 0.0, %v2077
      %v2079 = vpop.f32.mrf.mxu0
      %2080 = vmatprep.mubr.f32.mxu0 %v1744
      %2081 = vmatmul.mubr.f32.gmra.mxu0 %v1742
      %v2082 = vpop.f32.mrf.mxu0
      %v2083 = vadd.f32 0.0, %v2082
      %v2084 = vpop.f32.mrf.mxu0
      %2085 = vmatprep.mubr.f32.mxu0 %v1748
      %2086 = vmatmul.mubr.f32.gmra.mxu0 %v1746
      %v2087 = vpop.f32.mrf.mxu0
      %v2088 = vadd.f32 0.0, %v2087
      %v2089 = vpop.f32.mrf.mxu0
      %2090 = vmatprep.mubr.f32.mxu0 %v1752
      %2091 = vmatmul.mubr.f32.gmra.mxu0 %v1750
      %v2092 = vpop.f32.mrf.mxu0
      %v2093 = vadd.f32 0.0, %v2092
      %v2094 = vpop.f32.mrf.mxu0
      %2095 = vmatprep.mubr.f32.mxu0 %v1756
      %2096 = vmatmul.mubr.f32.gmra.mxu0 %v1754
      %v2097 = vpop.f32.mrf.mxu0
      %v2098 = vadd.f32 0.0, %v2097
      %v2099 = vpop.f32.mrf.mxu0
      %2100 = vmatprep.mubr.f32.mxu0 %v1760
      %2101 = vmatmul.mubr.f32.gmra.mxu0 %v1758
      %v2102 = vpop.f32.mrf.mxu0
      %v2103 = vadd.f32 0.0, %v2102
      %v2104 = vpop.f32.mrf.mxu0
      %2105 = vmatprep.mubr.f32.mxu0 %v1764
      %2106 = vmatmul.mubr.f32.gmra.mxu0 %v1762
      %v2107 = vpop.f32.mrf.mxu0
      %v2108 = vadd.f32 0.0, %v2107
      %v2109 = vpop.f32.mrf.mxu0
      %2110 = vmatprep.mubr.f32.mxu0 %v1768
      %2111 = vmatmul.mubr.f32.gmra.mxu0 %v1766
      %v2112 = vpop.f32.mrf.mxu0
      %v2113 = vadd.f32 0.0, %v2112
      %v2114 = vpop.f32.mrf.mxu0
      %2115 = vmatprep.mubr.f32.mxu0 %v1772
      %2116 = vmatmul.mubr.f32.gmra.mxu0 %v1770
      %v2117 = vpop.f32.mrf.mxu0
      %v2118 = vadd.f32 0.0, %v2117
      %v2119 = vpop.f32.mrf.mxu0
      %2120 = vmatprep.mubr.f32.mxu0 %v1776
      %2121 = vmatmul.mubr.f32.gmra.mxu0 %v1774
      %v2122 = vpop.f32.mrf.mxu0
      %v2123 = vadd.f32 0.0, %v2122
      %v2124 = vpop.f32.mrf.mxu0
      %2125 = vmatprep.mubr.f32.mxu0 %v1780
      %2126 = vmatmul.mubr.f32.gmra.mxu0 %v1778
      %v2127 = vpop.f32.mrf.mxu0
      %v2128 = vadd.f32 0.0, %v2127
      %v2129 = vpop.f32.mrf.mxu0
      %2130 = vmatprep.mubr.f32.mxu0 %v1784
      %2131 = vmatmul.mubr.f32.gmra.mxu0 %v1782
      %v2132 = vpop.f32.mrf.mxu0
      %v2133 = vadd.f32 0.0, %v2132
      %v2134 = vpop.f32.mrf.mxu0
      %2135 = vmatprep.mubr.f32.mxu0 %v1788
      %2136 = vmatmul.mubr.f32.gmra.mxu0 %v1786
      %v2137 = vpop.f32.mrf.mxu0
      %v2138 = vadd.f32 0.0, %v2137
      %v2139 = vpop.f32.mrf.mxu0
      %2140 = vmatprep.mubr.f32.mxu0 %v1792
      %2141 = vmatmul.mubr.f32.gmra.mxu0 %v1790
      %v2142 = vpop.f32.mrf.mxu0
      %v2143 = vadd.f32 0.0, %v2142
      %v2144 = vpop.f32.mrf.mxu0
      %2145 = vdwg.mxu0
      %v2146 = vrcp.pop %v1795
      %v2147 = vrcp.pop %v1798
      %v2148 = vrcp.pop %v1801
      %v2149 = vrcp.pop %v1804
      %v2150 = vrcp.pop %v1807
      %v2151 = vrcp.pop %v1810
      %v2152 = vrcp.pop %v1813
      %v2153 = vrcp.pop %v1816
      %v2154 = vrcp.pop %v1819
      %v2155 = vrcp.pop %v1822
      %v2156 = vrcp.pop %v1825
      %v2157 = vrcp.pop %v1828
      %v2158 = vrcp.pop %v1831
      %v2159 = vrcp.pop %v1834
      %v2160 = vrcp.pop %v1837
      %v2161 = vrcp.pop %v1840
      %v2162 = vrcp.pop %v1843
      %v2163 = vrcp.pop %v1846
      %v2164 = vrcp.pop %v1849
      %v2165 = vrcp.pop %v1852
      %v2166 = vrcp.pop %v1855
      %v2167 = vrcp.pop %v1858
      %v2168 = vrcp.pop %v1861
      %v2169 = vrcp.pop %v1864
      %v2170 = vrcp.pop %v1867
      %v2171 = vrcp.pop %v1870
      %v2172 = vrcp.pop %v1873
      %v2173 = vrcp.pop %v1876
      %v2174 = vrcp.pop %v1879
      %v2175 = vrcp.pop %v1882
      %v2176 = vrcp.pop %v1885
      %v2177 = vrcp.pop %v1888
      %v2178 = vmul.f32 %v1988, %v2146
      %v2179 = vmul.f32 %v1993, %v2147
      %v2180 = vmul.f32 %v1998, %v2148
      %v2181 = vmul.f32 %v2003, %v2149
      %v2182 = vmul.f32 %v2008, %v2150
      %v2183 = vmul.f32 %v2013, %v2151
      %v2184 = vmul.f32 %v2018, %v2152
      %v2185 = vmul.f32 %v2023, %v2153
      %v2186 = vmul.f32 %v2028, %v2154
      %v2187 = vmul.f32 %v2033, %v2155
      %v2188 = vmul.f32 %v2038, %v2156
      %v2189 = vmul.f32 %v2043, %v2157
      %v2190 = vmul.f32 %v2048, %v2158
      %v2191 = vmul.f32 %v2053, %v2159
      %v2192 = vmul.f32 %v2058, %v2160
      %v2193 = vmul.f32 %v2063, %v2161
      %v2194 = vmul.f32 %v2068, %v2162
      %v2195 = vmul.f32 %v2073, %v2163
      %v2196 = vmul.f32 %v2078, %v2164
      %v2197 = vmul.f32 %v2083, %v2165
      %v2198 = vmul.f32 %v2088, %v2166
      %v2199 = vmul.f32 %v2093, %v2167
      %v2200 = vmul.f32 %v2098, %v2168
      %v2201 = vmul.f32 %v2103, %v2169
      %v2202 = vmul.f32 %v2108, %v2170
      %v2203 = vmul.f32 %v2113, %v2171
      %v2204 = vmul.f32 %v2118, %v2172
      %v2205 = vmul.f32 %v2123, %v2173
      %v2206 = vmul.f32 %v2128, %v2174
      %v2207 = vmul.f32 %v2133, %v2175
      %v2208 = vmul.f32 %v2138, %v2176
      %v2209 = vmul.f32 %v2143, %v2177
      %v2210 = vld [vmem:[%s469] sm:$0xf]
      %v2212 = vsel %vm494, %v2178, 0
      %v2215 = vsel %vm494, %v2179, 0
      %v2218 = vsel %vm494, %v2180, 0
      %v2221 = vsel %vm494, %v2181, 0
      %v2224 = vsel %vm494, %v2182, 0
      %v2227 = vsel %vm494, %v2183, 0
      %v2230 = vsel %vm494, %v2184, 0
      %v2233 = vsel %vm494, %v2185, 0
      %v2236 = vsel %vm494, %v2186, 0
      %v2239 = vsel %vm494, %v2187, 0
      %v2242 = vsel %vm494, %v2188, 0
      %v2245 = vsel %vm494, %v2189, 0
      %v2248 = vsel %vm494, %v2190, 0
      %v2251 = vsel %vm494, %v2191, 0
      %v2254 = vsel %vm494, %v2192, 0
      %v2257 = vsel %vm494, %v2193, 0
      %v2260 = vsel %vm494, %v2194, 0
      %v2263 = vsel %vm494, %v2195, 0
      %v2266 = vsel %vm494, %v2196, 0
      %v2269 = vsel %vm494, %v2197, 0
      %v2272 = vsel %vm494, %v2198, 0
      %v2275 = vsel %vm494, %v2199, 0
      %v2278 = vsel %vm494, %v2200, 0
      %v2281 = vsel %vm494, %v2201, 0
      %v2284 = vsel %vm494, %v2202, 0
      %v2287 = vsel %vm494, %v2203, 0
      %v2290 = vsel %vm494, %v2204, 0
      %v2293 = vsel %vm494, %v2205, 0
      %v2296 = vsel %vm494, %v2206, 0
      %v2299 = vsel %vm494, %v2207, 0
      %v2302 = vsel %vm494, %v2208, 0
      %v2305 = vsel %vm494, %v2209, 0
      %v2308 = vsel %vm498, %v2210, 0
      %2310 = vmatprep.subr.mxu0 0.0
      %2311 = vmatpush1.msra.mxu0 0.0
      %2312 = vmatprep.subr.mxu0 0.0
      %2313 = vmatpush1.msra.mxu0 0.0
      %2314 = vmatprep.subr.mxu0 0.0
      %2315 = vmatpush1.msra.mxu0 0.0
      %2316 = vmatprep.subr.mxu0 0.0
      %2317 = vmatpush1.msra.mxu0 0.0
      %2318 = vmatprep.subr.mxu0 0.0
      %2319 = vmatpush1.msra.mxu0 0.0
      %2320 = vmatprep.subr.mxu0 0.0
      %2321 = vmatpush1.msra.mxu0 0.0
      %2322 = vmatprep.subr.mxu0 0.0
      %2323 = vmatpush1.msra.mxu0 0.0
      %2324 = vmatprep.subr.mxu0 0.0
      %2325 = vmatpush1.msra.mxu0 0.0
      %2326 = vmatprep.subr.mxu0 0.0
      %2327 = vmatpush1.msra.mxu0 0.0
      %2328 = vmatprep.subr.mxu0 0.0
      %2329 = vmatpush1.msra.mxu0 0.0
      %2330 = vmatprep.subr.mxu0 0.0
      %2331 = vmatpush1.msra.mxu0 0.0
      %2332 = vmatprep.subr.mxu0 0.0
      %2333 = vmatpush1.msra.mxu0 0.0
      %2334 = vmatprep.subr.mxu0 0.0
      %2335 = vmatpush1.msra.mxu0 0.0
      %2336 = vmatprep.subr.mxu0 0.0
      %2337 = vmatpush1.msra.mxu0 0.0
      %2338 = vmatprep.subr.mxu0 0.0
      %2339 = vmatpush1.msra.mxu0 0.0
      %2340 = vmatprep.subr.mxu0 0.0
      %2341 = vmatpush1.msra.mxu0 %v2308
      %2342 = vmatprep.subr.mxu0 0.0
      %2343 = vmatpush2.msra.mxu0 0.0
      %2344 = vmatprep.subr.mxu0 0.0
      %2345 = vmatpush2.msra.mxu0 0.0
      %2346 = vmatprep.subr.mxu0 0.0
      %2347 = vmatpush2.msra.mxu0 0.0
      %2348 = vmatprep.subr.mxu0 0.0
      %2349 = vmatpush2.msra.mxu0 0.0
      %2350 = vmatprep.subr.mxu0 0.0
      %2351 = vmatpush2.msra.mxu0 0.0
      %2352 = vmatprep.subr.mxu0 0.0
      %2353 = vmatpush2.msra.mxu0 0.0
      %2354 = vmatprep.subr.mxu0 0.0
      %2355 = vmatpush2.msra.mxu0 0.0
      %2356 = vmatprep.subr.mxu0 0.0
      %2357 = vmatpush2.msra.mxu0 0.0
      %2358 = vmatprep.subr.mxu0 0.0
      %2359 = vmatpush2.msra.mxu0 0.0
      %2360 = vmatprep.subr.mxu0 0.0
      %2361 = vmatpush2.msra.mxu0 0.0
      %2362 = vmatprep.subr.mxu0 0.0
      %2363 = vmatpush2.msra.mxu0 0.0
      %2364 = vmatprep.subr.mxu0 0.0
      %2365 = vmatpush2.msra.mxu0 0.0
      %2366 = vmatprep.subr.mxu0 0.0
      %2367 = vmatpush2.msra.mxu0 0.0
      %2368 = vmatprep.subr.mxu0 0.0
      %2369 = vmatpush2.msra.mxu0 0.0
      %2370 = vmatprep.subr.mxu0 0.0
      %2371 = vmatpush2.msra.mxu0 0.0
      %2372 = vmatprep.subr.mxu0 0.0
      %2373 = vmatpush2.msra.mxu0 0.0
      %2374 = vmatprep.mubr.f32.mxu0 0.0
      %2375 = vmatmul.mubr.f32.gmra.mxu0 %v2212
      %v2376 = vpop.f32.mrf.mxu0
      %v2377 = vadd.f32 0.0, %v2376
      %v2378 = vpop.f32.mrf.mxu0
      %2379 = vmatprep.mubr.f32.mxu0 0.0
      %2380 = vmatmul.mubr.f32.gmra.mxu0 %v2215
      %v2381 = vpop.f32.mrf.mxu0
      %v2382 = vadd.f32 0.0, %v2381
      %v2383 = vpop.f32.mrf.mxu0
      %2384 = vmatprep.mubr.f32.mxu0 0.0
      %2385 = vmatmul.mubr.f32.gmra.mxu0 %v2218
      %v2386 = vpop.f32.mrf.mxu0
      %v2387 = vadd.f32 0.0, %v2386
      %v2388 = vpop.f32.mrf.mxu0
      %2389 = vmatprep.mubr.f32.mxu0 0.0
      %2390 = vmatmul.mubr.f32.gmra.mxu0 %v2221
      %v2391 = vpop.f32.mrf.mxu0
      %v2392 = vadd.f32 0.0, %v2391
      %v2393 = vpop.f32.mrf.mxu0
      %2394 = vmatprep.mubr.f32.mxu0 0.0
      %2395 = vmatmul.mubr.f32.gmra.mxu0 %v2224
      %v2396 = vpop.f32.mrf.mxu0
      %v2397 = vadd.f32 0.0, %v2396
      %v2398 = vpop.f32.mrf.mxu0
      %2399 = vmatprep.mubr.f32.mxu0 0.0
      %2400 = vmatmul.mubr.f32.gmra.mxu0 %v2227
      %v2401 = vpop.f32.mrf.mxu0
      %v2402 = vadd.f32 0.0, %v2401
      %v2403 = vpop.f32.mrf.mxu0
      %2404 = vmatprep.mubr.f32.mxu0 0.0
      %2405 = vmatmul.mubr.f32.gmra.mxu0 %v2230
      %v2406 = vpop.f32.mrf.mxu0
      %v2407 = vadd.f32 0.0, %v2406
      %v2408 = vpop.f32.mrf.mxu0
      %2409 = vmatprep.mubr.f32.mxu0 0.0
      %2410 = vmatmul.mubr.f32.gmra.mxu0 %v2233
      %v2411 = vpop.f32.mrf.mxu0
      %v2412 = vadd.f32 0.0, %v2411
      %v2413 = vpop.f32.mrf.mxu0
      %2414 = vmatprep.mubr.f32.mxu0 0.0
      %2415 = vmatmul.mubr.f32.gmra.mxu0 %v2236
      %v2416 = vpop.f32.mrf.mxu0
      %v2417 = vadd.f32 0.0, %v2416
      %v2418 = vpop.f32.mrf.mxu0
      %2419 = vmatprep.mubr.f32.mxu0 0.0
      %2420 = vmatmul.mubr.f32.gmra.mxu0 %v2239
      %v2421 = vpop.f32.mrf.mxu0
      %v2422 = vadd.f32 0.0, %v2421
      %v2423 = vpop.f32.mrf.mxu0
      %2424 = vmatprep.mubr.f32.mxu0 0.0
      %2425 = vmatmul.mubr.f32.gmra.mxu0 %v2242
      %v2426 = vpop.f32.mrf.mxu0
      %v2427 = vadd.f32 0.0, %v2426
      %v2428 = vpop.f32.mrf.mxu0
      %2429 = vmatprep.mubr.f32.mxu0 0.0
      %2430 = vmatmul.mubr.f32.gmra.mxu0 %v2245
      %v2431 = vpop.f32.mrf.mxu0
      %v2432 = vadd.f32 0.0, %v2431
      %v2433 = vpop.f32.mrf.mxu0
      %2434 = vmatprep.mubr.f32.mxu0 0.0
      %2435 = vmatmul.mubr.f32.gmra.mxu0 %v2248
      %v2436 = vpop.f32.mrf.mxu0
      %v2437 = vadd.f32 0.0, %v2436
      %v2438 = vpop.f32.mrf.mxu0
      %2439 = vmatprep.mubr.f32.mxu0 0.0
      %2440 = vmatmul.mubr.f32.gmra.mxu0 %v2251
      %v2441 = vpop.f32.mrf.mxu0
      %v2442 = vadd.f32 0.0, %v2441
      %v2443 = vpop.f32.mrf.mxu0
      %2444 = vmatprep.mubr.f32.mxu0 0.0
      %2445 = vmatmul.mubr.f32.gmra.mxu0 %v2254
      %v2446 = vpop.f32.mrf.mxu0
      %v2447 = vadd.f32 0.0, %v2446
      %v2448 = vpop.f32.mrf.mxu0
      %2449 = vmatprep.mubr.f32.mxu0 0.0
      %2450 = vmatmul.mubr.f32.gmra.mxu0 %v2257
      %v2451 = vpop.f32.mrf.mxu0
      %v2452 = vadd.f32 0.0, %v2451
      %v2453 = vpop.f32.mrf.mxu0
      %2454 = vmatprep.mubr.f32.mxu0 0.0
      %2455 = vmatmul.mubr.f32.gmra.mxu0 %v2260
      %v2456 = vpop.f32.mrf.mxu0
      %v2457 = vadd.f32 0.0, %v2456
      %v2458 = vpop.f32.mrf.mxu0
      %2459 = vmatprep.mubr.f32.mxu0 0.0
      %2460 = vmatmul.mubr.f32.gmra.mxu0 %v2263
      %v2461 = vpop.f32.mrf.mxu0
      %v2462 = vadd.f32 0.0, %v2461
      %v2463 = vpop.f32.mrf.mxu0
      %2464 = vmatprep.mubr.f32.mxu0 0.0
      %2465 = vmatmul.mubr.f32.gmra.mxu0 %v2266
      %v2466 = vpop.f32.mrf.mxu0
      %v2467 = vadd.f32 0.0, %v2466
      %v2468 = vpop.f32.mrf.mxu0
      %2469 = vmatprep.mubr.f32.mxu0 0.0
      %2470 = vmatmul.mubr.f32.gmra.mxu0 %v2269
      %v2471 = vpop.f32.mrf.mxu0
      %v2472 = vadd.f32 0.0, %v2471
      %v2473 = vpop.f32.mrf.mxu0
      %2474 = vmatprep.mubr.f32.mxu0 0.0
      %2475 = vmatmul.mubr.f32.gmra.mxu0 %v2272
      %v2476 = vpop.f32.mrf.mxu0
      %v2477 = vadd.f32 0.0, %v2476
      %v2478 = vpop.f32.mrf.mxu0
      %2479 = vmatprep.mubr.f32.mxu0 0.0
      %2480 = vmatmul.mubr.f32.gmra.mxu0 %v2275
      %v2481 = vpop.f32.mrf.mxu0
      %v2482 = vadd.f32 0.0, %v2481
      %v2483 = vpop.f32.mrf.mxu0
      %2484 = vmatprep.mubr.f32.mxu0 0.0
      %2485 = vmatmul.mubr.f32.gmra.mxu0 %v2278
      %v2486 = vpop.f32.mrf.mxu0
      %v2487 = vadd.f32 0.0, %v2486
      %v2488 = vpop.f32.mrf.mxu0
      %2489 = vmatprep.mubr.f32.mxu0 0.0
      %2490 = vmatmul.mubr.f32.gmra.mxu0 %v2281
      %v2491 = vpop.f32.mrf.mxu0
      %v2492 = vadd.f32 0.0, %v2491
      %v2493 = vpop.f32.mrf.mxu0
      %2494 = vmatprep.mubr.f32.mxu0 0.0
      %2495 = vmatmul.mubr.f32.gmra.mxu0 %v2284
      %v2496 = vpop.f32.mrf.mxu0
      %v2497 = vadd.f32 0.0, %v2496
      %v2498 = vpop.f32.mrf.mxu0
      %2499 = vmatprep.mubr.f32.mxu0 0.0
      %2500 = vmatmul.mubr.f32.gmra.mxu0 %v2287
      %v2501 = vpop.f32.mrf.mxu0
      %v2502 = vadd.f32 0.0, %v2501
      %v2503 = vpop.f32.mrf.mxu0
      %2504 = vmatprep.mubr.f32.mxu0 0.0
      %2505 = vmatmul.mubr.f32.gmra.mxu0 %v2290
      %v2506 = vpop.f32.mrf.mxu0
      %v2507 = vadd.f32 0.0, %v2506
      %v2508 = vpop.f32.mrf.mxu0
      %2509 = vmatprep.mubr.f32.mxu0 0.0
      %2510 = vmatmul.mubr.f32.gmra.mxu0 %v2293
      %v2511 = vpop.f32.mrf.mxu0
      %v2512 = vadd.f32 0.0, %v2511
      %v2513 = vpop.f32.mrf.mxu0
      %2514 = vmatprep.mubr.f32.mxu0 0.0
      %2515 = vmatmul.mubr.f32.gmra.mxu0 %v2296
      %v2516 = vpop.f32.mrf.mxu0
      %v2517 = vadd.f32 0.0, %v2516
      %v2518 = vpop.f32.mrf.mxu0
      %2519 = vmatprep.mubr.f32.mxu0 0.0
      %2520 = vmatmul.mubr.f32.gmra.mxu0 %v2299
      %v2521 = vpop.f32.mrf.mxu0
      %v2522 = vadd.f32 0.0, %v2521
      %v2523 = vpop.f32.mrf.mxu0
      %2524 = vmatprep.mubr.f32.mxu0 0.0
      %2525 = vmatmul.mubr.f32.gmra.mxu0 %v2302
      %v2526 = vpop.f32.mrf.mxu0
      %v2527 = vadd.f32 0.0, %v2526
      %v2528 = vpop.f32.mrf.mxu0
      %2529 = vmatprep.mubr.f32.mxu0 0.0
      %2530 = vmatmul.mubr.f32.gmra.mxu0 %v2305
      %v2531 = vpop.f32.mrf.mxu0
      %v2532 = vadd.f32 0.0, %v2531
      %v2533 = vpop.f32.mrf.mxu0
      %2534 = vdwg.mxu0
      %2535 = vst.msk [vmem:[%s482] sm:$0xff] %vm494, %v2377
      %2536 = vst.msk [vmem:[%s482 + $0x8] sm:$0xff] %vm494, %v2382
      %2537 = vst.msk [vmem:[%s482 + $0x10] sm:$0xff] %vm494, %v2387
      %2538 = vst.msk [vmem:[%s482 + $0x18] sm:$0xff] %vm494, %v2392
      %2539 = vst.msk [vmem:[%s482 + $0x20] sm:$0xff] %vm494, %v2397
      %2540 = vst.msk [vmem:[%s482 + $0x28] sm:$0xff] %vm494, %v2402
      %2541 = vst.msk [vmem:[%s482 + $0x30] sm:$0xff] %vm494, %v2407
      %2542 = vst.msk [vmem:[%s482 + $0x38] sm:$0xff] %vm494, %v2412
      %2543 = vst.msk [vmem:[%s482 + $0x40] sm:$0xff] %vm494, %v2417
      %2544 = vst.msk [vmem:[%s482 + $0x48] sm:$0xff] %vm494, %v2422
      %2545 = vst.msk [vmem:[%s482 + $0x50] sm:$0xff] %vm494, %v2427
      %2546 = vst.msk [vmem:[%s482 + $0x58] sm:$0xff] %vm494, %v2432
      %2547 = vst.msk [vmem:[%s482 + $0x60] sm:$0xff] %vm494, %v2437
      %2548 = vst.msk [vmem:[%s482 + $0x68] sm:$0xff] %vm494, %v2442
      %2549 = vst.msk [vmem:[%s482 + $0x70] sm:$0xff] %vm494, %v2447
      %2550 = vst.msk [vmem:[%s482 + $0x78] sm:$0xff] %vm494, %v2452
      %2551 = vst.msk [vmem:[%s482 + $0x80] sm:$0xff] %vm494, %v2457
      %2552 = vst.msk [vmem:[%s482 + $0x88] sm:$0xff] %vm494, %v2462
      %2553 = vst.msk [vmem:[%s482 + $0x90] sm:$0xff] %vm494, %v2467
      %2554 = vst.msk [vmem:[%s482 + $0x98] sm:$0xff] %vm494, %v2472
      %2555 = vst.msk [vmem:[%s482 + $0xa0] sm:$0xff] %vm494, %v2477
      %2556 = vst.msk [vmem:[%s482 + $0xa8] sm:$0xff] %vm494, %v2482
      %2557 = vst.msk [vmem:[%s482 + $0xb0] sm:$0xff] %vm494, %v2487
      %2558 = vst.msk [vmem:[%s482 + $0xb8] sm:$0xff] %vm494, %v2492
      %2559 = vst.msk [vmem:[%s482 + $0xc0] sm:$0xff] %vm494, %v2497
      %2560 = vst.msk [vmem:[%s482 + $0xc8] sm:$0xff] %vm494, %v2502
      %2561 = vst.msk [vmem:[%s482 + $0xd0] sm:$0xff] %vm494, %v2507
      %2562 = vst.msk [vmem:[%s482 + $0xd8] sm:$0xff] %vm494, %v2512
      %2563 = vst.msk [vmem:[%s482 + $0xe0] sm:$0xff] %vm494, %v2517
      %2564 = vst.msk [vmem:[%s482 + $0xe8] sm:$0xff] %vm494, %v2522
      %2565 = vst.msk [vmem:[%s482 + $0xf0] sm:$0xff] %vm494, %v2527
      %2566 = vst.msk [vmem:[%s482 + $0xf8] sm:$0xff] %vm494, %v2532
      %s2567 = smul.u32 32, %s26
      %p2568 = scmp.lt.s32.totalorder %s24, 1
      %s2569 = scalar_select %p2568, %s24, 1
      %p2570 = scmp.lt.s32.totalorder %s25, 0
      %s2571 = scalar_select %p2570, %s25, 0
      %p2572 = scmp.lt.s32.totalorder %s2567, 31
      %s2573 = scalar_select %p2572, %s2567, 31
      %s2574 = smul.addr %s2571, 32
      %s2575 = sadd.s32 %s2573, %s2574
      %s2576 = smul.addr %s2569, 32
      %s2577 = sadd.s32 %s2575, %s2576
      %s2578 = smul.addr %s2577, 8
      %s2579 = scalar_lea.vmem %s8, %s2578
      // Predicated region
      $region53: #{l2_self_attn_forward.3} parent=51 // pred_check
        %p2580 = pneg %p270
      $region54: #{l2_self_attn_forward.3} parent=51 // pred_check_branch
        %2582 = sbr.rel (%p2580) target = $region56
      $region55: #{l2_self_attn_forward.3} parent=51 // pred_region
        %s2583 = smul.u32 32, %s26
      $region56: #{l2_self_attn_forward.3} parent=51 // pred_fallthru
        _
    $region52: #{l2_self_attn_forward.3} parent=5 // pred_fallthru
      _
    %p2584 = scmp.le.s32.totalorder 2, %s14
    // Predicated region
    $region57: #{l2_self_attn_forward.3} parent=5 // pred_check
      %p2585 = pneg %p2584
    $region58: #{l2_self_attn_forward.3} parent=5 // pred_check_branch
      %2587 = sbr.rel (%p2585) target = $region60
    $region59: #{l2_self_attn_forward.3} parent=5 // pred_region
      %s2588 = ssub.s32 %s14, 2
      // Predicated region
      $region61: #{l2_self_attn_forward.3} parent=59 // pred_check
        %p2589 = pneg %p276
      $region62: #{l2_self_attn_forward.3} parent=59 // pred_check_branch
        %2591 = sbr.rel (%p2589) target = $region64
      $region63: #{l2_self_attn_forward.3} parent=59 // pred_region
        %s2592 = smul.u32 32, %s29
        %p2593 = scmp.lt.s32.totalorder %s27, 1
        %s2594 = scalar_select %p2593, %s27, 1
        %p2595 = scmp.lt.s32.totalorder %s28, 0
        %s2596 = scalar_select %p2595, %s28, 0
        %p2597 = scmp.lt.s32.totalorder %s2592, 31
        %s2598 = scalar_select %p2597, %s2592, 31
        %s2599 = smul.addr %s2596, 32
        %s2600 = sadd.s32 %s2598, %s2599
        %s2601 = smul.addr %s2594, 32
        %s2602 = sadd.s32 %s2600, %s2601
        %s2603 = smul.addr %s2602, 8
        %s2604 = scalar_lea.vmem %s8, %s2603
      $region64: #{l2_self_attn_forward.3} parent=59 // pred_fallthru
        _
    $region60: #{l2_self_attn_forward.3} parent=5 // pred_fallthru
      _
  $region6: #{l2_self_attn_forward.3} parent=0 // loop_footer
    %s18 = sadd.s32 1, %s14
  $region7: #{l2_self_attn_forward.3} parent=0 // loop_footer_branch
    %13 = sbr.rel target = $region3
  $region8: #{l2_self_attn_forward.3} parent=0 // loop_exit
    _

</llo_original>
